<compile_context>
chip_gen: v7x
topology: tpu7x:2x2x1
jax: 0.10.0
libtpu: 0.0.40
codegen_flags: <defaults>
</compile_context>

<pallas_src>
import functools

import jax
import jax.numpy as jnp
from jax import lax
from jax.experimental import pallas as pl
from jax.experimental.pallas import tpu as pltpu


def _round_up(v, m):
    return ((v + m - 1) // m) * m


def _gelu_tanh(x):
    # tanh-form GELU (tanh lowers to the EUP slot); max deviation from the
    # exact erf GELU is ~1e-4 over the relevant range.
    c = 0.7978845608028654  # sqrt(2/pi)
    return 0.5 * x * (1.0 + jnp.tanh(c * (x + 0.044715 * x * x * x)))


def _pick_batch_tile(bs, q_len, target_rows):
    """Largest divisor of bs with ~target_rows rows per step, keeping >=2 steps."""
    bt = max(1, min(bs, target_rows // max(q_len, 1)))
    while bs % bt:
        bt -= 1
    if bs // bt < 2 and bs >= 2:      # keep >=2 grid steps (v7x has 2 TCs)
        bt = bs // 2
        while bs % bt:
            bt -= 1
    return max(bt, 1)


def _vmem_limit_bytes():
    # ~75% of per-core VMEM, capped at 96 MiB: ~48 MiB on v7x (64 MiB/TC),
    # 96 MiB on v5e/v6e (128 MiB).  Conservative fallback if the query fails.
    try:
        cap = int(pltpu.get_tpu_info().vmem_capacity_bytes)
    except Exception:
        cap = 64 * 1024 * 1024
    return int(min(96 * 2 ** 20, max(32 * 2 ** 20, (cap * 3) // 4)))


# --------------------------------------------------------------------------
# pl.Buffered(1) probe: single-buffer the grid-invariant weight blocks (halves
# weight VMEM footprint); silently fall back if this JAX build rejects it.
# --------------------------------------------------------------------------
_BUFFERED_WEIGHTS_OK = None


def _probe_copy_kernel(x_ref, o_ref):
    o_ref[...] = x_ref[...]


def _buffered_weights_ok():
    global _BUFFERED_WEIGHTS_OK
    if _BUFFERED_WEIGHTS_OK is None:
        try:
            spec = pl.BlockSpec((8, 128), lambda i: (0, 0),
                                pipeline_mode=pl.Buffered(1))
            out = pl.pallas_call(
                _probe_copy_kernel,
                grid=(1,),
                in_specs=[spec],
                out_specs=pl.BlockSpec((8, 128), lambda i: (0, 0)),
                out_shape=jax.ShapeDtypeStruct((8, 128), jnp.float32),
            )(jnp.zeros((8, 128), jnp.float32))
            jax.block_until_ready(out)
            _BUFFERED_WEIGHTS_OK = True
        except Exception:
            _BUFFERED_WEIGHTS_OK = False
    return _BUFFERED_WEIGHTS_OK


def _weight_spec(shape):
    """Whole-array block with constant index_map (VMEM-resident across steps)."""
    nd = len(shape)
    imap = lambda i: (0,) * nd
    if _buffered_weights_ok():
        return pl.BlockSpec(shape, imap, pipeline_mode=pl.Buffered(1))
    return pl.BlockSpec(shape, imap)


# --------------------------------------------------------------------------
# Pass 1: fused QKV + multi-head attention + output projection + residual.
# Emits per-tile BN1 partial statistics (sum, sum of squared deviations).
# --------------------------------------------------------------------------
def _attn_kernel(x_ref, bias_ref, wqkv_ref, bqkv_ref, wo_ref, bo_ref,
                 y_ref, sum_ref, m2_ref, qkv_ref, ctx_ref,
                 *, n_heads, d_k, d_pad, rows):
    # Fused QKV projection (bf16 operands, f32 accumulation), staged through a
    # bf16 VMEM scratch so the unrolled head loop does not hold q/k/v in vregs.
    qkv = jnp.dot(x_ref[...].astype(jnp.bfloat16), wqkv_ref[...],
                  preferred_element_type=jnp.float32) + bqkv_ref[...]
    qkv_ref[...] = qkv.astype(jnp.bfloat16)

    if n_heads * d_k < d_pad:
        # Padded lanes of the ctx scratch are never written by the head loop;
        # keep them zero so the (zero-padded) Wo rows see 0, not stale VMEM.
        ctx_ref[...] = jnp.zeros_like(ctx_ref)

    for h in range(n_heads):
        c0 = h * d_k
        qh = qkv_ref[:, c0:c0 + d_k]                       # (rows, d_k) bf16
        kh = qkv_ref[:, d_pad + c0:d_pad + c0 + d_k]
        vh = qkv_ref[:, 2 * d_pad + c0:2 * d_pad + c0 + d_k]
        # 1/sqrt(d_k) is folded into Wq/bq in the wrapper.
        s = lax.dot_general(qh, kh, (((1,), (1,)), ((), ())),
                            preferred_element_type=jnp.float32)  # (rows, rows)
        s = s + bias_ref[...]                               # block-diagonal mask
        s = s - jnp.max(s, axis=-1, keepdims=True)
        e = jnp.exp(s)
        den = jnp.sum(e, axis=-1, keepdims=True)
        r = pl.reciprocal(den, approx=True)
        r = r * (2.0 - den * r)                             # one Newton step
        p = (e * r).astype(jnp.bfloat16)
        ctx = jnp.dot(p, vh, preferred_element_type=jnp.float32)
        ctx_ref[:, c0:c0 + d_k] = ctx.astype(jnp.bfloat16)  # static lane offset

    # One full-width output projection over all heads.
    out = jnp.dot(ctx_ref[...], wo_ref[...], preferred_element_type=jnp.float32)
    y = x_ref[...] + out + bo_ref[...]                      # residual + proj bias
    y_ref[...] = y

    # Per-tile BN statistics (centered -> no E[x^2]-E[x]^2 cancellation).
    mean = jnp.sum(y, axis=0, keepdims=True) * (1.0 / rows)
    d = y - mean
    sum_ref[0] = mean * rows
    m2_ref[0] = jnp.sum(d * d, axis=0, keepdims=True)


# --------------------------------------------------------------------------
# Pass 2: BN1 (folded scale/shift) + position-wise FFN + residual.
# Emits per-tile BN2 partial statistics.
# --------------------------------------------------------------------------
def _ffn_kernel(y1_ref, scale1_ref, shift1_ref, w1_ref, b1_ref, w2_ref, b2_ref,
                y2_ref, sum_ref, m2_ref, *, rows):
    s1 = y1_ref[...] * scale1_ref[...] + shift1_ref[...]
    h = jnp.dot(s1.astype(jnp.bfloat16), w1_ref[...],
                preferred_element_type=jnp.float32) + b1_ref[...]
    h = _gelu_tanh(h)
    # Recompute s1 for the residual (cheap) instead of keeping it live in vregs.
    y2 = (y1_ref[...] * scale1_ref[...] + shift1_ref[...]) + \
        jnp.dot(h.astype(jnp.bfloat16), w2_ref[...],
                preferred_element_type=jnp.float32) + b2_ref[...]
    y2_ref[...] = y2

    mean = jnp.sum(y2, axis=0, keepdims=True) * (1.0 / rows)
    d = y2 - mean
    sum_ref[0] = mean * rows
    m2_ref[0] = jnp.sum(d * d, axis=0, keepdims=True)


# --------------------------------------------------------------------------
# Pass 3: BN2 (pure elementwise; big row tiles; output aliases y2's buffer).
# --------------------------------------------------------------------------
def _norm_kernel(y_ref, scale_ref, shift_ref, out_ref):
    out_ref[...] = (y_ref[...] * scale_ref[...] + shift_ref[...]).astype(out_ref.dtype)


def _bn_scale_shift(sums, m2s, n_rows, rows_per_step, g, be, eps):
    """Chan's parallel combine of per-tile (sum, M2) -> folded BN scale/shift."""
    sums = sums[:, 0, :]                                     # (steps, d_pad)
    m2s = m2s[:, 0, :]
    mean = jnp.sum(sums, axis=0, keepdims=True) / n_rows     # (1, d_pad)
    mean_i = sums / rows_per_step
    m2 = jnp.sum(m2s, axis=0, keepdims=True) + rows_per_step * jnp.sum(
        (mean_i - mean) ** 2, axis=0, keepdims=True)
    rstd = lax.rsqrt(m2 / n_rows + eps)                      # biased var (train)
    # NOTE: padded channels rely on g being zero-padded so scale==0 there.
    scale = g * rstd
    shift = be - mean * scale
    return scale, shift


def tst_encoder_layer(src, params, *, n_heads, eps=1e-5):
    """src: (bs, q_len, d_model) float32. Returns (bs, q_len, d_model)."""
    bs, q_len, d_model = src.shape
    d_ff = params["w1"].shape[1]
    d_k = d_model // n_heads
    n_rows = bs * q_len

    # Lane-dense padding of the channel axes.
    d_pad = _round_up(d_model, 128)
    f_pad = _round_up(d_ff, 128)

    # Row tiling: ~256 rows/step for the matmul passes, ~512 for BN2.
    bt12 = _pick_batch_tile(bs, q_len, 256)
    bt3 = _pick_batch_tile(bs, q_len, 512)
    r12, r3 = bt12 * q_len, bt3 * q_len
    steps12, steps3 = bs // bt12, bs // bt3

    def padf(a, r, c):
        a = a.astype(jnp.float32)
        return jnp.pad(a, ((0, r - a.shape[0]), (0, c - a.shape[1])))

    def padw(a, r, c):                    # bf16 MXU operand
        return padf(a, r, c).astype(jnp.bfloat16)

    scale = d_k ** (-0.5)                 # fold attention scale into Q projection
    wqkv = jnp.concatenate([padw(params["wq"] * scale, d_pad, d_pad),
                            padw(params["wk"], d_pad, d_pad),
                            padw(params["wv"], d_pad, d_pad)], axis=1)
    bqkv = jnp.concatenate([padf(params["bq"] * scale, 1, d_pad),
                            padf(params["bk"], 1, d_pad),
                            padf(params["bv"], 1, d_pad)], axis=1)
    wo = padw(params["wo"], d_pad, d_pad)
    bo = padf(params["bo"], 1, d_pad)
    g1 = padf(params["g1"], 1, d_pad)
    be1 = padf(params["be1"], 1, d_pad)
    w1 = padw(params["w1"], d_pad, f_pad)
    b1 = padf(params["b1"], 1, f_pad)
    w2 = padw(params["w2"], f_pad, d_pad)
    b2 = padf(params["b2"], 1, d_pad)
    g2 = padf(params["g2"], 1, d_pad)
    be2 = padf(params["be2"], 1, d_pad)

    # Flattened, lane-padded activations: (bs*q_len, d_pad).
    x = jnp.pad(src.astype(jnp.float32).reshape(n_rows, d_model),
                ((0, 0), (0, d_pad - d_model)))

    # Additive block-diagonal bias so each sequence only attends to itself
    # within the batched row tile (precomputed; grid-invariant).
    seq = jnp.arange(r12, dtype=jnp.int32) // q_len
    attn_bias = jnp.where(seq[:, None] == seq[None, :], 0.0, -1e30
                          ).astype(jnp.float32)

    cparams = pltpu.CompilerParams(
        dimension_semantics=("parallel",),
        vmem_limit_bytes=_vmem_limit_bytes(),
    )

    row12 = pl.BlockSpec((r12, d_pad), lambda i: (i, 0))
    row3 = pl.BlockSpec((r3, d_pad), lambda i: (i, 0))
    stat12 = pl.BlockSpec((1, 1, d_pad), lambda i: (i, 0, 0))

    # ---- pass 1: attention + residual (+ BN1 partial stats) ----------------
    y1, s1sum, s1m2 = pl.pallas_call(
        functools.partial(_attn_kernel, n_heads=n_heads, d_k=d_k,
                          d_pad=d_pad, rows=r12),
        grid=(steps12,),
        out_shape=(
            jax.ShapeDtypeStruct((n_rows, d_pad), jnp.float32),
            jax.ShapeDtypeStruct((steps12, 1, d_pad), jnp.float32),
            jax.ShapeDtypeStruct((steps12, 1, d_pad), jnp.float32),
        ),
        in_specs=[row12, _weight_spec(attn_bias.shape), _weight_spec(wqkv.shape),
                  _weight_spec(bqkv.shape), _weight_spec(wo.shape),
                  _weight_spec(bo.shape)],
        out_specs=(row12, stat12, stat12),
        scratch_shapes=[pltpu.VMEM((r12, 3 * d_pad), jnp.bfloat16),
                        pltpu.VMEM((r12, d_pad), jnp.bfloat16)],
        compiler_params=cparams,
    )(x, attn_bias, wqkv, bqkv, wo, bo)

    sc1, sh1 = _bn_scale_shift(s1sum, s1m2, n_rows, r12, g1, be1, eps)

    # ---- pass 2: BN1 + FFN + residual (+ BN2 partial stats) ----------------
    y2, s2sum, s2m2 = pl.pallas_call(
        functools.partial(_ffn_kernel, rows=r12),
        grid=(steps12,),
        out_shape=(
            jax.ShapeDtypeStruct((n_rows, d_pad), jnp.float32),
            jax.ShapeDtypeStruct((steps12, 1, d_pad), jnp.float32),
            jax.ShapeDtypeStruct((steps12, 1, d_pad), jnp.float32),
        ),
        in_specs=[row12, _weight_spec(sc1.shape), _weight_spec(sh1.shape),
                  _weight_spec(w1.shape), _weight_spec(b1.shape),
                  _weight_spec(w2.shape), _weight_spec(b2.shape)],
        out_specs=(row12, stat12, stat12),
        compiler_params=cparams,
    )(y1, sc1, sh1, w1, b1, w2, b2)

    sc2, sh2 = _bn_scale_shift(s2sum, s2m2, n_rows, r12, g2, be2, eps)

    # ---- pass 3: BN2 (elementwise, big tiles, output aliases y2) -----------
    out = pl.pallas_call(
        _norm_kernel,
        grid=(steps3,),
        out_shape=jax.ShapeDtypeStruct((n_rows, d_pad), jnp.float32),
        in_specs=[row3, _weight_spec(sc2.shape), _weight_spec(sh2.shape)],
        out_specs=row3,
        input_output_aliases={0: 0},
        compiler_params=cparams,
    )(y2, sc2, sh2)

    return out[:, :d_model].reshape(bs, q_len, d_model).astype(src.dtype)


def reference(src, params, *, n_heads, eps=1e-5):
    """Pure-JAX f32 reference of the same forward pass (for verification)."""
    bs, L, D = src.shape
    d_k = D // n_heads
    scale = d_k ** (-0.5)
    x = src.reshape(bs * L, D)
    q = x @ params["wq"] + params["bq"]
    k = x @ params["wk"] + params["bk"]
    v = x @ params["wv"] + params["bv"]
    q4 = q.reshape(bs, L, n_heads, d_k).transpose(0, 2, 1, 3)
    k4 = k.reshape(bs, L, n_heads, d_k).transpose(0, 2, 1, 3)
    v4 = v.reshape(bs, L, n_heads, d_k).transpose(0, 2, 1, 3)
    scores = jnp.einsum("bhqd,bhkd->bhqk", q4, k4) * scale
    attn = jax.nn.softmax(scores, axis=-1)
    out = jnp.einsum("bhqk,bhkd->bhqd", attn, v4)
    out = out.transpose(0, 2, 1, 3).reshape(bs * L, D)
    out = out @ params["wo"] + params["bo"]

    def bn(z, g, b):
        m = jnp.mean(z, axis=0, keepdims=True)
        vv = jnp.mean((z - m) ** 2, axis=0, keepdims=True)
        return (z - m) / jnp.sqrt(vv + eps) * g + b

    s1 = bn(x + out, params["g1"], params["be1"])
    h = s1 @ params["w1"] + params["b1"]
    h = 0.5 * h * (1.0 + jax.lax.erf(h / jnp.sqrt(2.0)))      # exact GELU
    s2 = bn(s1 + (h @ params["w2"] + params["b2"]), params["g2"], params["be2"])
    return s2.reshape(bs, L, D)


def init_params(key, d_model, d_ff):
    # Deterministic, PyTorch-Linear-style init: U(-1/sqrt(fan_in), 1/sqrt(fan_in)).
    ks = jax.random.split(key, 12)

    def lin_w(k, fan_in, shape):
        lim = 1.0 / jnp.sqrt(jnp.float32(fan_in))
        return jax.random.uniform(k, shape, jnp.float32, -lim, lim)

    return {
        "wq": lin_w(ks[0], d_model, (d_model, d_model)),
        "bq": lin_w(ks[1], d_model, (1, d_model)),
        "wk": lin_w(ks[2], d_model, (d_model, d_model)),
        "bk": lin_w(ks[3], d_model, (1, d_model)),
        "wv": lin_w(ks[4], d_model, (d_model, d_model)),
        "bv": lin_w(ks[5], d_model, (1, d_model)),
        "wo": lin_w(ks[6], d_model, (d_model, d_model)),
        "bo": lin_w(ks[7], d_model, (1, d_model)),
        "g1": jnp.ones((1, d_model), jnp.float32),
        "be1": jnp.zeros((1, d_model), jnp.float32),
        "w1": lin_w(ks[8], d_model, (d_model, d_ff)),
        "b1": lin_w(ks[9], d_model, (1, d_ff)),
        "w2": lin_w(ks[10], d_ff, (d_ff, d_model)),
        "b2": lin_w(ks[11], d_ff, (1, d_model)),
        "g2": jnp.ones((1, d_model), jnp.float32),
        "be2": jnp.zeros((1, d_model), jnp.float32),
    }


if __name__ == "__main__":
    # Small shapes consistent with the module: src is [bs, q_len, d_model].
    # bs=4 so the batched row tiles exercise the block-diagonal attention
    # path while still leaving >=2 grid steps.
    bs, q_len, d_model, n_heads, d_ff = 4, 16, 32, 4, 64

    key = jax.random.PRNGKey(0)
    k_params, k_src = jax.random.split(key)
    params = init_params(k_params, d_model, d_ff)
    src = jax.random.normal(k_src, (bs, q_len, d_model), jnp.float32)

    # TODO(synk): dropout layers (attn/proj/ffn) have p=0.0 defaults and
    # store_attn=False, so no stochastic / stateful behavior is modeled.
    fwd = jax.jit(functools.partial(tst_encoder_layer, n_heads=n_heads))
    out = jax.block_until_ready(fwd(src, params))

    ref = jax.block_until_ready(reference(src, params, n_heads=n_heads))
    assert out.shape == (bs, q_len, d_model)
    # bf16 MXU operands + tanh GELU (per the perf review) widen the parity
    # band vs the pure-f32 reference; observed error is a few 1e-3 rms, so
    # 1e-2 abs/rel bounds it comfortably while still catching real bugs.
    max_diff = jnp.max(jnp.abs(out - ref))
    assert jnp.allclose(out, ref, atol=1e-2, rtol=1e-2), (
        f"max abs diff {max_diff}")

    print("KERNEL_OK")
</pallas_src>

<mosaic_0001>
module attributes {stable_mosaic.version = 11 : i64} {
  func.func @_attn_kernel(%arg0: i32, %arg1: memref<32x128xf32, #tpu.memory_space<vmem>>, %arg2: memref<32x32xf32, #tpu.memory_space<vmem>>, %arg3: memref<128x384xbf16, #tpu.memory_space<vmem>>, %arg4: memref<1x384xf32, #tpu.memory_space<vmem>>, %arg5: memref<128x128xbf16, #tpu.memory_space<vmem>>, %arg6: memref<1x128xf32, #tpu.memory_space<vmem>>, %arg7: memref<32x128xf32, #tpu.memory_space<vmem>>, %arg8: memref<1x1x128xf32, #tpu.memory_space<vmem>>, %arg9: memref<1x1x128xf32, #tpu.memory_space<vmem>>, %arg10: memref<32x384xbf16, #tpu.memory_space<vmem>>, %arg11: memref<32x128xbf16, #tpu.memory_space<vmem>>) attributes {dimension_semantics = [#tpu.dimension_semantics<parallel>], iteration_bounds = array<i64: 2>, scalar_prefetch = 0 : i64, scratch_operands = 2 : i64, tpu.core_type = #tpu.core_type<tc>, window_params = [{transform_indices = @transform_0, window_bounds = array<i64: 32, 128>}, {pipeline_mode = #tpu.pipeline_mode<synchronous>, transform_indices = @transform_1, window_bounds = array<i64: 32, 32>}, {pipeline_mode = #tpu.pipeline_mode<synchronous>, transform_indices = @transform_2, window_bounds = array<i64: 128, 384>}, {pipeline_mode = #tpu.pipeline_mode<synchronous>, transform_indices = @transform_3, window_bounds = array<i64: 1, 384>}, {pipeline_mode = #tpu.pipeline_mode<synchronous>, transform_indices = @transform_4, window_bounds = array<i64: 128, 128>}, {pipeline_mode = #tpu.pipeline_mode<synchronous>, transform_indices = @transform_5, window_bounds = array<i64: 1, 128>}, {transform_indices = @transform_6, window_bounds = array<i64: 32, 128>}, {transform_indices = @transform_7, window_bounds = array<i64: 1, 1, 128>}, {transform_indices = @transform_8, window_bounds = array<i64: 1, 1, 128>}]} {
    %c0 = arith.constant 0 : index
    %c0_0 = arith.constant 0 : index
    %0 = vector.load %arg1[%c0, %c0_0] : memref<32x128xf32, #tpu.memory_space<vmem>>, vector<32x128xf32>
    %1 = arith.truncf %0 : vector<32x128xf32> to vector<32x128xbf16>
    %c0_1 = arith.constant 0 : index
    %c0_2 = arith.constant 0 : index
    %2 = vector.load %arg3[%c0_1, %c0_2] : memref<128x384xbf16, #tpu.memory_space<vmem>>, vector<128x384xbf16>
    %cst = arith.constant dense<0.000000e+00> : vector<32x384xf32>
    %3 = tpu.matmul %1, %2, %cst {dimension_numbers = #tpu.dot_dimension_numbers<[1], [0], [0], [1], [0, 0, 1, 1], [], []>} : vector<32x128xbf16>, vector<128x384xbf16>, vector<32x384xf32> -> vector<32x384xf32>
    %c0_3 = arith.constant 0 : index
    %c0_4 = arith.constant 0 : index
    %4 = vector.load %arg4[%c0_3, %c0_4] : memref<1x384xf32, #tpu.memory_space<vmem>>, vector<1x384xf32>
    %5 = vector.broadcast %4 : vector<1x384xf32> to vector<32x384xf32>
    %6 = arith.addf %3, %5 : vector<32x384xf32>
    %7 = arith.truncf %6 : vector<32x384xf32> to vector<32x384xbf16>
    %c0_5 = arith.constant 0 : index
    %c0_6 = arith.constant 0 : index
    %8 = vector.load %arg10[%c0_5, %c0_6] : memref<32x384xbf16, #tpu.memory_space<vmem>>, vector<32x384xbf16>
    tpu.vector_store %arg10[%c0_5, %c0_6], %7 {strides = array<i32>} : memref<32x384xbf16, #tpu.memory_space<vmem>>, vector<32x384xbf16>,
    %cst_7 = arith.constant 0.000000e+00 : bf16
    %9 = vector.broadcast %cst_7 : bf16 to vector<32x128xbf16>
    %c0_8 = arith.constant 0 : index
    %c0_9 = arith.constant 0 : index
    %10 = vector.load %arg11[%c0_8, %c0_9] : memref<32x128xbf16, #tpu.memory_space<vmem>>, vector<32x128xbf16>
    tpu.vector_store %arg11[%c0_8, %c0_9], %9 {strides = array<i32>} : memref<32x128xbf16, #tpu.memory_space<vmem>>, vector<32x128xbf16>,
    %c0_10 = arith.constant 0 : index
    %c0_11 = arith.constant 0 : index
    %11 = vector.load %arg10[%c0_10, %c0_11] : memref<32x384xbf16, #tpu.memory_space<vmem>>, vector<32x8xbf16>
    %c0_12 = arith.constant 0 : index
    %c128 = arith.constant 128 : index
    %12 = vector.load %arg10[%c0_12, %c128] : memref<32x384xbf16, #tpu.memory_space<vmem>>, vector<32x8xbf16>
    %c0_13 = arith.constant 0 : index
    %c256 = arith.constant 256 : index
    %13 = vector.load %arg10[%c0_13, %c256] : memref<32x384xbf16, #tpu.memory_space<vmem>>, vector<32x8xbf16>
    %cst_14 = arith.constant dense<0.000000e+00> : vector<32x32xf32>
    %14 = tpu.matmul %11, %12, %cst_14 {dimension_numbers = #tpu.dot_dimension_numbers<[1], [1], [0], [0], [0, 0, 1, 0], [], []>} : vector<32x8xbf16>, vector<32x8xbf16>, vector<32x32xf32> -> vector<32x32xf32>
    %c0_15 = arith.constant 0 : index
    %c0_16 = arith.constant 0 : index
    %15 = vector.load %arg2[%c0_15, %c0_16] : memref<32x32xf32, #tpu.memory_space<vmem>>, vector<32x32xf32>
    %16 = arith.addf %14, %15 : vector<32x32xf32>
    %cst_17 = arith.constant dense<0xFF800000> : vector<32xf32>
    %17 = vector.multi_reduction <maximumf>, %16, %cst_17 [1] : vector<32x32xf32> to vector<32xf32>
    %18 = vector.shape_cast %17 : vector<32xf32> to vector<32x1xf32>
    %19 = vector.broadcast %18 : vector<32x1xf32> to vector<32x32xf32>
    %20 = arith.subf %16, %19 : vector<32x32xf32>
    %21 = math.exp %20 : vector<32x32xf32>
    %cst_18 = arith.constant dense<0.000000e+00> : vector<32xf32>
    %22 = vector.multi_reduction <add>, %21, %cst_18 [1] : vector<32x32xf32> to vector<32xf32>
    %23 = vector.shape_cast %22 : vector<32xf32> to vector<32x1xf32>
    %24 = tpu.reciprocal %23 {approx = true} : vector<32x1xf32> -> vector<32x1xf32>
    %25 = arith.mulf %23, %24 : vector<32x1xf32>
    %cst_19 = arith.constant 2.000000e+00 : f32
    %26 = vector.broadcast %cst_19 : f32 to vector<32x1xf32>
    %27 = arith.subf %26, %25 : vector<32x1xf32>
    %28 = arith.mulf %24, %27 : vector<32x1xf32>
    %29 = vector.broadcast %28 : vector<32x1xf32> to vector<32x32xf32>
    %30 = arith.mulf %21, %29 : vector<32x32xf32>
    %31 = arith.truncf %30 : vector<32x32xf32> to vector<32x32xbf16>
    %cst_20 = arith.constant dense<0.000000e+00> : vector<32x8xf32>
    %32 = tpu.matmul %31, %13, %cst_20 {dimension_numbers = #tpu.dot_dimension_numbers<[1], [0], [0], [1], [0, 0, 1, 1], [], []>} : vector<32x32xbf16>, vector<32x8xbf16>, vector<32x8xf32> -> vector<32x8xf32>
    %33 = arith.truncf %32 : vector<32x8xf32> to vector<32x8xbf16>
    %c0_21 = arith.constant 0 : index
    %c0_22 = arith.constant 0 : index
    %34 = vector.load %arg11[%c0_21, %c0_22] : memref<32x128xbf16, #tpu.memory_space<vmem>>, vector<32x8xbf16>
    tpu.vector_store %arg11[%c0_21, %c0_22], %33 {strides = array<i32>} : memref<32x128xbf16, #tpu.memory_space<vmem>>, vector<32x8xbf16>,
    %c0_23 = arith.constant 0 : index
    %c8 = arith.constant 8 : index
    %35 = vector.load %arg10[%c0_23, %c8] : memref<32x384xbf16, #tpu.memory_space<vmem>>, vector<32x8xbf16>
    %c0_24 = arith.constant 0 : index
    %c136 = arith.constant 136 : index
    %36 = vector.load %arg10[%c0_24, %c136] : memref<32x384xbf16, #tpu.memory_space<vmem>>, vector<32x8xbf16>
    %c0_25 = arith.constant 0 : index
    %c264 = arith.constant 264 : index
    %37 = vector.load %arg10[%c0_25, %c264] : memref<32x384xbf16, #tpu.memory_space<vmem>>, vector<32x8xbf16>
    %cst_26 = arith.constant dense<0.000000e+00> : vector<32x32xf32>
    %38 = tpu.matmul %35, %36, %cst_26 {dimension_numbers = #tpu.dot_dimension_numbers<[1], [1], [0], [0], [0, 0, 1, 0], [], []>} : vector<32x8xbf16>, vector<32x8xbf16>, vector<32x32xf32> -> vector<32x32xf32>
    %c0_27 = arith.constant 0 : index
    %c0_28 = arith.constant 0 : index
    %39 = vector.load %arg2[%c0_27, %c0_28] : memref<32x32xf32, #tpu.memory_space<vmem>>, vector<32x32xf32>
    %40 = arith.addf %38, %39 : vector<32x32xf32>
    %cst_29 = arith.constant dense<0xFF800000> : vector<32xf32>
    %41 = vector.multi_reduction <maximumf>, %40, %cst_29 [1] : vector<32x32xf32> to vector<32xf32>
    %42 = vector.shape_cast %41 : vector<32xf32> to vector<32x1xf32>
    %43 = vector.broadcast %42 : vector<32x1xf32> to vector<32x32xf32>
    %44 = arith.subf %40, %43 : vector<32x32xf32>
    %45 = math.exp %44 : vector<32x32xf32>
    %cst_30 = arith.constant dense<0.000000e+00> : vector<32xf32>
    %46 = vector.multi_reduction <add>, %45, %cst_30 [1] : vector<32x32xf32> to vector<32xf32>
    %47 = vector.shape_cast %46 : vector<32xf32> to vector<32x1xf32>
    %48 = tpu.reciprocal %47 {approx = true} : vector<32x1xf32> -> vector<32x1xf32>
    %49 = arith.mulf %47, %48 : vector<32x1xf32>
    %cst_31 = arith.constant 2.000000e+00 : f32
    %50 = vector.broadcast %cst_31 : f32 to vector<32x1xf32>
    %51 = arith.subf %50, %49 : vector<32x1xf32>
    %52 = arith.mulf %48, %51 : vector<32x1xf32>
    %53 = vector.broadcast %52 : vector<32x1xf32> to vector<32x32xf32>
    %54 = arith.mulf %45, %53 : vector<32x32xf32>
    %55 = arith.truncf %54 : vector<32x32xf32> to vector<32x32xbf16>
    %cst_32 = arith.constant dense<0.000000e+00> : vector<32x8xf32>
    %56 = tpu.matmul %55, %37, %cst_32 {dimension_numbers = #tpu.dot_dimension_numbers<[1], [0], [0], [1], [0, 0, 1, 1], [], []>} : vector<32x32xbf16>, vector<32x8xbf16>, vector<32x8xf32> -> vector<32x8xf32>
    %57 = arith.truncf %56 : vector<32x8xf32> to vector<32x8xbf16>
    %c0_33 = arith.constant 0 : index
    %c8_34 = arith.constant 8 : index
    %58 = vector.load %arg11[%c0_33, %c8_34] : memref<32x128xbf16, #tpu.memory_space<vmem>>, vector<32x8xbf16>
    tpu.vector_store %arg11[%c0_33, %c8_34], %57 {strides = array<i32>} : memref<32x128xbf16, #tpu.memory_space<vmem>>, vector<32x8xbf16>,
    %c0_35 = arith.constant 0 : index
    %c16 = arith.constant 16 : index
    %59 = vector.load %arg10[%c0_35, %c16] : memref<32x384xbf16, #tpu.memory_space<vmem>>, vector<32x8xbf16>
    %c0_36 = arith.constant 0 : index
    %c144 = arith.constant 144 : index
    %60 = vector.load %arg10[%c0_36, %c144] : memref<32x384xbf16, #tpu.memory_space<vmem>>, vector<32x8xbf16>
    %c0_37 = arith.constant 0 : index
    %c272 = arith.constant 272 : index
    %61 = vector.load %arg10[%c0_37, %c272] : memref<32x384xbf16, #tpu.memory_space<vmem>>, vector<32x8xbf16>
    %cst_38 = arith.constant dense<0.000000e+00> : vector<32x32xf32>
    %62 = tpu.matmul %59, %60, %cst_38 {dimension_numbers = #tpu.dot_dimension_numbers<[1], [1], [0], [0], [0, 0, 1, 0], [], []>} : vector<32x8xbf16>, vector<32x8xbf16>, vector<32x32xf32> -> vector<32x32xf32>
    %c0_39 = arith.constant 0 : index
    %c0_40 = arith.constant 0 : index
    %63 = vector.load %arg2[%c0_39, %c0_40] : memref<32x32xf32, #tpu.memory_space<vmem>>, vector<32x32xf32>
    %64 = arith.addf %62, %63 : vector<32x32xf32>
    %cst_41 = arith.constant dense<0xFF800000> : vector<32xf32>
    %65 = vector.multi_reduction <maximumf>, %64, %cst_41 [1] : vector<32x32xf32> to vector<32xf32>
    %66 = vector.shape_cast %65 : vector<32xf32> to vector<32x1xf32>
    %67 = vector.broadcast %66 : vector<32x1xf32> to vector<32x32xf32>
    %68 = arith.subf %64, %67 : vector<32x32xf32>
    %69 = math.exp %68 : vector<32x32xf32>
    %cst_42 = arith.constant dense<0.000000e+00> : vector<32xf32>
    %70 = vector.multi_reduction <add>, %69, %cst_42 [1] : vector<32x32xf32> to vector<32xf32>
    %71 = vector.shape_cast %70 : vector<32xf32> to vector<32x1xf32>
    %72 = tpu.reciprocal %71 {approx = true} : vector<32x1xf32> -> vector<32x1xf32>
    %73 = arith.mulf %71, %72 : vector<32x1xf32>
    %cst_43 = arith.constant 2.000000e+00 : f32
    %74 = vector.broadcast %cst_43 : f32 to vector<32x1xf32>
    %75 = arith.subf %74, %73 : vector<32x1xf32>
    %76 = arith.mulf %72, %75 : vector<32x1xf32>
    %77 = vector.broadcast %76 : vector<32x1xf32> to vector<32x32xf32>
    %78 = arith.mulf %69, %77 : vector<32x32xf32>
    %79 = arith.truncf %78 : vector<32x32xf32> to vector<32x32xbf16>
    %cst_44 = arith.constant dense<0.000000e+00> : vector<32x8xf32>
    %80 = tpu.matmul %79, %61, %cst_44 {dimension_numbers = #tpu.dot_dimension_numbers<[1], [0], [0], [1], [0, 0, 1, 1], [], []>} : vector<32x32xbf16>, vector<32x8xbf16>, vector<32x8xf32> -> vector<32x8xf32>
    %81 = arith.truncf %80 : vector<32x8xf32> to vector<32x8xbf16>
    %c0_45 = arith.constant 0 : index
    %c16_46 = arith.constant 16 : index
    %82 = vector.load %arg11[%c0_45, %c16_46] : memref<32x128xbf16, #tpu.memory_space<vmem>>, vector<32x8xbf16>
    tpu.vector_store %arg11[%c0_45, %c16_46], %81 {strides = array<i32>} : memref<32x128xbf16, #tpu.memory_space<vmem>>, vector<32x8xbf16>,
    %c0_47 = arith.constant 0 : index
    %c24 = arith.constant 24 : index
    %83 = vector.load %arg10[%c0_47, %c24] : memref<32x384xbf16, #tpu.memory_space<vmem>>, vector<32x8xbf16>
    %c0_48 = arith.constant 0 : index
    %c152 = arith.constant 152 : index
    %84 = vector.load %arg10[%c0_48, %c152] : memref<32x384xbf16, #tpu.memory_space<vmem>>, vector<32x8xbf16>
    %c0_49 = arith.constant 0 : index
    %c280 = arith.constant 280 : index
    %85 = vector.load %arg10[%c0_49, %c280] : memref<32x384xbf16, #tpu.memory_space<vmem>>, vector<32x8xbf16>
    %cst_50 = arith.constant dense<0.000000e+00> : vector<32x32xf32>
    %86 = tpu.matmul %83, %84, %cst_50 {dimension_numbers = #tpu.dot_dimension_numbers<[1], [1], [0], [0], [0, 0, 1, 0], [], []>} : vector<32x8xbf16>, vector<32x8xbf16>, vector<32x32xf32> -> vector<32x32xf32>
    %c0_51 = arith.constant 0 : index
    %c0_52 = arith.constant 0 : index
    %87 = vector.load %arg2[%c0_51, %c0_52] : memref<32x32xf32, #tpu.memory_space<vmem>>, vector<32x32xf32>
    %88 = arith.addf %86, %87 : vector<32x32xf32>
    %cst_53 = arith.constant dense<0xFF800000> : vector<32xf32>
    %89 = vector.multi_reduction <maximumf>, %88, %cst_53 [1] : vector<32x32xf32> to vector<32xf32>
    %90 = vector.shape_cast %89 : vector<32xf32> to vector<32x1xf32>
    %91 = vector.broadcast %90 : vector<32x1xf32> to vector<32x32xf32>
    %92 = arith.subf %88, %91 : vector<32x32xf32>
    %93 = math.exp %92 : vector<32x32xf32>
    %cst_54 = arith.constant dense<0.000000e+00> : vector<32xf32>
    %94 = vector.multi_reduction <add>, %93, %cst_54 [1] : vector<32x32xf32> to vector<32xf32>
    %95 = vector.shape_cast %94 : vector<32xf32> to vector<32x1xf32>
    %96 = tpu.reciprocal %95 {approx = true} : vector<32x1xf32> -> vector<32x1xf32>
    %97 = arith.mulf %95, %96 : vector<32x1xf32>
    %cst_55 = arith.constant 2.000000e+00 : f32
    %98 = vector.broadcast %cst_55 : f32 to vector<32x1xf32>
    %99 = arith.subf %98, %97 : vector<32x1xf32>
    %100 = arith.mulf %96, %99 : vector<32x1xf32>
    %101 = vector.broadcast %100 : vector<32x1xf32> to vector<32x32xf32>
    %102 = arith.mulf %93, %101 : vector<32x32xf32>
    %103 = arith.truncf %102 : vector<32x32xf32> to vector<32x32xbf16>
    %cst_56 = arith.constant dense<0.000000e+00> : vector<32x8xf32>
    %104 = tpu.matmul %103, %85, %cst_56 {dimension_numbers = #tpu.dot_dimension_numbers<[1], [0], [0], [1], [0, 0, 1, 1], [], []>} : vector<32x32xbf16>, vector<32x8xbf16>, vector<32x8xf32> -> vector<32x8xf32>
    %105 = arith.truncf %104 : vector<32x8xf32> to vector<32x8xbf16>
    %c0_57 = arith.constant 0 : index
    %c24_58 = arith.constant 24 : index
    %106 = vector.load %arg11[%c0_57, %c24_58] : memref<32x128xbf16, #tpu.memory_space<vmem>>, vector<32x8xbf16>
    tpu.vector_store %arg11[%c0_57, %c24_58], %105 {strides = array<i32>} : memref<32x128xbf16, #tpu.memory_space<vmem>>, vector<32x8xbf16>,
    %c0_59 = arith.constant 0 : index
    %c0_60 = arith.constant 0 : index
    %107 = vector.load %arg11[%c0_59, %c0_60] : memref<32x128xbf16, #tpu.memory_space<vmem>>, vector<32x128xbf16>
    %c0_61 = arith.constant 0 : index
    %c0_62 = arith.constant 0 : index
    %108 = vector.load %arg5[%c0_61, %c0_62] : memref<128x128xbf16, #tpu.memory_space<vmem>>, vector<128x128xbf16>
    %cst_63 = arith.constant dense<0.000000e+00> : vector<32x128xf32>
    %109 = tpu.matmul %107, %108, %cst_63 {dimension_numbers = #tpu.dot_dimension_numbers<[1], [0], [0], [1], [0, 0, 1, 1], [], []>} : vector<32x128xbf16>, vector<128x128xbf16>, vector<32x128xf32> -> vector<32x128xf32>
    %c0_64 = arith.constant 0 : index
    %c0_65 = arith.constant 0 : index
    %110 = vector.load %arg1[%c0_64, %c0_65] : memref<32x128xf32, #tpu.memory_space<vmem>>, vector<32x128xf32>
    %111 = arith.addf %110, %109 : vector<32x128xf32>
    %c0_66 = arith.constant 0 : index
    %c0_67 = arith.constant 0 : index
    %112 = vector.load %arg6[%c0_66, %c0_67] : memref<1x128xf32, #tpu.memory_space<vmem>>, vector<1x128xf32>
    %113 = vector.broadcast %112 : vector<1x128xf32> to vector<32x128xf32>
    %114 = arith.addf %111, %113 : vector<32x128xf32>
    %c0_68 = arith.constant 0 : index
    %c0_69 = arith.constant 0 : index
    %115 = vector.load %arg7[%c0_68, %c0_69] : memref<32x128xf32, #tpu.memory_space<vmem>>, vector<32x128xf32>
    tpu.vector_store %arg7[%c0_68, %c0_69], %114 {strides = array<i32>} : memref<32x128xf32, #tpu.memory_space<vmem>>, vector<32x128xf32>,
    %cst_70 = arith.constant dense<0.000000e+00> : vector<128xf32>
    %116 = vector.multi_reduction <add>, %114, %cst_70 [0] : vector<32x128xf32> to vector<128xf32>
    %117 = vector.shape_cast %116 : vector<128xf32> to vector<1x128xf32>
    %cst_71 = arith.constant 3.125000e-02 : f32
    %118 = vector.broadcast %cst_71 : f32 to vector<1x128xf32>
    %119 = arith.mulf %117, %118 : vector<1x128xf32>
    %120 = vector.broadcast %119 : vector<1x128xf32> to vector<32x128xf32>
    %121 = arith.subf %114, %120 : vector<32x128xf32>
    %cst_72 = arith.constant 3.200000e+01 : f32
    %122 = vector.broadcast %cst_72 : f32 to vector<1x128xf32>
    %123 = arith.mulf %119, %122 : vector<1x128xf32>
    %c0_73 = arith.constant 0 : index
    %c0_74 = arith.constant 0 : index
    %c0_75 = arith.constant 0 : index
    %124 = vector.load %arg8[%c0_73, %c0_74, %c0_75] : memref<1x1x128xf32, #tpu.memory_space<vmem>>, vector<1x1x128xf32>
    %125 = vector.shape_cast %124 : vector<1x1x128xf32> to vector<1x128xf32>
    %126 = vector.shape_cast %123 : vector<1x128xf32> to vector<1x1x128xf32>
    tpu.vector_store %arg8[%c0_73, %c0_74, %c0_75], %126 {strides = array<i32>} : memref<1x1x128xf32, #tpu.memory_space<vmem>>, vector<1x1x128xf32>,
    %127 = arith.mulf %121, %121 : vector<32x128xf32>
    %cst_76 = arith.constant dense<0.000000e+00> : vector<128xf32>
    %128 = vector.multi_reduction <add>, %127, %cst_76 [0] : vector<32x128xf32> to vector<128xf32>
    %129 = vector.shape_cast %128 : vector<128xf32> to vector<1x128xf32>
    %c0_77 = arith.constant 0 : index
    %c0_78 = arith.constant 0 : index
    %c0_79 = arith.constant 0 : index
    %130 = vector.load %arg9[%c0_77, %c0_78, %c0_79] : memref<1x1x128xf32, #tpu.memory_space<vmem>>, vector<1x1x128xf32>
    %131 = vector.shape_cast %130 : vector<1x1x128xf32> to vector<1x128xf32>
    %132 = vector.shape_cast %129 : vector<1x128xf32> to vector<1x1x128xf32>
    tpu.vector_store %arg9[%c0_77, %c0_78, %c0_79], %132 {strides = array<i32>} : memref<1x1x128xf32, #tpu.memory_space<vmem>>, vector<1x1x128xf32>,
    return
  }
  func.func @transform_0(%arg0: i32) -> (i32, i32) {
    %c0_i32 = arith.constant 0 : i32
    %c0_i32_0 = arith.constant 0 : i32
    return %arg0, %c0_i32 : i32, i32
  }
  func.func @transform_1(%arg0: i32) -> (i32, i32) {
    %c0_i32 = arith.constant 0 : i32
    %c0_i32_0 = arith.constant 0 : i32
    %c0_i32_1 = arith.constant 0 : i32
    return %c0_i32, %c0_i32_0 : i32, i32
  }
  func.func @transform_2(%arg0: i32) -> (i32, i32) {
    %c0_i32 = arith.constant 0 : i32
    %c0_i32_0 = arith.constant 0 : i32
    %c0_i32_1 = arith.constant 0 : i32
    return %c0_i32, %c0_i32_0 : i32, i32
  }
  func.func @transform_3(%arg0: i32) -> (i32, i32) {
    %c0_i32 = arith.constant 0 : i32
    %c0_i32_0 = arith.constant 0 : i32
    %c0_i32_1 = arith.constant 0 : i32
    return %c0_i32, %c0_i32_0 : i32, i32
  }
  func.func @transform_4(%arg0: i32) -> (i32, i32) {
    %c0_i32 = arith.constant 0 : i32
    %c0_i32_0 = arith.constant 0 : i32
    %c0_i32_1 = arith.constant 0 : i32
    return %c0_i32, %c0_i32_0 : i32, i32
  }
  func.func @transform_5(%arg0: i32) -> (i32, i32) {
    %c0_i32 = arith.constant 0 : i32
    %c0_i32_0 = arith.constant 0 : i32
    %c0_i32_1 = arith.constant 0 : i32
    return %c0_i32, %c0_i32_0 : i32, i32
  }
  func.func @transform_6(%arg0: i32) -> (i32, i32) {
    %c0_i32 = arith.constant 0 : i32
    %c0_i32_0 = arith.constant 0 : i32
    return %arg0, %c0_i32 : i32, i32
  }
  func.func @transform_7(%arg0: i32) -> (i32, i32, i32) {
    %c0_i32 = arith.constant 0 : i32
    %c0_i32_0 = arith.constant 0 : i32
    %c0_i32_1 = arith.constant 0 : i32
    return %arg0, %c0_i32, %c0_i32_0 : i32, i32, i32
  }
  func.func @transform_8(%arg0: i32) -> (i32, i32, i32) {
    %c0_i32 = arith.constant 0 : i32
    %c0_i32_0 = arith.constant 0 : i32
    %c0_i32_1 = arith.constant 0 : i32
    return %arg0, %c0_i32, %c0_i32_0 : i32, i32, i32
  }
}

module attributes {stable_mosaic.version = 11 : i64} {
  func.func @_norm_kernel(%arg0: i32, %arg1: memref<32x128xf32, #tpu.memory_space<vmem>>, %arg2: memref<1x128xf32, #tpu.memory_space<vmem>>, %arg3: memref<1x128xf32, #tpu.memory_space<vmem>>, %arg4: memref<32x128xf32, #tpu.memory_space<vmem>>) attributes {dimension_semantics = [#tpu.dimension_semantics<parallel>], iteration_bounds = array<i64: 2>, scalar_prefetch = 0 : i64, scratch_operands = 0 : i64, tpu.core_type = #tpu.core_type<tc>, window_params = [{transform_indices = @transform_0, window_bounds = array<i64: 32, 128>}, {pipeline_mode = #tpu.pipeline_mode<synchronous>, transform_indices = @transform_1, window_bounds = array<i64: 1, 128>}, {pipeline_mode = #tpu.pipeline_mode<synchronous>, transform_indices = @transform_2, window_bounds = array<i64: 1, 128>}, {transform_indices = @transform_3, window_bounds = array<i64: 32, 128>}]} {
    %c0 = arith.constant 0 : index
    %c0_0 = arith.constant 0 : index
    %0 = vector.load %arg1[%c0, %c0_0] : memref<32x128xf32, #tpu.memory_space<vmem>>, vector<32x128xf32>
    %c0_1 = arith.constant 0 : index
    %c0_2 = arith.constant 0 : index
    %1 = vector.load %arg2[%c0_1, %c0_2] : memref<1x128xf32, #tpu.memory_space<vmem>>, vector<1x128xf32>
    %2 = vector.broadcast %1 : vector<1x128xf32> to vector<32x128xf32>
    %3 = arith.mulf %0, %2 : vector<32x128xf32>
    %c0_3 = arith.constant 0 : index
    %c0_4 = arith.constant 0 : index
    %4 = vector.load %arg3[%c0_3, %c0_4] : memref<1x128xf32, #tpu.memory_space<vmem>>, vector<1x128xf32>
    %5 = vector.broadcast %4 : vector<1x128xf32> to vector<32x128xf32>
    %6 = arith.addf %3, %5 : vector<32x128xf32>
    %c0_5 = arith.constant 0 : index
    %c0_6 = arith.constant 0 : index
    %7 = vector.load %arg4[%c0_5, %c0_6] : memref<32x128xf32, #tpu.memory_space<vmem>>, vector<32x128xf32>
    tpu.vector_store %arg4[%c0_5, %c0_6], %6 {strides = array<i32>} : memref<32x128xf32, #tpu.memory_space<vmem>>, vector<32x128xf32>,
    return
  }
  func.func @transform_0(%arg0: i32) -> (i32, i32) {
    %c0_i32 = arith.constant 0 : i32
    %c0_i32_0 = arith.constant 0 : i32
    return %arg0, %c0_i32 : i32, i32
  }
  func.func @transform_1(%arg0: i32) -> (i32, i32) {
    %c0_i32 = arith.constant 0 : i32
    %c0_i32_0 = arith.constant 0 : i32
    %c0_i32_1 = arith.constant 0 : i32
    return %c0_i32, %c0_i32_0 : i32, i32
  }
  func.func @transform_2(%arg0: i32) -> (i32, i32) {
    %c0_i32 = arith.constant 0 : i32
    %c0_i32_0 = arith.constant 0 : i32
    %c0_i32_1 = arith.constant 0 : i32
    return %c0_i32, %c0_i32_0 : i32, i32
  }
  func.func @transform_3(%arg0: i32) -> (i32, i32) {
    %c0_i32 = arith.constant 0 : i32
    %c0_i32_0 = arith.constant 0 : i32
    return %arg0, %c0_i32 : i32, i32
  }
}

module attributes {stable_mosaic.version = 11 : i64} {
  func.func @_ffn_kernel(%arg0: i32, %arg1: memref<32x128xf32, #tpu.memory_space<vmem>>, %arg2: memref<1x128xf32, #tpu.memory_space<vmem>>, %arg3: memref<1x128xf32, #tpu.memory_space<vmem>>, %arg4: memref<128x128xbf16, #tpu.memory_space<vmem>>, %arg5: memref<1x128xf32, #tpu.memory_space<vmem>>, %arg6: memref<128x128xbf16, #tpu.memory_space<vmem>>, %arg7: memref<1x128xf32, #tpu.memory_space<vmem>>, %arg8: memref<32x128xf32, #tpu.memory_space<vmem>>, %arg9: memref<1x1x128xf32, #tpu.memory_space<vmem>>, %arg10: memref<1x1x128xf32, #tpu.memory_space<vmem>>) attributes {dimension_semantics = [#tpu.dimension_semantics<parallel>], iteration_bounds = array<i64: 2>, scalar_prefetch = 0 : i64, scratch_operands = 0 : i64, tpu.core_type = #tpu.core_type<tc>, window_params = [{transform_indices = @transform_0, window_bounds = array<i64: 32, 128>}, {pipeline_mode = #tpu.pipeline_mode<synchronous>, transform_indices = @transform_1, window_bounds = array<i64: 1, 128>}, {pipeline_mode = #tpu.pipeline_mode<synchronous>, transform_indices = @transform_2, window_bounds = array<i64: 1, 128>}, {pipeline_mode = #tpu.pipeline_mode<synchronous>, transform_indices = @transform_3, window_bounds = array<i64: 128, 128>}, {pipeline_mode = #tpu.pipeline_mode<synchronous>, transform_indices = @transform_4, window_bounds = array<i64: 1, 128>}, {pipeline_mode = #tpu.pipeline_mode<synchronous>, transform_indices = @transform_5, window_bounds = array<i64: 128, 128>}, {pipeline_mode = #tpu.pipeline_mode<synchronous>, transform_indices = @transform_6, window_bounds = array<i64: 1, 128>}, {transform_indices = @transform_7, window_bounds = array<i64: 32, 128>}, {transform_indices = @transform_8, window_bounds = array<i64: 1, 1, 128>}, {transform_indices = @transform_9, window_bounds = array<i64: 1, 1, 128>}]} {
    %c0 = arith.constant 0 : index
    %c0_0 = arith.constant 0 : index
    %0 = vector.load %arg1[%c0, %c0_0] : memref<32x128xf32, #tpu.memory_space<vmem>>, vector<32x128xf32>
    %c0_1 = arith.constant 0 : index
    %c0_2 = arith.constant 0 : index
    %1 = vector.load %arg2[%c0_1, %c0_2] : memref<1x128xf32, #tpu.memory_space<vmem>>, vector<1x128xf32>
    %2 = vector.broadcast %1 : vector<1x128xf32> to vector<32x128xf32>
    %3 = arith.mulf %0, %2 : vector<32x128xf32>
    %c0_3 = arith.constant 0 : index
    %c0_4 = arith.constant 0 : index
    %4 = vector.load %arg3[%c0_3, %c0_4] : memref<1x128xf32, #tpu.memory_space<vmem>>, vector<1x128xf32>
    %5 = vector.broadcast %4 : vector<1x128xf32> to vector<32x128xf32>
    %6 = arith.addf %3, %5 : vector<32x128xf32>
    %7 = arith.truncf %6 : vector<32x128xf32> to vector<32x128xbf16>
    %c0_5 = arith.constant 0 : index
    %c0_6 = arith.constant 0 : index
    %8 = vector.load %arg4[%c0_5, %c0_6] : memref<128x128xbf16, #tpu.memory_space<vmem>>, vector<128x128xbf16>
    %cst = arith.constant dense<0.000000e+00> : vector<32x128xf32>
    %9 = tpu.matmul %7, %8, %cst {dimension_numbers = #tpu.dot_dimension_numbers<[1], [0], [0], [1], [0, 0, 1, 1], [], []>} : vector<32x128xbf16>, vector<128x128xbf16>, vector<32x128xf32> -> vector<32x128xf32>
    %c0_7 = arith.constant 0 : index
    %c0_8 = arith.constant 0 : index
    %10 = vector.load %arg5[%c0_7, %c0_8] : memref<1x128xf32, #tpu.memory_space<vmem>>, vector<1x128xf32>
    %11 = vector.broadcast %10 : vector<1x128xf32> to vector<32x128xf32>
    %12 = arith.addf %9, %11 : vector<32x128xf32>
    %cst_9 = arith.constant 5.000000e-01 : f32
    %13 = vector.broadcast %cst_9 : f32 to vector<32x128xf32>
    %14 = arith.mulf %13, %12 : vector<32x128xf32>
    %cst_10 = arith.constant 4.471500e-02 : f32
    %15 = vector.broadcast %cst_10 : f32 to vector<32x128xf32>
    %16 = arith.mulf %15, %12 : vector<32x128xf32>
    %17 = arith.mulf %16, %12 : vector<32x128xf32>
    %18 = arith.mulf %17, %12 : vector<32x128xf32>
    %19 = arith.addf %12, %18 : vector<32x128xf32>
    %cst_11 = arith.constant 0.797884583 : f32
    %20 = vector.broadcast %cst_11 : f32 to vector<32x128xf32>
    %21 = arith.mulf %20, %19 : vector<32x128xf32>
    %22 = math.tanh %21 : vector<32x128xf32>
    %cst_12 = arith.constant 1.000000e+00 : f32
    %23 = vector.broadcast %cst_12 : f32 to vector<32x128xf32>
    %24 = arith.addf %23, %22 : vector<32x128xf32>
    %25 = arith.mulf %14, %24 : vector<32x128xf32>
    %c0_13 = arith.constant 0 : index
    %c0_14 = arith.constant 0 : index
    %26 = vector.load %arg1[%c0_13, %c0_14] : memref<32x128xf32, #tpu.memory_space<vmem>>, vector<32x128xf32>
    %c0_15 = arith.constant 0 : index
    %c0_16 = arith.constant 0 : index
    %27 = vector.load %arg2[%c0_15, %c0_16] : memref<1x128xf32, #tpu.memory_space<vmem>>, vector<1x128xf32>
    %28 = vector.broadcast %27 : vector<1x128xf32> to vector<32x128xf32>
    %29 = arith.mulf %26, %28 : vector<32x128xf32>
    %c0_17 = arith.constant 0 : index
    %c0_18 = arith.constant 0 : index
    %30 = vector.load %arg3[%c0_17, %c0_18] : memref<1x128xf32, #tpu.memory_space<vmem>>, vector<1x128xf32>
    %31 = vector.broadcast %30 : vector<1x128xf32> to vector<32x128xf32>
    %32 = arith.addf %29, %31 : vector<32x128xf32>
    %33 = arith.truncf %25 : vector<32x128xf32> to vector<32x128xbf16>
    %c0_19 = arith.constant 0 : index
    %c0_20 = arith.constant 0 : index
    %34 = vector.load %arg6[%c0_19, %c0_20] : memref<128x128xbf16, #tpu.memory_space<vmem>>, vector<128x128xbf16>
    %cst_21 = arith.constant dense<0.000000e+00> : vector<32x128xf32>
    %35 = tpu.matmul %33, %34, %cst_21 {dimension_numbers = #tpu.dot_dimension_numbers<[1], [0], [0], [1], [0, 0, 1, 1], [], []>} : vector<32x128xbf16>, vector<128x128xbf16>, vector<32x128xf32> -> vector<32x128xf32>
    %36 = arith.addf %32, %35 : vector<32x128xf32>
    %c0_22 = arith.constant 0 : index
    %c0_23 = arith.constant 0 : index
    %37 = vector.load %arg7[%c0_22, %c0_23] : memref<1x128xf32, #tpu.memory_space<vmem>>, vector<1x128xf32>
    %38 = vector.broadcast %37 : vector<1x128xf32> to vector<32x128xf32>
    %39 = arith.addf %36, %38 : vector<32x128xf32>
    %c0_24 = arith.constant 0 : index
    %c0_25 = arith.constant 0 : index
    %40 = vector.load %arg8[%c0_24, %c0_25] : memref<32x128xf32, #tpu.memory_space<vmem>>, vector<32x128xf32>
    tpu.vector_store %arg8[%c0_24, %c0_25], %39 {strides = array<i32>} : memref<32x128xf32, #tpu.memory_space<vmem>>, vector<32x128xf32>,
    %cst_26 = arith.constant dense<0.000000e+00> : vector<128xf32>
    %41 = vector.multi_reduction <add>, %39, %cst_26 [0] : vector<32x128xf32> to vector<128xf32>
    %42 = vector.shape_cast %41 : vector<128xf32> to vector<1x128xf32>
    %cst_27 = arith.constant 3.125000e-02 : f32
    %43 = vector.broadcast %cst_27 : f32 to vector<1x128xf32>
    %44 = arith.mulf %42, %43 : vector<1x128xf32>
    %45 = vector.broadcast %44 : vector<1x128xf32> to vector<32x128xf32>
    %46 = arith.subf %39, %45 : vector<32x128xf32>
    %cst_28 = arith.constant 3.200000e+01 : f32
    %47 = vector.broadcast %cst_28 : f32 to vector<1x128xf32>
    %48 = arith.mulf %44, %47 : vector<1x128xf32>
    %c0_29 = arith.constant 0 : index
    %c0_30 = arith.constant 0 : index
    %c0_31 = arith.constant 0 : index
    %49 = vector.load %arg9[%c0_29, %c0_30, %c0_31] : memref<1x1x128xf32, #tpu.memory_space<vmem>>, vector<1x1x128xf32>
    %50 = vector.shape_cast %49 : vector<1x1x128xf32> to vector<1x128xf32>
    %51 = vector.shape_cast %48 : vector<1x128xf32> to vector<1x1x128xf32>
    tpu.vector_store %arg9[%c0_29, %c0_30, %c0_31], %51 {strides = array<i32>} : memref<1x1x128xf32, #tpu.memory_space<vmem>>, vector<1x1x128xf32>,
    %52 = arith.mulf %46, %46 : vector<32x128xf32>
    %cst_32 = arith.constant dense<0.000000e+00> : vector<128xf32>
    %53 = vector.multi_reduction <add>, %52, %cst_32 [0] : vector<32x128xf32> to vector<128xf32>
    %54 = vector.shape_cast %53 : vector<128xf32> to vector<1x128xf32>
    %c0_33 = arith.constant 0 : index
    %c0_34 = arith.constant 0 : index
    %c0_35 = arith.constant 0 : index
    %55 = vector.load %arg10[%c0_33, %c0_34, %c0_35] : memref<1x1x128xf32, #tpu.memory_space<vmem>>, vector<1x1x128xf32>
    %56 = vector.shape_cast %55 : vector<1x1x128xf32> to vector<1x128xf32>
    %57 = vector.shape_cast %54 : vector<1x128xf32> to vector<1x1x128xf32>
    tpu.vector_store %arg10[%c0_33, %c0_34, %c0_35], %57 {strides = array<i32>} : memref<1x1x128xf32, #tpu.memory_space<vmem>>, vector<1x1x128xf32>,
    return
  }
  func.func @transform_0(%arg0: i32) -> (i32, i32) {
    %c0_i32 = arith.constant 0 : i32
    %c0_i32_0 = arith.constant 0 : i32
    return %arg0, %c0_i32 : i32, i32
  }
  func.func @transform_1(%arg0: i32) -> (i32, i32) {
    %c0_i32 = arith.constant 0 : i32
    %c0_i32_0 = arith.constant 0 : i32
    %c0_i32_1 = arith.constant 0 : i32
    return %c0_i32, %c0_i32_0 : i32, i32
  }
  func.func @transform_2(%arg0: i32) -> (i32, i32) {
    %c0_i32 = arith.constant 0 : i32
    %c0_i32_0 = arith.constant 0 : i32
    %c0_i32_1 = arith.constant 0 : i32
    return %c0_i32, %c0_i32_0 : i32, i32
  }
  func.func @transform_3(%arg0: i32) -> (i32, i32) {
    %c0_i32 = arith.constant 0 : i32
    %c0_i32_0 = arith.constant 0 : i32
    %c0_i32_1 = arith.constant 0 : i32
    return %c0_i32, %c0_i32_0 : i32, i32
  }
  func.func @transform_4(%arg0: i32) -> (i32, i32) {
    %c0_i32 = arith.constant 0 : i32
    %c0_i32_0 = arith.constant 0 : i32
    %c0_i32_1 = arith.constant 0 : i32
    return %c0_i32, %c0_i32_0 : i32, i32
  }
  func.func @transform_5(%arg0: i32) -> (i32, i32) {
    %c0_i32 = arith.constant 0 : i32
    %c0_i32_0 = arith.constant 0 : i32
    %c0_i32_1 = arith.constant 0 : i32
    return %c0_i32, %c0_i32_0 : i32, i32
  }
  func.func @transform_6(%arg0: i32) -> (i32, i32) {
    %c0_i32 = arith.constant 0 : i32
    %c0_i32_0 = arith.constant 0 : i32
    %c0_i32_1 = arith.constant 0 : i32
    return %c0_i32, %c0_i32_0 : i32, i32
  }
  func.func @transform_7(%arg0: i32) -> (i32, i32) {
    %c0_i32 = arith.constant 0 : i32
    %c0_i32_0 = arith.constant 0 : i32
    return %arg0, %c0_i32 : i32, i32
  }
  func.func @transform_8(%arg0: i32) -> (i32, i32, i32) {
    %c0_i32 = arith.constant 0 : i32
    %c0_i32_0 = arith.constant 0 : i32
    %c0_i32_1 = arith.constant 0 : i32
    return %arg0, %c0_i32, %c0_i32_0 : i32, i32, i32
  }
  func.func @transform_9(%arg0: i32) -> (i32, i32, i32) {
    %c0_i32 = arith.constant 0 : i32
    %c0_i32_0 = arith.constant 0 : i32
    %c0_i32_1 = arith.constant 0 : i32
    return %arg0, %c0_i32, %c0_i32_0 : i32, i32, i32
  }
}

</mosaic_0001>

<llo_original>
// kernel: tst_encoder_layer.5
$region0: #{tst_encoder_layer.5}
  #allocation0 [shape = 'u32[]', space=smem, size = 0x4, offset = 0x4, fixed_abs, tag = 'smem constant byte address 0x4 - core index']
  #allocation1 [shape = 'u32[144,128]{1,0:T(1,128)}', space=vmem, size = 0x12000, scoped, tag = 'internal scratch']
  %s0 = inlined_call_operand.vmem [shape: f32[64,128], index: 0, kind: input, shape index: {}, may-alias: {0,3}]
  %s1 = inlined_call_operand.vmem [shape: f32[1,128], index: 1, kind: input, shape index: {}]
  %s2 = inlined_call_operand.vmem [shape: f32[1,128], index: 2, kind: input, shape index: {}]
  %s3 = inlined_call_operand.vmem [shape: f32[64,128], index: 3, kind: output, shape index: {}, may-alias: {0,3}]
  %s4 = sld [smem:[#allocation0]]
  $region45: #{tst_encoder_layer.5} parent=0
    _
  %s6 = ssub.s32 1, %s4
  %s7 = scalar_select 0, %s6, %s4
  loop: start=0, step=1, limit=4
  $region2: #{tst_encoder_layer.5} parent=0 // loop_pre_header
    _
  $region3: #{tst_encoder_layer.5} parent=0 // loop_header
    %s9 = sphi 0, %s13
    %p10 = scmp.ge.s32.totalorder %s9, 4
    %s19 = sphi 0, %s21
    %s22 = sphi 0, %s19
    %s23 = sphi 0, %s22
    %s39 = sphi 0, %s23
    %s43 = sphi 0, %s43
    %s45 = sphi 0, %s43
    %s46 = sphi 0, %s45
    %s60 = sphi 0, %s46
    %s64 = sphi 0, %s64
    %s66 = sphi 0, %s64
    %s67 = sphi 0, %s66
    %s81 = sphi 0, %s67
    %s87 = sphi 0, %s89
    %s90 = sphi 0, %s87
    %s91 = sphi 0, %s90
    %s107 = sphi 0, %s91
  $region4: #{tst_encoder_layer.5} parent=0 // loop_header_branch
    %12 = sbr.rel (%p10) target = $region8
  $region5: #{tst_encoder_layer.5} parent=0 // loop_body
    %s14 = ssub.s32 %s9, 1
    %s15 = ssub.s32 %s9, 2
    %s16 = sadd.s32 %s9, 1
    %s17 = ssub.s32 %s9, %s16
    %p18 = scmp.eq.s32.totalorder %s17, 0
    %s20 = sadd.s32 %s19, 1
    %s21 = scalar_select %p18, %s19, %s20
    %p24 = pneg %p18
    %p25 = scmp.eq.s32.totalorder %s9, 1
    %p26 = por %p24, %p25
    %p27 = scmp.ne.s32.totalorder %s19, %s22
    %p28 = scmp.eq.s32.totalorder %s9, 0
    %p29 = por %p27, %p28
    %p30 = scmp.ne.s32.totalorder %s19, %s22
    %p31 = scmp.eq.s32.totalorder %s14, 1
    %p32 = por %p30, %p31
    %p33 = scmp.ne.s32.totalorder %s22, %s23
    %p34 = scmp.eq.s32.totalorder %s14, 0
    %p35 = por %p33, %p34
    %p36 = scmp.ne.s32.totalorder %s22, %s23
    %p37 = scmp.eq.s32.totalorder %s15, 1
    %p38 = por %p36, %p37
    %p40 = scmp.ne.s32.totalorder %s23, %s39
    %p41 = scmp.eq.s32.totalorder %s15, 0
    %p42 = por %p40, %p41
    %s44 = sadd.s32 %s43, 1
    %p47 = scmp.eq.s32.totalorder %s9, 1
    %p48 = scmp.ne.s32.totalorder %s43, %s45
    %p49 = scmp.eq.s32.totalorder %s9, 0
    %p50 = por %p48, %p49
    %p51 = scmp.ne.s32.totalorder %s43, %s45
    %p52 = scmp.eq.s32.totalorder %s14, 1
    %p53 = por %p51, %p52
    %p54 = scmp.ne.s32.totalorder %s45, %s46
    %p55 = scmp.eq.s32.totalorder %s14, 0
    %p56 = por %p54, %p55
    %p57 = scmp.ne.s32.totalorder %s45, %s46
    %p58 = scmp.eq.s32.totalorder %s15, 1
    %p59 = por %p57, %p58
    %p61 = scmp.ne.s32.totalorder %s46, %s60
    %p62 = scmp.eq.s32.totalorder %s15, 0
    %p63 = por %p61, %p62
    %s65 = sadd.s32 %s64, 1
    %p68 = scmp.eq.s32.totalorder %s9, 1
    %p69 = scmp.ne.s32.totalorder %s64, %s66
    %p70 = scmp.eq.s32.totalorder %s9, 0
    %p71 = por %p69, %p70
    %p72 = scmp.ne.s32.totalorder %s64, %s66
    %p73 = scmp.eq.s32.totalorder %s14, 1
    %p74 = por %p72, %p73
    %p75 = scmp.ne.s32.totalorder %s66, %s67
    %p76 = scmp.eq.s32.totalorder %s14, 0
    %p77 = por %p75, %p76
    %p78 = scmp.ne.s32.totalorder %s66, %s67
    %p79 = scmp.eq.s32.totalorder %s15, 1
    %p80 = por %p78, %p79
    %p82 = scmp.ne.s32.totalorder %s67, %s81
    %p83 = scmp.eq.s32.totalorder %s15, 0
    %p84 = por %p82, %p83
    %s85 = ssub.s32 %s9, %s16
    %p86 = scmp.eq.s32.totalorder %s85, 0
    %s88 = sadd.s32 %s87, 1
    %s89 = scalar_select %p86, %s87, %s88
    %p92 = pneg %p86
    %p93 = scmp.eq.s32.totalorder %s9, 1
    %p94 = por %p92, %p93
    %p95 = scmp.ne.s32.totalorder %s87, %s90
    %p96 = scmp.eq.s32.totalorder %s9, 0
    %p97 = por %p95, %p96
    %p98 = scmp.ne.s32.totalorder %s87, %s90
    %p99 = scmp.eq.s32.totalorder %s14, 1
    %p100 = por %p98, %p99
    %p101 = scmp.ne.s32.totalorder %s90, %s91
    %p102 = scmp.eq.s32.totalorder %s14, 0
    %p103 = por %p101, %p102
    %p104 = scmp.ne.s32.totalorder %s90, %s91
    %p105 = scmp.eq.s32.totalorder %s15, 1
    %p106 = por %p104, %p105
    %p108 = scmp.ne.s32.totalorder %s91, %s107
    %p109 = scmp.eq.s32.totalorder %s15, 0
    %p110 = por %p108, %p109
    %p111 = scmp.le.s32.totalorder 1, %s9
    %p112 = scmp.lt.s32.totalorder %s9, 3
    %p113 = pnand %p111, %p112
    %p114 = pneg %p113
    // Predicated region
    $region9: #{tst_encoder_layer.5} parent=5 // pred_check
      _
    $region10: #{tst_encoder_layer.5} parent=5 // pred_check_branch
      %116 = sbr.rel (%p113) target = $region12
    $region11: #{tst_encoder_layer.5} parent=5 // pred_region
      %s117 = ssub.s32 %s9, 1
      // Predicated region
      $region13: #{tst_encoder_layer.5} parent=11 // pred_check
        %p118 = pneg %p56
      $region14: #{tst_encoder_layer.5} parent=11 // pred_check_branch
        %120 = sbr.rel (%p118) target = $region16
      $region15: #{tst_encoder_layer.5} parent=11 // pred_region
        _
      $region16: #{tst_encoder_layer.5} parent=11 // pred_fallthru
        _
      // Predicated region
      $region17: #{tst_encoder_layer.5} parent=11 // pred_check
        %p121 = pneg %p77
      $region18: #{tst_encoder_layer.5} parent=11 // pred_check_branch
        %123 = sbr.rel (%p121) target = $region20
      $region19: #{tst_encoder_layer.5} parent=11 // pred_region
        _
      $region20: #{tst_encoder_layer.5} parent=11 // pred_fallthru
        _
    $region12: #{tst_encoder_layer.5} parent=5 // pred_fallthru
      _
    %p124 = scmp.lt.s32.totalorder %s9, 2
    // Predicated region
    $region21: #{tst_encoder_layer.5} parent=5 // pred_check
      %p125 = pneg %p124
    $region22: #{tst_encoder_layer.5} parent=5 // pred_check_branch
      %127 = sbr.rel (%p125) target = $region24
    $region23: #{tst_encoder_layer.5} parent=5 // pred_region
      // Predicated region
      $region25: #{tst_encoder_layer.5} parent=23 // pred_check
        %p128 = pneg %p29
      $region26: #{tst_encoder_layer.5} parent=23 // pred_check_branch
        %130 = sbr.rel (%p128) target = $region28
      $region27: #{tst_encoder_layer.5} parent=23 // pred_region
        %s131 = smul.u32 4, %s9
        %p132 = scmp.lt.s32.totalorder %s131, 7
        %s133 = scalar_select %p132, %s131, 7
        %s134 = smul.addr %s133, 8
        %s135 = scalar_lea.vmem %s0, %s134
        %s136 = smul.u32 4, %s9
      $region28: #{tst_encoder_layer.5} parent=23 // pred_fallthru
        _
    $region24: #{tst_encoder_layer.5} parent=5 // pred_fallthru
      _
    %p137 = scmp.le.s32.totalorder 1, %s9
    %p138 = scmp.lt.s32.totalorder %s9, 3
    %p139 = pnand %p137, %p138
    %p140 = pneg %p139
    // Predicated region
    $region29: #{tst_encoder_layer.5} parent=5 // pred_check
      _
    $region30: #{tst_encoder_layer.5} parent=5 // pred_check_branch
      %142 = sbr.rel (%p139) target = $region32
    $region31: #{tst_encoder_layer.5} parent=5 // pred_region
      %s143 = ssub.s32 %s9, 1
      %s144 = smul.u32 4, %s14
      %p145 = scmp.lt.s32.totalorder %s144, 7
      %s146 = scalar_select %p145, %s144, 7
      %s147 = smul.addr %s146, 8
      %s148 = scalar_lea.vmem %s0, %s147
      %p149 = pneg %p35
      %p150 = pneg %p32
      %p151 = pneg %p56
      %p152 = pneg %p53
      %p153 = pneg %p77
      %p154 = pneg %p74
      %p155 = pneg %p103
      %p156 = pneg %p100
      %s157 = smul.u32 4, %s14
      %p158 = scmp.lt.s32.totalorder %s157, 7
      %s159 = scalar_select %p158, %s157, 7
      %s160 = smul.addr %s159, 8
      %s161 = scalar_lea.vmem %s3, %s160
      %s162 = smul.u32 4, %s14
      %p163 = scmp.lt.s32.totalorder %s162, 7
      %s164 = scalar_select %p163, %s162, 7
      %s165 = smul.addr %s164, 8
      %s166 = scalar_lea.vmem %s0, %s165
      %s167 = smul.u32 4, %s14
      %s168 = smul.u32 4, %s14
      %p169 = scmp.lt.s32.totalorder %s168, 7
      %s170 = scalar_select %p169, %s168, 7
      %s171 = smul.addr %s170, 8
      %s172 = scalar_lea.vmem %s3, %s171
      %s173 = smul.u32 4, %s14
      %v174 = vld [vmem:[%s166] sm:$0xff]
      %v175 = vld [vmem:[%s166 + $0x8] sm:$0xff]
      %v176 = vld [vmem:[%s166 + $0x10] sm:$0xff]
      %v177 = vld [vmem:[%s166 + $0x18] sm:$0xff]
      %v178 = vld [vmem:[%s1] sm:$0x1]
      %v180 = vlaneseq
      %v181 = vshrl.u32 %v180, 7
      %v182 = vsub.s32 0, %v181
      %v183 = vrot.slane %v178, %v182
      %v185 = vmul.f32 %v174, %v183
      %v186 = vmul.f32 %v175, %v183
      %v187 = vmul.f32 %v176, %v183
      %v188 = vmul.f32 %v177, %v183
      %v189 = vld [vmem:[%s2] sm:$0x1]
      %v191 = vlaneseq
      %v192 = vshrl.u32 %v191, 7
      %v193 = vsub.s32 0, %v192
      %v194 = vrot.slane %v189, %v193
      %v196 = vadd.f32 %v185, %v194
      %v197 = vadd.f32 %v186, %v194
      %v198 = vadd.f32 %v187, %v194
      %v199 = vadd.f32 %v188, %v194
      %200 = vst [vmem:[%s172] sm:$0xff] %v196
      %201 = vst [vmem:[%s172 + $0x8] sm:$0xff] %v197
      %202 = vst [vmem:[%s172 + $0x10] sm:$0xff] %v198
      %203 = vst [vmem:[%s172 + $0x18] sm:$0xff] %v199
      %s204 = smul.u32 4, %s14
      %p205 = scmp.lt.s32.totalorder %s204, 7
      %s206 = scalar_select %p205, %s204, 7
      %s207 = smul.addr %s206, 8
      %s208 = scalar_lea.vmem %s3, %s207
      // Predicated region
      $region33: #{tst_encoder_layer.5} parent=31 // pred_check
        %p209 = pneg %p100
      $region34: #{tst_encoder_layer.5} parent=31 // pred_check_branch
        %211 = sbr.rel (%p209) target = $region36
      $region35: #{tst_encoder_layer.5} parent=31 // pred_region
        %s212 = smul.u32 4, %s14
      $region36: #{tst_encoder_layer.5} parent=31 // pred_fallthru
        _
    $region32: #{tst_encoder_layer.5} parent=5 // pred_fallthru
      _
    %p213 = scmp.le.s32.totalorder 2, %s9
    // Predicated region
    $region37: #{tst_encoder_layer.5} parent=5 // pred_check
      %p214 = pneg %p213
    $region38: #{tst_encoder_layer.5} parent=5 // pred_check_branch
      %216 = sbr.rel (%p214) target = $region40
    $region39: #{tst_encoder_layer.5} parent=5 // pred_region
      %s217 = ssub.s32 %s9, 2
      // Predicated region
      $region41: #{tst_encoder_layer.5} parent=39 // pred_check
        %p218 = pneg %p106
      $region42: #{tst_encoder_layer.5} parent=39 // pred_check_branch
        %220 = sbr.rel (%p218) target = $region44
      $region43: #{tst_encoder_layer.5} parent=39 // pred_region
        %s221 = smul.u32 4, %s15
        %p222 = scmp.lt.s32.totalorder %s221, 7
        %s223 = scalar_select %p222, %s221, 7
        %s224 = smul.addr %s223, 8
        %s225 = scalar_lea.vmem %s3, %s224
      $region44: #{tst_encoder_layer.5} parent=39 // pred_fallthru
        _
    $region40: #{tst_encoder_layer.5} parent=5 // pred_fallthru
      _
  $region6: #{tst_encoder_layer.5} parent=0 // loop_footer
    %s13 = sadd.s32 1, %s9
  $region7: #{tst_encoder_layer.5} parent=0 // loop_footer_branch
    %8 = sbr.rel target = $region3
  $region8: #{tst_encoder_layer.5} parent=0 // loop_exit
    _

// kernel: tst_encoder_layer.4
$region0: #{tst_encoder_layer.4}
  #allocation0 [shape = 'u32[]', space=smem, size = 0x4, offset = 0x4, fixed_abs, tag = 'smem constant byte address 0x4 - core index']
  #allocation1 [shape = 'u32[144,128]{1,0:T(1,128)}', space=vmem, size = 0x12000, scoped, tag = 'internal scratch']
  %s0 = inlined_call_operand.vmem [shape: f32[64,128], index: 0, kind: input, shape index: {}]
  %s1 = inlined_call_operand.vmem [shape: f32[1,128], index: 1, kind: input, shape index: {}]
  %s2 = inlined_call_operand.vmem [shape: f32[1,128], index: 2, kind: input, shape index: {}]
  %s3 = inlined_call_operand.vmem [shape: bf16[128,128], index: 3, kind: input, shape index: {}]
  %s4 = inlined_call_operand.vmem [shape: f32[1,128], index: 4, kind: input, shape index: {}]
  %s5 = inlined_call_operand.vmem [shape: bf16[128,128], index: 5, kind: input, shape index: {}]
  %s6 = inlined_call_operand.vmem [shape: f32[1,128], index: 6, kind: input, shape index: {}]
  %s7 = inlined_call_operand.vmem [shape: f32[64,128], index: 7, kind: output, shape index: {0}]
  %s8 = inlined_call_operand.vmem [shape: f32[2,1,128], index: 8, kind: output, shape index: {1}]
  %s9 = inlined_call_operand.vmem [shape: f32[2,1,128], index: 9, kind: output, shape index: {2}]
  %10 = xla_tuple %s7, %s8, %s9
  %s11 = sld [smem:[#allocation0]]
  $region77: #{tst_encoder_layer.4} parent=0
    _
  %s13 = ssub.s32 1, %s11
  %s14 = scalar_select 0, %s13, %s11
  loop: start=0, step=1, limit=4
  $region2: #{tst_encoder_layer.4} parent=0 // loop_pre_header
    _
  $region3: #{tst_encoder_layer.4} parent=0 // loop_header
    %s16 = sphi 0, %s20
    %p17 = scmp.ge.s32.totalorder %s16, 4
    %s26 = sphi 0, %s28
    %s29 = sphi 0, %s26
    %s30 = sphi 0, %s29
    %s46 = sphi 0, %s30
    %s50 = sphi 0, %s50
    %s52 = sphi 0, %s50
    %s53 = sphi 0, %s52
    %s67 = sphi 0, %s53
    %s71 = sphi 0, %s71
    %s73 = sphi 0, %s71
    %s74 = sphi 0, %s73
    %s88 = sphi 0, %s74
    %s92 = sphi 0, %s92
    %s94 = sphi 0, %s92
    %s95 = sphi 0, %s94
    %s109 = sphi 0, %s95
    %s113 = sphi 0, %s113
    %s115 = sphi 0, %s113
    %s116 = sphi 0, %s115
    %s130 = sphi 0, %s116
    %s134 = sphi 0, %s134
    %s136 = sphi 0, %s134
    %s137 = sphi 0, %s136
    %s151 = sphi 0, %s137
    %s155 = sphi 0, %s155
    %s157 = sphi 0, %s155
    %s158 = sphi 0, %s157
    %s172 = sphi 0, %s158
    %s178 = sphi 0, %s180
    %s181 = sphi 0, %s178
    %s182 = sphi 0, %s181
    %s198 = sphi 0, %s182
    %s204 = sphi 0, %s206
    %s207 = sphi 0, %s204
    %s208 = sphi 0, %s207
    %s224 = sphi 0, %s208
    %s230 = sphi 0, %s232
    %s233 = sphi 0, %s230
    %s234 = sphi 0, %s233
    %s250 = sphi 0, %s234
  $region4: #{tst_encoder_layer.4} parent=0 // loop_header_branch
    %19 = sbr.rel (%p17) target = $region8
  $region5: #{tst_encoder_layer.4} parent=0 // loop_body
    %s21 = ssub.s32 %s16, 1
    %s22 = ssub.s32 %s16, 2
    %s23 = sadd.s32 %s16, 1
    %s24 = ssub.s32 %s16, %s23
    %p25 = scmp.eq.s32.totalorder %s24, 0
    %s27 = sadd.s32 %s26, 1
    %s28 = scalar_select %p25, %s26, %s27
    %p31 = pneg %p25
    %p32 = scmp.eq.s32.totalorder %s16, 1
    %p33 = por %p31, %p32
    %p34 = scmp.ne.s32.totalorder %s26, %s29
    %p35 = scmp.eq.s32.totalorder %s16, 0
    %p36 = por %p34, %p35
    %p37 = scmp.ne.s32.totalorder %s26, %s29
    %p38 = scmp.eq.s32.totalorder %s21, 1
    %p39 = por %p37, %p38
    %p40 = scmp.ne.s32.totalorder %s29, %s30
    %p41 = scmp.eq.s32.totalorder %s21, 0
    %p42 = por %p40, %p41
    %p43 = scmp.ne.s32.totalorder %s29, %s30
    %p44 = scmp.eq.s32.totalorder %s22, 1
    %p45 = por %p43, %p44
    %p47 = scmp.ne.s32.totalorder %s30, %s46
    %p48 = scmp.eq.s32.totalorder %s22, 0
    %p49 = por %p47, %p48
    %s51 = sadd.s32 %s50, 1
    %p54 = scmp.eq.s32.totalorder %s16, 1
    %p55 = scmp.ne.s32.totalorder %s50, %s52
    %p56 = scmp.eq.s32.totalorder %s16, 0
    %p57 = por %p55, %p56
    %p58 = scmp.ne.s32.totalorder %s50, %s52
    %p59 = scmp.eq.s32.totalorder %s21, 1
    %p60 = por %p58, %p59
    %p61 = scmp.ne.s32.totalorder %s52, %s53
    %p62 = scmp.eq.s32.totalorder %s21, 0
    %p63 = por %p61, %p62
    %p64 = scmp.ne.s32.totalorder %s52, %s53
    %p65 = scmp.eq.s32.totalorder %s22, 1
    %p66 = por %p64, %p65
    %p68 = scmp.ne.s32.totalorder %s53, %s67
    %p69 = scmp.eq.s32.totalorder %s22, 0
    %p70 = por %p68, %p69
    %s72 = sadd.s32 %s71, 1
    %p75 = scmp.eq.s32.totalorder %s16, 1
    %p76 = scmp.ne.s32.totalorder %s71, %s73
    %p77 = scmp.eq.s32.totalorder %s16, 0
    %p78 = por %p76, %p77
    %p79 = scmp.ne.s32.totalorder %s71, %s73
    %p80 = scmp.eq.s32.totalorder %s21, 1
    %p81 = por %p79, %p80
    %p82 = scmp.ne.s32.totalorder %s73, %s74
    %p83 = scmp.eq.s32.totalorder %s21, 0
    %p84 = por %p82, %p83
    %p85 = scmp.ne.s32.totalorder %s73, %s74
    %p86 = scmp.eq.s32.totalorder %s22, 1
    %p87 = por %p85, %p86
    %p89 = scmp.ne.s32.totalorder %s74, %s88
    %p90 = scmp.eq.s32.totalorder %s22, 0
    %p91 = por %p89, %p90
    %s93 = sadd.s32 %s92, 1
    %p96 = scmp.eq.s32.totalorder %s16, 1
    %p97 = scmp.ne.s32.totalorder %s92, %s94
    %p98 = scmp.eq.s32.totalorder %s16, 0
    %p99 = por %p97, %p98
    %p100 = scmp.ne.s32.totalorder %s92, %s94
    %p101 = scmp.eq.s32.totalorder %s21, 1
    %p102 = por %p100, %p101
    %p103 = scmp.ne.s32.totalorder %s94, %s95
    %p104 = scmp.eq.s32.totalorder %s21, 0
    %p105 = por %p103, %p104
    %p106 = scmp.ne.s32.totalorder %s94, %s95
    %p107 = scmp.eq.s32.totalorder %s22, 1
    %p108 = por %p106, %p107
    %p110 = scmp.ne.s32.totalorder %s95, %s109
    %p111 = scmp.eq.s32.totalorder %s22, 0
    %p112 = por %p110, %p111
    %s114 = sadd.s32 %s113, 1
    %p117 = scmp.eq.s32.totalorder %s16, 1
    %p118 = scmp.ne.s32.totalorder %s113, %s115
    %p119 = scmp.eq.s32.totalorder %s16, 0
    %p120 = por %p118, %p119
    %p121 = scmp.ne.s32.totalorder %s113, %s115
    %p122 = scmp.eq.s32.totalorder %s21, 1
    %p123 = por %p121, %p122
    %p124 = scmp.ne.s32.totalorder %s115, %s116
    %p125 = scmp.eq.s32.totalorder %s21, 0
    %p126 = por %p124, %p125
    %p127 = scmp.ne.s32.totalorder %s115, %s116
    %p128 = scmp.eq.s32.totalorder %s22, 1
    %p129 = por %p127, %p128
    %p131 = scmp.ne.s32.totalorder %s116, %s130
    %p132 = scmp.eq.s32.totalorder %s22, 0
    %p133 = por %p131, %p132
    %s135 = sadd.s32 %s134, 1
    %p138 = scmp.eq.s32.totalorder %s16, 1
    %p139 = scmp.ne.s32.totalorder %s134, %s136
    %p140 = scmp.eq.s32.totalorder %s16, 0
    %p141 = por %p139, %p140
    %p142 = scmp.ne.s32.totalorder %s134, %s136
    %p143 = scmp.eq.s32.totalorder %s21, 1
    %p144 = por %p142, %p143
    %p145 = scmp.ne.s32.totalorder %s136, %s137
    %p146 = scmp.eq.s32.totalorder %s21, 0
    %p147 = por %p145, %p146
    %p148 = scmp.ne.s32.totalorder %s136, %s137
    %p149 = scmp.eq.s32.totalorder %s22, 1
    %p150 = por %p148, %p149
    %p152 = scmp.ne.s32.totalorder %s137, %s151
    %p153 = scmp.eq.s32.totalorder %s22, 0
    %p154 = por %p152, %p153
    %s156 = sadd.s32 %s155, 1
    %p159 = scmp.eq.s32.totalorder %s16, 1
    %p160 = scmp.ne.s32.totalorder %s155, %s157
    %p161 = scmp.eq.s32.totalorder %s16, 0
    %p162 = por %p160, %p161
    %p163 = scmp.ne.s32.totalorder %s155, %s157
    %p164 = scmp.eq.s32.totalorder %s21, 1
    %p165 = por %p163, %p164
    %p166 = scmp.ne.s32.totalorder %s157, %s158
    %p167 = scmp.eq.s32.totalorder %s21, 0
    %p168 = por %p166, %p167
    %p169 = scmp.ne.s32.totalorder %s157, %s158
    %p170 = scmp.eq.s32.totalorder %s22, 1
    %p171 = por %p169, %p170
    %p173 = scmp.ne.s32.totalorder %s158, %s172
    %p174 = scmp.eq.s32.totalorder %s22, 0
    %p175 = por %p173, %p174
    %s176 = ssub.s32 %s16, %s23
    %p177 = scmp.eq.s32.totalorder %s176, 0
    %s179 = sadd.s32 %s178, 1
    %s180 = scalar_select %p177, %s178, %s179
    %p183 = pneg %p177
    %p184 = scmp.eq.s32.totalorder %s16, 1
    %p185 = por %p183, %p184
    %p186 = scmp.ne.s32.totalorder %s178, %s181
    %p187 = scmp.eq.s32.totalorder %s16, 0
    %p188 = por %p186, %p187
    %p189 = scmp.ne.s32.totalorder %s178, %s181
    %p190 = scmp.eq.s32.totalorder %s21, 1
    %p191 = por %p189, %p190
    %p192 = scmp.ne.s32.totalorder %s181, %s182
    %p193 = scmp.eq.s32.totalorder %s21, 0
    %p194 = por %p192, %p193
    %p195 = scmp.ne.s32.totalorder %s181, %s182
    %p196 = scmp.eq.s32.totalorder %s22, 1
    %p197 = por %p195, %p196
    %p199 = scmp.ne.s32.totalorder %s182, %s198
    %p200 = scmp.eq.s32.totalorder %s22, 0
    %p201 = por %p199, %p200
    %s202 = ssub.s32 %s16, %s23
    %p203 = scmp.eq.s32.totalorder %s202, 0
    %s205 = sadd.s32 %s204, 1
    %s206 = scalar_select %p203, %s204, %s205
    %p209 = pneg %p203
    %p210 = scmp.eq.s32.totalorder %s16, 1
    %p211 = por %p209, %p210
    %p212 = scmp.ne.s32.totalorder %s204, %s207
    %p213 = scmp.eq.s32.totalorder %s16, 0
    %p214 = por %p212, %p213
    %p215 = scmp.ne.s32.totalorder %s204, %s207
    %p216 = scmp.eq.s32.totalorder %s21, 1
    %p217 = por %p215, %p216
    %p218 = scmp.ne.s32.totalorder %s207, %s208
    %p219 = scmp.eq.s32.totalorder %s21, 0
    %p220 = por %p218, %p219
    %p221 = scmp.ne.s32.totalorder %s207, %s208
    %p222 = scmp.eq.s32.totalorder %s22, 1
    %p223 = por %p221, %p222
    %p225 = scmp.ne.s32.totalorder %s208, %s224
    %p226 = scmp.eq.s32.totalorder %s22, 0
    %p227 = por %p225, %p226
    %s228 = ssub.s32 %s16, %s23
    %p229 = scmp.eq.s32.totalorder %s228, 0
    %s231 = sadd.s32 %s230, 1
    %s232 = scalar_select %p229, %s230, %s231
    %p235 = pneg %p229
    %p236 = scmp.eq.s32.totalorder %s16, 1
    %p237 = por %p235, %p236
    %p238 = scmp.ne.s32.totalorder %s230, %s233
    %p239 = scmp.eq.s32.totalorder %s16, 0
    %p240 = por %p238, %p239
    %p241 = scmp.ne.s32.totalorder %s230, %s233
    %p242 = scmp.eq.s32.totalorder %s21, 1
    %p243 = por %p241, %p242
    %p244 = scmp.ne.s32.totalorder %s233, %s234
    %p245 = scmp.eq.s32.totalorder %s21, 0
    %p246 = por %p244, %p245
    %p247 = scmp.ne.s32.totalorder %s233, %s234
    %p248 = scmp.eq.s32.totalorder %s22, 1
    %p249 = por %p247, %p248
    %p251 = scmp.ne.s32.totalorder %s234, %s250
    %p252 = scmp.eq.s32.totalorder %s22, 0
    %p253 = por %p251, %p252
    %p254 = scmp.le.s32.totalorder 1, %s16
    %p255 = scmp.lt.s32.totalorder %s16, 3
    %p256 = pnand %p254, %p255
    %p257 = pneg %p256
    // Predicated region
    $region9: #{tst_encoder_layer.4} parent=5 // pred_check
      _
    $region10: #{tst_encoder_layer.4} parent=5 // pred_check_branch
      %259 = sbr.rel (%p256) target = $region12
    $region11: #{tst_encoder_layer.4} parent=5 // pred_region
      %s260 = ssub.s32 %s16, 1
      // Predicated region
      $region13: #{tst_encoder_layer.4} parent=11 // pred_check
        %p261 = pneg %p63
      $region14: #{tst_encoder_layer.4} parent=11 // pred_check_branch
        %263 = sbr.rel (%p261) target = $region16
      $region15: #{tst_encoder_layer.4} parent=11 // pred_region
        _
      $region16: #{tst_encoder_layer.4} parent=11 // pred_fallthru
        _
      // Predicated region
      $region17: #{tst_encoder_layer.4} parent=11 // pred_check
        %p264 = pneg %p84
      $region18: #{tst_encoder_layer.4} parent=11 // pred_check_branch
        %266 = sbr.rel (%p264) target = $region20
      $region19: #{tst_encoder_layer.4} parent=11 // pred_region
        _
      $region20: #{tst_encoder_layer.4} parent=11 // pred_fallthru
        _
      // Predicated region
      $region21: #{tst_encoder_layer.4} parent=11 // pred_check
        %p267 = pneg %p105
      $region22: #{tst_encoder_layer.4} parent=11 // pred_check_branch
        %269 = sbr.rel (%p267) target = $region24
      $region23: #{tst_encoder_layer.4} parent=11 // pred_region
        _
      $region24: #{tst_encoder_layer.4} parent=11 // pred_fallthru
        _
      // Predicated region
      $region25: #{tst_encoder_layer.4} parent=11 // pred_check
        %p270 = pneg %p126
      $region26: #{tst_encoder_layer.4} parent=11 // pred_check_branch
        %272 = sbr.rel (%p270) target = $region28
      $region27: #{tst_encoder_layer.4} parent=11 // pred_region
        _
      $region28: #{tst_encoder_layer.4} parent=11 // pred_fallthru
        _
      // Predicated region
      $region29: #{tst_encoder_layer.4} parent=11 // pred_check
        %p273 = pneg %p147
      $region30: #{tst_encoder_layer.4} parent=11 // pred_check_branch
        %275 = sbr.rel (%p273) target = $region32
      $region31: #{tst_encoder_layer.4} parent=11 // pred_region
        _
      $region32: #{tst_encoder_layer.4} parent=11 // pred_fallthru
        _
      // Predicated region
      $region33: #{tst_encoder_layer.4} parent=11 // pred_check
        %p276 = pneg %p168
      $region34: #{tst_encoder_layer.4} parent=11 // pred_check_branch
        %278 = sbr.rel (%p276) target = $region36
      $region35: #{tst_encoder_layer.4} parent=11 // pred_region
        _
      $region36: #{tst_encoder_layer.4} parent=11 // pred_fallthru
        _
    $region12: #{tst_encoder_layer.4} parent=5 // pred_fallthru
      _
    %p279 = scmp.lt.s32.totalorder %s16, 2
    // Predicated region
    $region37: #{tst_encoder_layer.4} parent=5 // pred_check
      %p280 = pneg %p279
    $region38: #{tst_encoder_layer.4} parent=5 // pred_check_branch
      %282 = sbr.rel (%p280) target = $region40
    $region39: #{tst_encoder_layer.4} parent=5 // pred_region
      // Predicated region
      $region41: #{tst_encoder_layer.4} parent=39 // pred_check
        %p283 = pneg %p36
      $region42: #{tst_encoder_layer.4} parent=39 // pred_check_branch
        %285 = sbr.rel (%p283) target = $region44
      $region43: #{tst_encoder_layer.4} parent=39 // pred_region
        %s286 = smul.u32 4, %s16
        %p287 = scmp.lt.s32.totalorder %s286, 7
        %s288 = scalar_select %p287, %s286, 7
        %s289 = smul.addr %s288, 8
        %s290 = scalar_lea.vmem %s0, %s289
        %s291 = smul.u32 4, %s16
      $region44: #{tst_encoder_layer.4} parent=39 // pred_fallthru
        _
    $region40: #{tst_encoder_layer.4} parent=5 // pred_fallthru
      _
    %p292 = scmp.le.s32.totalorder 1, %s16
    %p293 = scmp.lt.s32.totalorder %s16, 3
    %p294 = pnand %p292, %p293
    %p295 = pneg %p294
    // Predicated region
    $region45: #{tst_encoder_layer.4} parent=5 // pred_check
      _
    $region46: #{tst_encoder_layer.4} parent=5 // pred_check_branch
      %297 = sbr.rel (%p294) target = $region48
    $region47: #{tst_encoder_layer.4} parent=5 // pred_region
      %s298 = ssub.s32 %s16, 1
      %s299 = smul.u32 4, %s21
      %p300 = scmp.lt.s32.totalorder %s299, 7
      %s301 = scalar_select %p300, %s299, 7
      %s302 = smul.addr %s301, 8
      %s303 = scalar_lea.vmem %s0, %s302
      %p304 = pneg %p42
      %p305 = pneg %p39
      %p306 = pneg %p63
      %p307 = pneg %p60
      %p308 = pneg %p84
      %p309 = pneg %p81
      %p310 = pneg %p105
      %p311 = pneg %p102
      %p312 = pneg %p126
      %p313 = pneg %p123
      %p314 = pneg %p147
      %p315 = pneg %p144
      %p316 = pneg %p168
      %p317 = pneg %p165
      %p318 = pneg %p194
      %p319 = pneg %p191
      %s320 = smul.u32 4, %s21
      %p321 = scmp.lt.s32.totalorder %s320, 7
      %s322 = scalar_select %p321, %s320, 7
      %s323 = smul.addr %s322, 8
      %s324 = scalar_lea.vmem %s7, %s323
      %p325 = pneg %p220
      %p326 = pneg %p217
      %p327 = scmp.lt.s32.totalorder %s21, 1
      %s328 = scalar_select %p327, %s21, 1
      %s329 = scalar_lea.vmem %s8, %s328
      %p330 = pneg %p246
      %p331 = pneg %p243
      %p332 = scmp.lt.s32.totalorder %s21, 1
      %s333 = scalar_select %p332, %s21, 1
      %s334 = scalar_lea.vmem %s9, %s333
      %s335 = smul.u32 4, %s21
      %p336 = scmp.lt.s32.totalorder %s335, 7
      %s337 = scalar_select %p336, %s335, 7
      %s338 = smul.addr %s337, 8
      %s339 = scalar_lea.vmem %s0, %s338
      %s340 = smul.u32 4, %s21
      %s341 = smul.u32 4, %s21
      %p342 = scmp.lt.s32.totalorder %s341, 7
      %s343 = scalar_select %p342, %s341, 7
      %s344 = smul.addr %s343, 8
      %s345 = scalar_lea.vmem %s7, %s344
      %s346 = smul.u32 4, %s21
      %p347 = scmp.lt.s32.totalorder %s21, 1
      %s348 = scalar_select %p347, %s21, 1
      %s349 = scalar_lea.vmem %s8, %s348
      %p350 = scmp.lt.s32.totalorder %s21, 1
      %s351 = scalar_select %p350, %s21, 1
      %s352 = scalar_lea.vmem %s9, %s351
      %v354 = vld [vmem:[%s339] sm:$0xff]
      %v355 = vld [vmem:[%s339 + $0x8] sm:$0xff]
      %v356 = vld [vmem:[%s339 + $0x10] sm:$0xff]
      %v357 = vld [vmem:[%s339 + $0x18] sm:$0xff]
      %v358 = vld [vmem:[%s1] sm:$0x1]
      %v360 = vlaneseq
      %v361 = vshrl.u32 %v360, 7
      %v362 = vsub.s32 0, %v361
      %v363 = vrot.slane %v358, %v362
      %v365 = vmul.f32 %v354, %v363
      %v366 = vmul.f32 %v355, %v363
      %v367 = vmul.f32 %v356, %v363
      %v368 = vmul.f32 %v357, %v363
      %v369 = vld [vmem:[%s2] sm:$0x1]
      %v371 = vlaneseq
      %v372 = vshrl.u32 %v371, 7
      %v373 = vsub.s32 0, %v372
      %v374 = vrot.slane %v369, %v373
      %v376 = vadd.f32 %v365, %v374
      %v377 = vadd.f32 %v366, %v374
      %v378 = vadd.f32 %v367, %v374
      %v379 = vadd.f32 %v368, %v374
      %v380 = vpack.c.bf16 %v377, %v376
      %v381 = vpack.c.bf16 %v379, %v378
      %v382 = vld [vmem:[%s3] sm:$0xf]
      %v383 = vld [vmem:[%s3 + $0x4] sm:$0xf]
      %v384 = vld [vmem:[%s3 + $0x8] sm:$0xf]
      %v385 = vld [vmem:[%s3 + $0xc] sm:$0xf]
      %v386 = vld [vmem:[%s3 + $0x10] sm:$0xf]
      %v387 = vld [vmem:[%s3 + $0x14] sm:$0xf]
      %v388 = vld [vmem:[%s3 + $0x18] sm:$0xf]
      %v389 = vld [vmem:[%s3 + $0x1c] sm:$0xf]
      %v390 = vld [vmem:[%s3 + $0x20] sm:$0xf]
      %v391 = vld [vmem:[%s3 + $0x24] sm:$0xf]
      %v392 = vld [vmem:[%s3 + $0x28] sm:$0xf]
      %v393 = vld [vmem:[%s3 + $0x2c] sm:$0xf]
      %v394 = vld [vmem:[%s3 + $0x30] sm:$0xf]
      %v395 = vld [vmem:[%s3 + $0x34] sm:$0xf]
      %v396 = vld [vmem:[%s3 + $0x38] sm:$0xf]
      %v397 = vld [vmem:[%s3 + $0x3c] sm:$0xf]
      %v398 = vld [vmem:[%s4] sm:$0x1]
      %v400 = vlaneseq
      %v401 = vshrl.u32 %v400, 7
      %v402 = vsub.s32 0, %v401
      %v403 = vrot.slane %v398, %v402
      %v421 = vunpack.c.l.b16 %v382
      %v422 = vunpack.c.l.b16 %v383
      %v423 = vunpack.c.l.b16 %v384
      %v424 = vunpack.c.l.b16 %v385
      %v425 = vunpack.c.l.b16 %v386
      %v426 = vunpack.c.l.b16 %v387
      %v427 = vunpack.c.l.b16 %v388
      %v428 = vunpack.c.l.b16 %v389
      %v429 = vunpack.c.l.b16 %v390
      %v430 = vunpack.c.l.b16 %v391
      %v431 = vunpack.c.l.b16 %v392
      %v432 = vunpack.c.l.b16 %v393
      %v433 = vunpack.c.l.b16 %v394
      %v434 = vunpack.c.l.b16 %v395
      %v435 = vunpack.c.l.b16 %v396
      %v436 = vunpack.c.l.b16 %v397
      %v437 = vpack.c.b16 %v422, %v421
      %v438 = vpack.c.b16 %v424, %v423
      %v439 = vpack.c.b16 %v426, %v425
      %v440 = vpack.c.b16 %v428, %v427
      %v441 = vpack.c.b16 %v430, %v429
      %v442 = vpack.c.b16 %v432, %v431
      %v443 = vpack.c.b16 %v434, %v433
      %v444 = vpack.c.b16 %v436, %v435
      %453 = vmatprep.subr.bf16.mxu0 0
      %454 = vmatpush1.bf16.msra.mxu0 %v437
      %455 = vmatprep.subr.bf16.mxu0 0
      %456 = vmatpush1.bf16.msra.mxu0 %v438
      %457 = vmatprep.subr.bf16.mxu0 0
      %458 = vmatpush1.bf16.msra.mxu0 %v439
      %459 = vmatprep.subr.bf16.mxu0 0
      %460 = vmatpush1.bf16.msra.mxu0 %v440
      %461 = vmatprep.subr.bf16.mxu0 0
      %462 = vmatpush1.bf16.msra.mxu0 %v441
      %463 = vmatprep.subr.bf16.mxu0 0
      %464 = vmatpush1.bf16.msra.mxu0 %v442
      %465 = vmatprep.subr.bf16.mxu0 0
      %466 = vmatpush1.bf16.msra.mxu0 %v443
      %467 = vmatprep.subr.bf16.mxu0 0
      %468 = vmatpush1.bf16.msra.mxu0 %v444
      %469 = vmatprep.subr.bf16.mxu0 0
      %470 = vmatpush1.bf16.msra.mxu0 0
      %471 = vmatprep.subr.bf16.mxu0 0
      %472 = vmatpush1.bf16.msra.mxu0 0
      %473 = vmatprep.subr.bf16.mxu0 0
      %474 = vmatpush1.bf16.msra.mxu0 0
      %475 = vmatprep.subr.bf16.mxu0 0
      %476 = vmatpush1.bf16.msra.mxu0 0
      %477 = vmatprep.subr.bf16.mxu0 0
      %478 = vmatpush1.bf16.msra.mxu0 0
      %479 = vmatprep.subr.bf16.mxu0 0
      %480 = vmatpush1.bf16.msra.mxu0 0
      %481 = vmatprep.subr.bf16.mxu0 0
      %482 = vmatpush1.bf16.msra.mxu0 0
      %483 = vmatprep.subr.bf16.mxu0 0
      %484 = vmatpush1.bf16.msra.mxu0 0
      %485 = vmatprep.mubr.bf16.mxu0 0
      %486 = vmatmul.mubr.bf16.gmra.mrb[0].mxu0 %v380
      %v487 = vpop.f32.mrb[0].mxu0
      %v488 = vadd.f32 %v403, %v487
      %v489 = vpop.f32.mrb[0].mxu0
      %v490 = vpop.f32.mrb[0].mxu0
      %v491 = vadd.f32 %v403, %v490
      %v492 = vpop.f32.mrb[0].mxu0
      %493 = vmatprep.mubr.bf16.mxu0 0
      %494 = vmatmul.mubr.bf16.gmra.mrb[0].mxu0 %v381
      %v495 = vpop.f32.mrb[0].mxu0
      %v496 = vadd.f32 %v403, %v495
      %v497 = vpop.f32.mrb[0].mxu0
      %v498 = vpop.f32.mrb[0].mxu0
      %v499 = vadd.f32 %v403, %v498
      %v500 = vpop.f32.mrb[0].mxu0
      %501 = vdwg.mxu0
      %v502 = vmul.f32 %v488, 0.5
      %v503 = vmul.f32 %v491, 0.5
      %v504 = vmul.f32 %v496, 0.5
      %v505 = vmul.f32 %v499, 0.5
      %v506 = vmul.f32 %v488, 0.044715
      %v507 = vmul.f32 %v491, 0.044715
      %v508 = vmul.f32 %v496, 0.044715
      %v509 = vmul.f32 %v499, 0.044715
      %v510 = vmul.f32 %v506, %v488
      %v511 = vmul.f32 %v507, %v491
      %v512 = vmul.f32 %v508, %v496
      %v513 = vmul.f32 %v509, %v499
      %v514 = vmul.f32 %v510, %v488
      %v515 = vmul.f32 %v511, %v491
      %v516 = vmul.f32 %v512, %v496
      %v517 = vmul.f32 %v513, %v499
      %v518 = vadd.f32 %v488, %v514
      %v519 = vadd.f32 %v491, %v515
      %v520 = vadd.f32 %v496, %v516
      %v521 = vadd.f32 %v499, %v517
      %v522 = vmul.f32 %v518, 0.7978846
      %v523 = vmul.f32 %v519, 0.7978846
      %v524 = vmul.f32 %v520, 0.7978846
      %v525 = vmul.f32 %v521, 0.7978846
      %v526 = vtanh.pop %v522
      %v527 = vtanh.pop %v523
      %v528 = vtanh.pop %v524
      %v529 = vtanh.pop %v525
      %v530 = vadd.f32 %v526, 1.0
      %v531 = vadd.f32 %v527, 1.0
      %v532 = vadd.f32 %v528, 1.0
      %v533 = vadd.f32 %v529, 1.0
      %v534 = vmul.f32 %v502, %v530
      %v535 = vmul.f32 %v503, %v531
      %v536 = vmul.f32 %v504, %v532
      %v537 = vmul.f32 %v505, %v533
      %v538 = vpack.c.bf16 %v535, %v534
      %v539 = vpack.c.bf16 %v537, %v536
      %v540 = vld [vmem:[%s5] sm:$0xf]
      %v541 = vld [vmem:[%s5 + $0x4] sm:$0xf]
      %v542 = vld [vmem:[%s5 + $0x8] sm:$0xf]
      %v543 = vld [vmem:[%s5 + $0xc] sm:$0xf]
      %v544 = vld [vmem:[%s5 + $0x10] sm:$0xf]
      %v545 = vld [vmem:[%s5 + $0x14] sm:$0xf]
      %v546 = vld [vmem:[%s5 + $0x18] sm:$0xf]
      %v547 = vld [vmem:[%s5 + $0x1c] sm:$0xf]
      %v548 = vld [vmem:[%s5 + $0x20] sm:$0xf]
      %v549 = vld [vmem:[%s5 + $0x24] sm:$0xf]
      %v550 = vld [vmem:[%s5 + $0x28] sm:$0xf]
      %v551 = vld [vmem:[%s5 + $0x2c] sm:$0xf]
      %v552 = vld [vmem:[%s5 + $0x30] sm:$0xf]
      %v553 = vld [vmem:[%s5 + $0x34] sm:$0xf]
      %v554 = vld [vmem:[%s5 + $0x38] sm:$0xf]
      %v555 = vld [vmem:[%s5 + $0x3c] sm:$0xf]
      %v572 = vunpack.c.l.b16 %v540
      %v573 = vunpack.c.l.b16 %v541
      %v574 = vunpack.c.l.b16 %v542
      %v575 = vunpack.c.l.b16 %v543
      %v576 = vunpack.c.l.b16 %v544
      %v577 = vunpack.c.l.b16 %v545
      %v578 = vunpack.c.l.b16 %v546
      %v579 = vunpack.c.l.b16 %v547
      %v580 = vunpack.c.l.b16 %v548
      %v581 = vunpack.c.l.b16 %v549
      %v582 = vunpack.c.l.b16 %v550
      %v583 = vunpack.c.l.b16 %v551
      %v584 = vunpack.c.l.b16 %v552
      %v585 = vunpack.c.l.b16 %v553
      %v586 = vunpack.c.l.b16 %v554
      %v587 = vunpack.c.l.b16 %v555
      %v588 = vpack.c.b16 %v573, %v572
      %v589 = vpack.c.b16 %v575, %v574
      %v590 = vpack.c.b16 %v577, %v576
      %v591 = vpack.c.b16 %v579, %v578
      %v592 = vpack.c.b16 %v581, %v580
      %v593 = vpack.c.b16 %v583, %v582
      %v594 = vpack.c.b16 %v585, %v584
      %v595 = vpack.c.b16 %v587, %v586
      %604 = vmatprep.subr.bf16.mxu0 0
      %605 = vmatpush1.bf16.msra.mxu0 %v588
      %606 = vmatprep.subr.bf16.mxu0 0
      %607 = vmatpush1.bf16.msra.mxu0 %v589
      %608 = vmatprep.subr.bf16.mxu0 0
      %609 = vmatpush1.bf16.msra.mxu0 %v590
      %610 = vmatprep.subr.bf16.mxu0 0
      %611 = vmatpush1.bf16.msra.mxu0 %v591
      %612 = vmatprep.subr.bf16.mxu0 0
      %613 = vmatpush1.bf16.msra.mxu0 %v592
      %614 = vmatprep.subr.bf16.mxu0 0
      %615 = vmatpush1.bf16.msra.mxu0 %v593
      %616 = vmatprep.subr.bf16.mxu0 0
      %617 = vmatpush1.bf16.msra.mxu0 %v594
      %618 = vmatprep.subr.bf16.mxu0 0
      %619 = vmatpush1.bf16.msra.mxu0 %v595
      %620 = vmatprep.subr.bf16.mxu0 0
      %621 = vmatpush1.bf16.msra.mxu0 0
      %622 = vmatprep.subr.bf16.mxu0 0
      %623 = vmatpush1.bf16.msra.mxu0 0
      %624 = vmatprep.subr.bf16.mxu0 0
      %625 = vmatpush1.bf16.msra.mxu0 0
      %626 = vmatprep.subr.bf16.mxu0 0
      %627 = vmatpush1.bf16.msra.mxu0 0
      %628 = vmatprep.subr.bf16.mxu0 0
      %629 = vmatpush1.bf16.msra.mxu0 0
      %630 = vmatprep.subr.bf16.mxu0 0
      %631 = vmatpush1.bf16.msra.mxu0 0
      %632 = vmatprep.subr.bf16.mxu0 0
      %633 = vmatpush1.bf16.msra.mxu0 0
      %634 = vmatprep.subr.bf16.mxu0 0
      %635 = vmatpush1.bf16.msra.mxu0 0
      %636 = vmatprep.mubr.bf16.mxu0 0
      %637 = vmatmul.mubr.bf16.gmra.mrb[0].mxu0 %v538
      %v638 = vpop.f32.mrb[0].mxu0
      %v639 = vadd.f32 0.0, %v638
      %v640 = vpop.f32.mrb[0].mxu0
      %v641 = vpop.f32.mrb[0].mxu0
      %v642 = vadd.f32 0.0, %v641
      %v643 = vpop.f32.mrb[0].mxu0
      %644 = vmatprep.mubr.bf16.mxu0 0
      %645 = vmatmul.mubr.bf16.gmra.mrb[0].mxu0 %v539
      %v646 = vpop.f32.mrb[0].mxu0
      %v647 = vadd.f32 0.0, %v646
      %v648 = vpop.f32.mrb[0].mxu0
      %v649 = vpop.f32.mrb[0].mxu0
      %v650 = vadd.f32 0.0, %v649
      %v651 = vpop.f32.mrb[0].mxu0
      %652 = vdwg.mxu0
      %v653 = vadd.f32 %v376, %v639
      %v654 = vadd.f32 %v377, %v642
      %v655 = vadd.f32 %v378, %v647
      %v656 = vadd.f32 %v379, %v650
      %v657 = vld [vmem:[%s6] sm:$0x1]
      %v659 = vlaneseq
      %v660 = vshrl.u32 %v659, 7
      %v661 = vsub.s32 0, %v660
      %v662 = vrot.slane %v657, %v661
      %v664 = vadd.f32 %v653, %v662
      %v665 = vadd.f32 %v654, %v662
      %v666 = vadd.f32 %v655, %v662
      %v667 = vadd.f32 %v656, %v662
      %668 = vst [vmem:[%s345] sm:$0xff] %v664
      %669 = vst [vmem:[%s345 + $0x8] sm:$0xff] %v665
      %670 = vst [vmem:[%s345 + $0x10] sm:$0xff] %v666
      %671 = vst [vmem:[%s345 + $0x18] sm:$0xff] %v667
      %v672 = vadd.f32 %v664, %v665
      %v673 = vadd.f32 %v672, %v666
      %v674 = vadd.f32 %v673, %v667
      %v675 = vrot.slane %v674, 4
      %v676 = vadd.f32 %v674, %v675
      %v677 = vrot.slane %v676, 2
      %v678 = vadd.f32 %v676, %v677
      %v679 = vrot.slane %v678, 1
      %v680 = vadd.f32 %v678, %v679
      %v681 = vmul.f32 %v680, 0.03125
      %v682 = vsub.f32 %v664, %v681
      %v683 = vsub.f32 %v665, %v681
      %v684 = vsub.f32 %v666, %v681
      %v685 = vsub.f32 %v667, %v681
      %v686 = vmul.f32 %v681, 32.0
      %687 = vst [vmem:[%s349] sm:$0x1] %v686
      %v688 = vmul.f32 %v682, %v682
      %v689 = vmul.f32 %v683, %v683
      %v690 = vmul.f32 %v684, %v684
      %v691 = vmul.f32 %v685, %v685
      %v692 = vadd.f32 %v688, %v689
      %v693 = vadd.f32 %v692, %v690
      %v694 = vadd.f32 %v693, %v691
      %v695 = vrot.slane %v694, 4
      %v696 = vadd.f32 %v694, %v695
      %v697 = vrot.slane %v696, 2
      %v698 = vadd.f32 %v696, %v697
      %v699 = vrot.slane %v698, 1
      %v700 = vadd.f32 %v698, %v699
      %701 = vst [vmem:[%s352] sm:$0x1] %v700
      %s702 = smul.u32 4, %s21
      %p703 = scmp.lt.s32.totalorder %s702, 7
      %s704 = scalar_select %p703, %s702, 7
      %s705 = smul.addr %s704, 8
      %s706 = scalar_lea.vmem %s7, %s705
      %p707 = scmp.lt.s32.totalorder %s21, 1
      %s708 = scalar_select %p707, %s21, 1
      %s709 = scalar_lea.vmem %s8, %s708
      %p710 = scmp.lt.s32.totalorder %s21, 1
      %s711 = scalar_select %p710, %s21, 1
      %s712 = scalar_lea.vmem %s9, %s711
      // Predicated region
      $region49: #{tst_encoder_layer.4} parent=47 // pred_check
        %p713 = pneg %p191
      $region50: #{tst_encoder_layer.4} parent=47 // pred_check_branch
        %715 = sbr.rel (%p713) target = $region52
      $region51: #{tst_encoder_layer.4} parent=47 // pred_region
        %s716 = smul.u32 4, %s21
      $region52: #{tst_encoder_layer.4} parent=47 // pred_fallthru
        _
      // Predicated region
      $region53: #{tst_encoder_layer.4} parent=47 // pred_check
        %p717 = pneg %p217
      $region54: #{tst_encoder_layer.4} parent=47 // pred_check_branch
        %719 = sbr.rel (%p717) target = $region56
      $region55: #{tst_encoder_layer.4} parent=47 // pred_region
        _
      $region56: #{tst_encoder_layer.4} parent=47 // pred_fallthru
        _
      // Predicated region
      $region57: #{tst_encoder_layer.4} parent=47 // pred_check
        %p720 = pneg %p243
      $region58: #{tst_encoder_layer.4} parent=47 // pred_check_branch
        %722 = sbr.rel (%p720) target = $region60
      $region59: #{tst_encoder_layer.4} parent=47 // pred_region
        _
      $region60: #{tst_encoder_layer.4} parent=47 // pred_fallthru
        _
    $region48: #{tst_encoder_layer.4} parent=5 // pred_fallthru
      _
    %p723 = scmp.le.s32.totalorder 2, %s16
    // Predicated region
    $region61: #{tst_encoder_layer.4} parent=5 // pred_check
      %p724 = pneg %p723
    $region62: #{tst_encoder_layer.4} parent=5 // pred_check_branch
      %726 = sbr.rel (%p724) target = $region64
    $region63: #{tst_encoder_layer.4} parent=5 // pred_region
      %s727 = ssub.s32 %s16, 2
      // Predicated region
      $region65: #{tst_encoder_layer.4} parent=63 // pred_check
        %p728 = pneg %p197
      $region66: #{tst_encoder_layer.4} parent=63 // pred_check_branch
        %730 = sbr.rel (%p728) target = $region68
      $region67: #{tst_encoder_layer.4} parent=63 // pred_region
        %s731 = smul.u32 4, %s22
        %p732 = scmp.lt.s32.totalorder %s731, 7
        %s733 = scalar_select %p732, %s731, 7
        %s734 = smul.addr %s733, 8
        %s735 = scalar_lea.vmem %s7, %s734
      $region68: #{tst_encoder_layer.4} parent=63 // pred_fallthru
        _
      // Predicated region
      $region69: #{tst_encoder_layer.4} parent=63 // pred_check
        %p736 = pneg %p223
      $region70: #{tst_encoder_layer.4} parent=63 // pred_check_branch
        %738 = sbr.rel (%p736) target = $region72
      $region71: #{tst_encoder_layer.4} parent=63 // pred_region
        %p739 = scmp.lt.s32.totalorder %s22, 1
        %s740 = scalar_select %p739, %s22, 1
        %s741 = scalar_lea.vmem %s8, %s740
      $region72: #{tst_encoder_layer.4} parent=63 // pred_fallthru
        _
      // Predicated region
      $region73: #{tst_encoder_layer.4} parent=63 // pred_check
        %p742 = pneg %p249
      $region74: #{tst_encoder_layer.4} parent=63 // pred_check_branch
        %744 = sbr.rel (%p742) target = $region76
      $region75: #{tst_encoder_layer.4} parent=63 // pred_region
        %p745 = scmp.lt.s32.totalorder %s22, 1
        %s746 = scalar_select %p745, %s22, 1
        %s747 = scalar_lea.vmem %s9, %s746
      $region76: #{tst_encoder_layer.4} parent=63 // pred_fallthru
        _
    $region64: #{tst_encoder_layer.4} parent=5 // pred_fallthru
      _
  $region6: #{tst_encoder_layer.4} parent=0 // loop_footer
    %s20 = sadd.s32 1, %s16
  $region7: #{tst_encoder_layer.4} parent=0 // loop_footer_branch
    %15 = sbr.rel target = $region3
  $region8: #{tst_encoder_layer.4} parent=0 // loop_exit
    _

// kernel: tst_encoder_layer.3
$region0: #{tst_encoder_layer.3}
  #allocation0 [shape = 'u32[]', space=smem, size = 0x4, offset = 0x4, fixed_abs, tag = 'smem constant byte address 0x4 - core index']
  #allocation1 [shape = 'u32[144,128]{1,0:T(1,128)}', space=vmem, size = 0x12000, scoped, tag = 'internal scratch']
  #allocation2 [shape = 'bf16[32,384]{1,0:T(16,128)(2,1)}', space=vmem, size = 0x6000, scoped, tag = 'scratch operand']
  #allocation3 [shape = 'bf16[32,128]{1,0:T(16,128)(2,1)}', space=vmem, size = 0x2000, scoped, tag = 'scratch operand']
  %s0 = inlined_call_operand.vmem [shape: f32[64,128], index: 0, kind: input, shape index: {}]
  %s1 = inlined_call_operand.vmem [shape: f32[32,32], index: 1, kind: input, shape index: {}]
  %s2 = inlined_call_operand.vmem [shape: bf16[128,384], index: 2, kind: input, shape index: {}]
  %s3 = inlined_call_operand.vmem [shape: f32[1,384], index: 3, kind: input, shape index: {}]
  %s4 = inlined_call_operand.vmem [shape: bf16[128,128], index: 4, kind: input, shape index: {}]
  %s5 = inlined_call_operand.vmem [shape: f32[1,128], index: 5, kind: input, shape index: {}]
  %s6 = inlined_call_operand.vmem [shape: f32[64,128], index: 6, kind: output, shape index: {0}]
  %s7 = inlined_call_operand.vmem [shape: f32[2,1,128], index: 7, kind: output, shape index: {1}]
  %s8 = inlined_call_operand.vmem [shape: f32[2,1,128], index: 8, kind: output, shape index: {2}]
  %9 = xla_tuple %s6, %s7, %s8
  %s10 = sld [smem:[#allocation0]]
  $region73: #{tst_encoder_layer.3} parent=0
    _
  %s12 = ssub.s32 1, %s10
  %s13 = scalar_select 0, %s12, %s10
  loop: start=0, step=1, limit=4
  $region2: #{tst_encoder_layer.3} parent=0 // loop_pre_header
    _
  $region3: #{tst_encoder_layer.3} parent=0 // loop_header
    %s15 = sphi 0, %s19
    %p16 = scmp.ge.s32.totalorder %s15, 4
    %s25 = sphi 0, %s27
    %s28 = sphi 0, %s25
    %s29 = sphi 0, %s28
    %s45 = sphi 0, %s29
    %s49 = sphi 0, %s49
    %s51 = sphi 0, %s49
    %s52 = sphi 0, %s51
    %s66 = sphi 0, %s52
    %s70 = sphi 0, %s70
    %s72 = sphi 0, %s70
    %s73 = sphi 0, %s72
    %s87 = sphi 0, %s73
    %s91 = sphi 0, %s91
    %s93 = sphi 0, %s91
    %s94 = sphi 0, %s93
    %s108 = sphi 0, %s94
    %s112 = sphi 0, %s112
    %s114 = sphi 0, %s112
    %s115 = sphi 0, %s114
    %s129 = sphi 0, %s115
    %s133 = sphi 0, %s133
    %s135 = sphi 0, %s133
    %s136 = sphi 0, %s135
    %s150 = sphi 0, %s136
    %s156 = sphi 0, %s158
    %s159 = sphi 0, %s156
    %s160 = sphi 0, %s159
    %s176 = sphi 0, %s160
    %s182 = sphi 0, %s184
    %s185 = sphi 0, %s182
    %s186 = sphi 0, %s185
    %s202 = sphi 0, %s186
    %s208 = sphi 0, %s210
    %s211 = sphi 0, %s208
    %s212 = sphi 0, %s211
    %s228 = sphi 0, %s212
  $region4: #{tst_encoder_layer.3} parent=0 // loop_header_branch
    %18 = sbr.rel (%p16) target = $region8
  $region5: #{tst_encoder_layer.3} parent=0 // loop_body
    %s20 = ssub.s32 %s15, 1
    %s21 = ssub.s32 %s15, 2
    %s22 = sadd.s32 %s15, 1
    %s23 = ssub.s32 %s15, %s22
    %p24 = scmp.eq.s32.totalorder %s23, 0
    %s26 = sadd.s32 %s25, 1
    %s27 = scalar_select %p24, %s25, %s26
    %p30 = pneg %p24
    %p31 = scmp.eq.s32.totalorder %s15, 1
    %p32 = por %p30, %p31
    %p33 = scmp.ne.s32.totalorder %s25, %s28
    %p34 = scmp.eq.s32.totalorder %s15, 0
    %p35 = por %p33, %p34
    %p36 = scmp.ne.s32.totalorder %s25, %s28
    %p37 = scmp.eq.s32.totalorder %s20, 1
    %p38 = por %p36, %p37
    %p39 = scmp.ne.s32.totalorder %s28, %s29
    %p40 = scmp.eq.s32.totalorder %s20, 0
    %p41 = por %p39, %p40
    %p42 = scmp.ne.s32.totalorder %s28, %s29
    %p43 = scmp.eq.s32.totalorder %s21, 1
    %p44 = por %p42, %p43
    %p46 = scmp.ne.s32.totalorder %s29, %s45
    %p47 = scmp.eq.s32.totalorder %s21, 0
    %p48 = por %p46, %p47
    %s50 = sadd.s32 %s49, 1
    %p53 = scmp.eq.s32.totalorder %s15, 1
    %p54 = scmp.ne.s32.totalorder %s49, %s51
    %p55 = scmp.eq.s32.totalorder %s15, 0
    %p56 = por %p54, %p55
    %p57 = scmp.ne.s32.totalorder %s49, %s51
    %p58 = scmp.eq.s32.totalorder %s20, 1
    %p59 = por %p57, %p58
    %p60 = scmp.ne.s32.totalorder %s51, %s52
    %p61 = scmp.eq.s32.totalorder %s20, 0
    %p62 = por %p60, %p61
    %p63 = scmp.ne.s32.totalorder %s51, %s52
    %p64 = scmp.eq.s32.totalorder %s21, 1
    %p65 = por %p63, %p64
    %p67 = scmp.ne.s32.totalorder %s52, %s66
    %p68 = scmp.eq.s32.totalorder %s21, 0
    %p69 = por %p67, %p68
    %s71 = sadd.s32 %s70, 1
    %p74 = scmp.eq.s32.totalorder %s15, 1
    %p75 = scmp.ne.s32.totalorder %s70, %s72
    %p76 = scmp.eq.s32.totalorder %s15, 0
    %p77 = por %p75, %p76
    %p78 = scmp.ne.s32.totalorder %s70, %s72
    %p79 = scmp.eq.s32.totalorder %s20, 1
    %p80 = por %p78, %p79
    %p81 = scmp.ne.s32.totalorder %s72, %s73
    %p82 = scmp.eq.s32.totalorder %s20, 0
    %p83 = por %p81, %p82
    %p84 = scmp.ne.s32.totalorder %s72, %s73
    %p85 = scmp.eq.s32.totalorder %s21, 1
    %p86 = por %p84, %p85
    %p88 = scmp.ne.s32.totalorder %s73, %s87
    %p89 = scmp.eq.s32.totalorder %s21, 0
    %p90 = por %p88, %p89
    %s92 = sadd.s32 %s91, 1
    %p95 = scmp.eq.s32.totalorder %s15, 1
    %p96 = scmp.ne.s32.totalorder %s91, %s93
    %p97 = scmp.eq.s32.totalorder %s15, 0
    %p98 = por %p96, %p97
    %p99 = scmp.ne.s32.totalorder %s91, %s93
    %p100 = scmp.eq.s32.totalorder %s20, 1
    %p101 = por %p99, %p100
    %p102 = scmp.ne.s32.totalorder %s93, %s94
    %p103 = scmp.eq.s32.totalorder %s20, 0
    %p104 = por %p102, %p103
    %p105 = scmp.ne.s32.totalorder %s93, %s94
    %p106 = scmp.eq.s32.totalorder %s21, 1
    %p107 = por %p105, %p106
    %p109 = scmp.ne.s32.totalorder %s94, %s108
    %p110 = scmp.eq.s32.totalorder %s21, 0
    %p111 = por %p109, %p110
    %s113 = sadd.s32 %s112, 1
    %p116 = scmp.eq.s32.totalorder %s15, 1
    %p117 = scmp.ne.s32.totalorder %s112, %s114
    %p118 = scmp.eq.s32.totalorder %s15, 0
    %p119 = por %p117, %p118
    %p120 = scmp.ne.s32.totalorder %s112, %s114
    %p121 = scmp.eq.s32.totalorder %s20, 1
    %p122 = por %p120, %p121
    %p123 = scmp.ne.s32.totalorder %s114, %s115
    %p124 = scmp.eq.s32.totalorder %s20, 0
    %p125 = por %p123, %p124
    %p126 = scmp.ne.s32.totalorder %s114, %s115
    %p127 = scmp.eq.s32.totalorder %s21, 1
    %p128 = por %p126, %p127
    %p130 = scmp.ne.s32.totalorder %s115, %s129
    %p131 = scmp.eq.s32.totalorder %s21, 0
    %p132 = por %p130, %p131
    %s134 = sadd.s32 %s133, 1
    %p137 = scmp.eq.s32.totalorder %s15, 1
    %p138 = scmp.ne.s32.totalorder %s133, %s135
    %p139 = scmp.eq.s32.totalorder %s15, 0
    %p140 = por %p138, %p139
    %p141 = scmp.ne.s32.totalorder %s133, %s135
    %p142 = scmp.eq.s32.totalorder %s20, 1
    %p143 = por %p141, %p142
    %p144 = scmp.ne.s32.totalorder %s135, %s136
    %p145 = scmp.eq.s32.totalorder %s20, 0
    %p146 = por %p144, %p145
    %p147 = scmp.ne.s32.totalorder %s135, %s136
    %p148 = scmp.eq.s32.totalorder %s21, 1
    %p149 = por %p147, %p148
    %p151 = scmp.ne.s32.totalorder %s136, %s150
    %p152 = scmp.eq.s32.totalorder %s21, 0
    %p153 = por %p151, %p152
    %s154 = ssub.s32 %s15, %s22
    %p155 = scmp.eq.s32.totalorder %s154, 0
    %s157 = sadd.s32 %s156, 1
    %s158 = scalar_select %p155, %s156, %s157
    %p161 = pneg %p155
    %p162 = scmp.eq.s32.totalorder %s15, 1
    %p163 = por %p161, %p162
    %p164 = scmp.ne.s32.totalorder %s156, %s159
    %p165 = scmp.eq.s32.totalorder %s15, 0
    %p166 = por %p164, %p165
    %p167 = scmp.ne.s32.totalorder %s156, %s159
    %p168 = scmp.eq.s32.totalorder %s20, 1
    %p169 = por %p167, %p168
    %p170 = scmp.ne.s32.totalorder %s159, %s160
    %p171 = scmp.eq.s32.totalorder %s20, 0
    %p172 = por %p170, %p171
    %p173 = scmp.ne.s32.totalorder %s159, %s160
    %p174 = scmp.eq.s32.totalorder %s21, 1
    %p175 = por %p173, %p174
    %p177 = scmp.ne.s32.totalorder %s160, %s176
    %p178 = scmp.eq.s32.totalorder %s21, 0
    %p179 = por %p177, %p178
    %s180 = ssub.s32 %s15, %s22
    %p181 = scmp.eq.s32.totalorder %s180, 0
    %s183 = sadd.s32 %s182, 1
    %s184 = scalar_select %p181, %s182, %s183
    %p187 = pneg %p181
    %p188 = scmp.eq.s32.totalorder %s15, 1
    %p189 = por %p187, %p188
    %p190 = scmp.ne.s32.totalorder %s182, %s185
    %p191 = scmp.eq.s32.totalorder %s15, 0
    %p192 = por %p190, %p191
    %p193 = scmp.ne.s32.totalorder %s182, %s185
    %p194 = scmp.eq.s32.totalorder %s20, 1
    %p195 = por %p193, %p194
    %p196 = scmp.ne.s32.totalorder %s185, %s186
    %p197 = scmp.eq.s32.totalorder %s20, 0
    %p198 = por %p196, %p197
    %p199 = scmp.ne.s32.totalorder %s185, %s186
    %p200 = scmp.eq.s32.totalorder %s21, 1
    %p201 = por %p199, %p200
    %p203 = scmp.ne.s32.totalorder %s186, %s202
    %p204 = scmp.eq.s32.totalorder %s21, 0
    %p205 = por %p203, %p204
    %s206 = ssub.s32 %s15, %s22
    %p207 = scmp.eq.s32.totalorder %s206, 0
    %s209 = sadd.s32 %s208, 1
    %s210 = scalar_select %p207, %s208, %s209
    %p213 = pneg %p207
    %p214 = scmp.eq.s32.totalorder %s15, 1
    %p215 = por %p213, %p214
    %p216 = scmp.ne.s32.totalorder %s208, %s211
    %p217 = scmp.eq.s32.totalorder %s15, 0
    %p218 = por %p216, %p217
    %p219 = scmp.ne.s32.totalorder %s208, %s211
    %p220 = scmp.eq.s32.totalorder %s20, 1
    %p221 = por %p219, %p220
    %p222 = scmp.ne.s32.totalorder %s211, %s212
    %p223 = scmp.eq.s32.totalorder %s20, 0
    %p224 = por %p222, %p223
    %p225 = scmp.ne.s32.totalorder %s211, %s212
    %p226 = scmp.eq.s32.totalorder %s21, 1
    %p227 = por %p225, %p226
    %p229 = scmp.ne.s32.totalorder %s212, %s228
    %p230 = scmp.eq.s32.totalorder %s21, 0
    %p231 = por %p229, %p230
    %p232 = scmp.le.s32.totalorder 1, %s15
    %p233 = scmp.lt.s32.totalorder %s15, 3
    %p234 = pnand %p232, %p233
    %p235 = pneg %p234
    // Predicated region
    $region9: #{tst_encoder_layer.3} parent=5 // pred_check
      _
    $region10: #{tst_encoder_layer.3} parent=5 // pred_check_branch
      %237 = sbr.rel (%p234) target = $region12
    $region11: #{tst_encoder_layer.3} parent=5 // pred_region
      %s238 = ssub.s32 %s15, 1
      // Predicated region
      $region13: #{tst_encoder_layer.3} parent=11 // pred_check
        %p239 = pneg %p62
      $region14: #{tst_encoder_layer.3} parent=11 // pred_check_branch
        %241 = sbr.rel (%p239) target = $region16
      $region15: #{tst_encoder_layer.3} parent=11 // pred_region
        _
      $region16: #{tst_encoder_layer.3} parent=11 // pred_fallthru
        _
      // Predicated region
      $region17: #{tst_encoder_layer.3} parent=11 // pred_check
        %p242 = pneg %p83
      $region18: #{tst_encoder_layer.3} parent=11 // pred_check_branch
        %244 = sbr.rel (%p242) target = $region20
      $region19: #{tst_encoder_layer.3} parent=11 // pred_region
        _
      $region20: #{tst_encoder_layer.3} parent=11 // pred_fallthru
        _
      // Predicated region
      $region21: #{tst_encoder_layer.3} parent=11 // pred_check
        %p245 = pneg %p104
      $region22: #{tst_encoder_layer.3} parent=11 // pred_check_branch
        %247 = sbr.rel (%p245) target = $region24
      $region23: #{tst_encoder_layer.3} parent=11 // pred_region
        _
      $region24: #{tst_encoder_layer.3} parent=11 // pred_fallthru
        _
      // Predicated region
      $region25: #{tst_encoder_layer.3} parent=11 // pred_check
        %p248 = pneg %p125
      $region26: #{tst_encoder_layer.3} parent=11 // pred_check_branch
        %250 = sbr.rel (%p248) target = $region28
      $region27: #{tst_encoder_layer.3} parent=11 // pred_region
        _
      $region28: #{tst_encoder_layer.3} parent=11 // pred_fallthru
        _
      // Predicated region
      $region29: #{tst_encoder_layer.3} parent=11 // pred_check
        %p251 = pneg %p146
      $region30: #{tst_encoder_layer.3} parent=11 // pred_check_branch
        %253 = sbr.rel (%p251) target = $region32
      $region31: #{tst_encoder_layer.3} parent=11 // pred_region
        _
      $region32: #{tst_encoder_layer.3} parent=11 // pred_fallthru
        _
    $region12: #{tst_encoder_layer.3} parent=5 // pred_fallthru
      _
    %p254 = scmp.lt.s32.totalorder %s15, 2
    // Predicated region
    $region33: #{tst_encoder_layer.3} parent=5 // pred_check
      %p255 = pneg %p254
    $region34: #{tst_encoder_layer.3} parent=5 // pred_check_branch
      %257 = sbr.rel (%p255) target = $region36
    $region35: #{tst_encoder_layer.3} parent=5 // pred_region
      // Predicated region
      $region37: #{tst_encoder_layer.3} parent=35 // pred_check
        %p258 = pneg %p35
      $region38: #{tst_encoder_layer.3} parent=35 // pred_check_branch
        %260 = sbr.rel (%p258) target = $region40
      $region39: #{tst_encoder_layer.3} parent=35 // pred_region
        %s261 = smul.u32 4, %s15
        %p262 = scmp.lt.s32.totalorder %s261, 7
        %s263 = scalar_select %p262, %s261, 7
        %s264 = smul.addr %s263, 8
        %s265 = scalar_lea.vmem %s0, %s264
        %s266 = smul.u32 4, %s15
      $region40: #{tst_encoder_layer.3} parent=35 // pred_fallthru
        _
    $region36: #{tst_encoder_layer.3} parent=5 // pred_fallthru
      _
    %p267 = scmp.le.s32.totalorder 1, %s15
    %p268 = scmp.lt.s32.totalorder %s15, 3
    %p269 = pnand %p267, %p268
    %p270 = pneg %p269
    // Predicated region
    $region41: #{tst_encoder_layer.3} parent=5 // pred_check
      _
    $region42: #{tst_encoder_layer.3} parent=5 // pred_check_branch
      %272 = sbr.rel (%p269) target = $region44
    $region43: #{tst_encoder_layer.3} parent=5 // pred_region
      %s273 = ssub.s32 %s15, 1
      %s274 = smul.u32 4, %s20
      %p275 = scmp.lt.s32.totalorder %s274, 7
      %s276 = scalar_select %p275, %s274, 7
      %s277 = smul.addr %s276, 8
      %s278 = scalar_lea.vmem %s0, %s277
      %p279 = pneg %p41
      %p280 = pneg %p38
      %p281 = pneg %p62
      %p282 = pneg %p59
      %p283 = pneg %p83
      %p284 = pneg %p80
      %p285 = pneg %p104
      %p286 = pneg %p101
      %p287 = pneg %p125
      %p288 = pneg %p122
      %p289 = pneg %p146
      %p290 = pneg %p143
      %p291 = pneg %p172
      %p292 = pneg %p169
      %s293 = smul.u32 4, %s20
      %p294 = scmp.lt.s32.totalorder %s293, 7
      %s295 = scalar_select %p294, %s293, 7
      %s296 = smul.addr %s295, 8
      %s297 = scalar_lea.vmem %s6, %s296
      %p298 = pneg %p198
      %p299 = pneg %p195
      %p300 = scmp.lt.s32.totalorder %s20, 1
      %s301 = scalar_select %p300, %s20, 1
      %s302 = scalar_lea.vmem %s7, %s301
      %p303 = pneg %p224
      %p304 = pneg %p221
      %p305 = scmp.lt.s32.totalorder %s20, 1
      %s306 = scalar_select %p305, %s20, 1
      %s307 = scalar_lea.vmem %s8, %s306
      %s308 = smul.u32 4, %s20
      %p309 = scmp.lt.s32.totalorder %s308, 7
      %s310 = scalar_select %p309, %s308, 7
      %s311 = smul.addr %s310, 8
      %s312 = scalar_lea.vmem %s0, %s311
      %s313 = smul.u32 4, %s20
      %s314 = smul.u32 4, %s20
      %p315 = scmp.lt.s32.totalorder %s314, 7
      %s316 = scalar_select %p315, %s314, 7
      %s317 = smul.addr %s316, 8
      %s318 = scalar_lea.vmem %s6, %s317
      %s319 = smul.u32 4, %s20
      %p320 = scmp.lt.s32.totalorder %s20, 1
      %s321 = scalar_select %p320, %s20, 1
      %s322 = scalar_lea.vmem %s7, %s321
      %p323 = scmp.lt.s32.totalorder %s20, 1
      %s324 = scalar_select %p323, %s20, 1
      %s325 = scalar_lea.vmem %s8, %s324
      %v327 = vld [vmem:[%s312] sm:$0xff]
      %v328 = vld [vmem:[%s312 + $0x8] sm:$0xff]
      %v329 = vld [vmem:[%s312 + $0x10] sm:$0xff]
      %v330 = vld [vmem:[%s312 + $0x18] sm:$0xff]
      %v331 = vpack.c.bf16 %v328, %v327
      %v332 = vpack.c.bf16 %v330, %v329
      %v333 = vld [vmem:[%s2] sm:$0xff]
      %v334 = vld [vmem:[%s2 + $0x8] sm:$0xf]
      %v335 = vld [vmem:[%s2 + $0xc] sm:$0xff]
      %v336 = vld [vmem:[%s2 + $0x14] sm:$0xf]
      %v337 = vld [vmem:[%s2 + $0x18] sm:$0xff]
      %v338 = vld [vmem:[%s2 + $0x20] sm:$0xf]
      %v339 = vld [vmem:[%s2 + $0x24] sm:$0xff]
      %v340 = vld [vmem:[%s2 + $0x2c] sm:$0xf]
      %v341 = vld [vmem:[%s2 + $0x30] sm:$0xff]
      %v342 = vld [vmem:[%s2 + $0x38] sm:$0xf]
      %v343 = vld [vmem:[%s2 + $0x3c] sm:$0xff]
      %v344 = vld [vmem:[%s2 + $0x44] sm:$0xf]
      %v345 = vld [vmem:[%s2 + $0x48] sm:$0xff]
      %v346 = vld [vmem:[%s2 + $0x50] sm:$0xf]
      %v347 = vld [vmem:[%s2 + $0x54] sm:$0xff]
      %v348 = vld [vmem:[%s2 + $0x5c] sm:$0xf]
      %v349 = vld [vmem:[%s2 + $0x60] sm:$0xff]
      %v350 = vld [vmem:[%s2 + $0x68] sm:$0xf]
      %v351 = vld [vmem:[%s2 + $0x6c] sm:$0xff]
      %v352 = vld [vmem:[%s2 + $0x74] sm:$0xf]
      %v353 = vld [vmem:[%s2 + $0x78] sm:$0xff]
      %v354 = vld [vmem:[%s2 + $0x80] sm:$0xf]
      %v355 = vld [vmem:[%s2 + $0x84] sm:$0xff]
      %v356 = vld [vmem:[%s2 + $0x8c] sm:$0xf]
      %v357 = vld [vmem:[%s2 + $0x90] sm:$0xff]
      %v358 = vld [vmem:[%s2 + $0x98] sm:$0xf]
      %v359 = vld [vmem:[%s2 + $0x9c] sm:$0xff]
      %v360 = vld [vmem:[%s2 + $0xa4] sm:$0xf]
      %v361 = vld [vmem:[%s2 + $0xa8] sm:$0xff]
      %v362 = vld [vmem:[%s2 + $0xb0] sm:$0xf]
      %v363 = vld [vmem:[%s2 + $0xb4] sm:$0xff]
      %v364 = vld [vmem:[%s2 + $0xbc] sm:$0xf]
      %v365 = vld [vmem:[%s3] sm:$0x7]
      %v367 = vlaneseq
      %v368 = vshrl.u32 %v367, 7
      %v369 = vsub.s32 0, %v368
      %v370 = vrot.slane %v365, %v369
      %v371 = vlaneseq
      %v372 = vshrl.u32 %v371, 7
      %v373 = vsub.s32 1, %v372
      %v374 = vrot.slane %v365, %v373
      %v375 = vlaneseq
      %v376 = vshrl.u32 %v375, 7
      %v377 = vsub.s32 2, %v376
      %v378 = vrot.slane %v365, %v377
      %v414 = vunpack.c.l.b16 %v333
      %v415 = vunpack.c.h.b16 %v333
      %v416 = vunpack.c.l.b16 %v334
      %v417 = vunpack.c.l.b16 %v335
      %v418 = vunpack.c.h.b16 %v335
      %v419 = vunpack.c.l.b16 %v336
      %v420 = vunpack.c.l.b16 %v337
      %v421 = vunpack.c.h.b16 %v337
      %v422 = vunpack.c.l.b16 %v338
      %v423 = vunpack.c.l.b16 %v339
      %v424 = vunpack.c.h.b16 %v339
      %v425 = vunpack.c.l.b16 %v340
      %v426 = vunpack.c.l.b16 %v341
      %v427 = vunpack.c.h.b16 %v341
      %v428 = vunpack.c.l.b16 %v342
      %v429 = vunpack.c.l.b16 %v343
      %v430 = vunpack.c.h.b16 %v343
      %v431 = vunpack.c.l.b16 %v344
      %v432 = vunpack.c.l.b16 %v345
      %v433 = vunpack.c.h.b16 %v345
      %v434 = vunpack.c.l.b16 %v346
      %v435 = vunpack.c.l.b16 %v347
      %v436 = vunpack.c.h.b16 %v347
      %v437 = vunpack.c.l.b16 %v348
      %v438 = vunpack.c.l.b16 %v349
      %v439 = vunpack.c.h.b16 %v349
      %v440 = vunpack.c.l.b16 %v350
      %v441 = vunpack.c.l.b16 %v351
      %v442 = vunpack.c.h.b16 %v351
      %v443 = vunpack.c.l.b16 %v352
      %v444 = vunpack.c.l.b16 %v353
      %v445 = vunpack.c.h.b16 %v353
      %v446 = vunpack.c.l.b16 %v354
      %v447 = vunpack.c.l.b16 %v355
      %v448 = vunpack.c.h.b16 %v355
      %v449 = vunpack.c.l.b16 %v356
      %v450 = vunpack.c.l.b16 %v357
      %v451 = vunpack.c.h.b16 %v357
      %v452 = vunpack.c.l.b16 %v358
      %v453 = vunpack.c.l.b16 %v359
      %v454 = vunpack.c.h.b16 %v359
      %v455 = vunpack.c.l.b16 %v360
      %v456 = vunpack.c.l.b16 %v361
      %v457 = vunpack.c.h.b16 %v361
      %v458 = vunpack.c.l.b16 %v362
      %v459 = vunpack.c.l.b16 %v363
      %v460 = vunpack.c.h.b16 %v363
      %v461 = vunpack.c.l.b16 %v364
      %v462 = vpack.c.b16 %v417, %v414
      %v463 = vpack.c.b16 %v418, %v415
      %v464 = vpack.c.b16 %v419, %v416
      %v465 = vpack.c.b16 %v423, %v420
      %v466 = vpack.c.b16 %v424, %v421
      %v467 = vpack.c.b16 %v425, %v422
      %v468 = vpack.c.b16 %v429, %v426
      %v469 = vpack.c.b16 %v430, %v427
      %v470 = vpack.c.b16 %v431, %v428
      %v471 = vpack.c.b16 %v435, %v432
      %v472 = vpack.c.b16 %v436, %v433
      %v473 = vpack.c.b16 %v437, %v434
      %v474 = vpack.c.b16 %v441, %v438
      %v475 = vpack.c.b16 %v442, %v439
      %v476 = vpack.c.b16 %v443, %v440
      %v477 = vpack.c.b16 %v447, %v444
      %v478 = vpack.c.b16 %v448, %v445
      %v479 = vpack.c.b16 %v449, %v446
      %v480 = vpack.c.b16 %v453, %v450
      %v481 = vpack.c.b16 %v454, %v451
      %v482 = vpack.c.b16 %v455, %v452
      %v483 = vpack.c.b16 %v459, %v456
      %v484 = vpack.c.b16 %v460, %v457
      %v485 = vpack.c.b16 %v461, %v458
      %510 = vmatprep.subr.bf16.mxu0 %v463
      %511 = vmatpush1.bf16.msra.mxu0 %v462
      %512 = vmatprep.subr.bf16.mxu0 %v466
      %513 = vmatpush1.bf16.msra.mxu0 %v465
      %514 = vmatprep.subr.bf16.mxu0 %v469
      %515 = vmatpush1.bf16.msra.mxu0 %v468
      %516 = vmatprep.subr.bf16.mxu0 %v472
      %517 = vmatpush1.bf16.msra.mxu0 %v471
      %518 = vmatprep.subr.bf16.mxu0 %v475
      %519 = vmatpush1.bf16.msra.mxu0 %v474
      %520 = vmatprep.subr.bf16.mxu0 %v478
      %521 = vmatpush1.bf16.msra.mxu0 %v477
      %522 = vmatprep.subr.bf16.mxu0 %v481
      %523 = vmatpush1.bf16.msra.mxu0 %v480
      %524 = vmatprep.subr.bf16.mxu0 %v484
      %525 = vmatpush1.bf16.msra.mxu0 %v483
      %526 = vmatprep.subr.bf16.mxu0 0
      %527 = vmatpush1.bf16.msra.mxu0 0
      %528 = vmatprep.subr.bf16.mxu0 0
      %529 = vmatpush1.bf16.msra.mxu0 0
      %530 = vmatprep.subr.bf16.mxu0 0
      %531 = vmatpush1.bf16.msra.mxu0 0
      %532 = vmatprep.subr.bf16.mxu0 0
      %533 = vmatpush1.bf16.msra.mxu0 0
      %534 = vmatprep.subr.bf16.mxu0 0
      %535 = vmatpush1.bf16.msra.mxu0 0
      %536 = vmatprep.subr.bf16.mxu0 0
      %537 = vmatpush1.bf16.msra.mxu0 0
      %538 = vmatprep.subr.bf16.mxu0 0
      %539 = vmatpush1.bf16.msra.mxu0 0
      %540 = vmatprep.subr.bf16.mxu0 0
      %541 = vmatpush1.bf16.msra.mxu0 0
      %542 = vmatprep.mubr.bf16.mxu0 0
      %543 = vmatmul.mubr.bf16.gmra.mrb[0].mxu0 %v331
      %v544 = vpop.f32.mrb[0].mxu0
      %v545 = vadd.f32 %v370, %v544
      %v546 = vpop.f32.mrb[0].mxu0
      %v547 = vadd.f32 %v374, %v546
      %v548 = vpop.f32.mrb[0].mxu0
      %v549 = vadd.f32 %v370, %v548
      %v550 = vpop.f32.mrb[0].mxu0
      %v551 = vadd.f32 %v374, %v550
      %552 = vmatprep.mubr.bf16.mxu0 0
      %553 = vmatmul.mubr.bf16.gmra.mrb[0].mxu0 %v332
      %v554 = vpop.f32.mrb[0].mxu0
      %v555 = vadd.f32 %v370, %v554
      %v556 = vpop.f32.mrb[0].mxu0
      %v557 = vadd.f32 %v374, %v556
      %v558 = vpop.f32.mrb[0].mxu0
      %v559 = vadd.f32 %v370, %v558
      %v560 = vpop.f32.mrb[0].mxu0
      %v561 = vadd.f32 %v374, %v560
      %562 = vdwg.mxu0
      %563 = vmatprep.subr.bf16.mxu0 0
      %564 = vmatpush1.bf16.msra.mxu0 %v464
      %565 = vmatprep.subr.bf16.mxu0 0
      %566 = vmatpush1.bf16.msra.mxu0 %v467
      %567 = vmatprep.subr.bf16.mxu0 0
      %568 = vmatpush1.bf16.msra.mxu0 %v470
      %569 = vmatprep.subr.bf16.mxu0 0
      %570 = vmatpush1.bf16.msra.mxu0 %v473
      %571 = vmatprep.subr.bf16.mxu0 0
      %572 = vmatpush1.bf16.msra.mxu0 %v476
      %573 = vmatprep.subr.bf16.mxu0 0
      %574 = vmatpush1.bf16.msra.mxu0 %v479
      %575 = vmatprep.subr.bf16.mxu0 0
      %576 = vmatpush1.bf16.msra.mxu0 %v482
      %577 = vmatprep.subr.bf16.mxu0 0
      %578 = vmatpush1.bf16.msra.mxu0 %v485
      %579 = vmatprep.subr.bf16.mxu0 0
      %580 = vmatpush1.bf16.msra.mxu0 0
      %581 = vmatprep.subr.bf16.mxu0 0
      %582 = vmatpush1.bf16.msra.mxu0 0
      %583 = vmatprep.subr.bf16.mxu0 0
      %584 = vmatpush1.bf16.msra.mxu0 0
      %585 = vmatprep.subr.bf16.mxu0 0
      %586 = vmatpush1.bf16.msra.mxu0 0
      %587 = vmatprep.subr.bf16.mxu0 0
      %588 = vmatpush1.bf16.msra.mxu0 0
      %589 = vmatprep.subr.bf16.mxu0 0
      %590 = vmatpush1.bf16.msra.mxu0 0
      %591 = vmatprep.subr.bf16.mxu0 0
      %592 = vmatpush1.bf16.msra.mxu0 0
      %593 = vmatprep.subr.bf16.mxu0 0
      %594 = vmatpush1.bf16.msra.mxu0 0
      %595 = vmatprep.mubr.bf16.mxu0 0
      %596 = vmatmul.mubr.bf16.gmra.mrb[0].mxu0 %v331
      %v597 = vpop.f32.mrb[0].mxu0
      %v598 = vadd.f32 %v378, %v597
      %v599 = vpop.f32.mrb[0].mxu0
      %v600 = vpop.f32.mrb[0].mxu0
      %v601 = vadd.f32 %v378, %v600
      %v602 = vpop.f32.mrb[0].mxu0
      %603 = vmatprep.mubr.bf16.mxu0 0
      %604 = vmatmul.mubr.bf16.gmra.mrb[0].mxu0 %v332
      %v605 = vpop.f32.mrb[0].mxu0
      %v606 = vadd.f32 %v378, %v605
      %v607 = vpop.f32.mrb[0].mxu0
      %v608 = vpop.f32.mrb[0].mxu0
      %v609 = vadd.f32 %v378, %v608
      %v610 = vpop.f32.mrb[0].mxu0
      %611 = vdwg.mxu0
      %v612 = vpack.c.bf16 %v549, %v545
      %v613 = vpack.c.bf16 %v551, %v547
      %v614 = vpack.c.bf16 %v601, %v598
      %v615 = vpack.c.bf16 %v559, %v555
      %v616 = vpack.c.bf16 %v561, %v557
      %v617 = vpack.c.bf16 %v609, %v606
      %618 = vst [vmem:[#allocation2] sm:$0xff] %v612
      %619 = vst [vmem:[#allocation2 + $0x8] sm:$0xff] %v613
      %620 = vst [vmem:[#allocation2 + $0x10] sm:$0xff] %v614
      %621 = vst [vmem:[#allocation2 + $0x18] sm:$0xff] %v615
      %622 = vst [vmem:[#allocation2 + $0x20] sm:$0xff] %v616
      %623 = vst [vmem:[#allocation2 + $0x28] sm:$0xff] %v617
      %624 = vst [vmem:[#allocation3] sm:$0xff] 0
      %625 = vst [vmem:[#allocation3 + $0x8] sm:$0xff] 0
      %v626 = vld [vmem:[#allocation2] sm:$0xff]
      %v627 = vld [vmem:[#allocation2 + $0x18] sm:$0xff]
      %v628 = vld [vmem:[#allocation2 + $0x8] sm:$0xff]
      %v629 = vld [vmem:[#allocation2 + $0x20] sm:$0xff]
      %v630 = vld [vmem:[#allocation2 + $0x10] sm:$0xff]
      %v631 = vld [vmem:[#allocation2 + $0x28] sm:$0xff]
      %v632 = vld [vmem:[%s1] sm:$0xff]
      %v633 = vld [vmem:[%s1 + $0x8] sm:$0xff]
      %v634 = vld [vmem:[%s1 + $0x10] sm:$0xff]
      %v635 = vld [vmem:[%s1 + $0x18] sm:$0xff]
      %vm636 = vcmask 64512
      %v638 = vsel %vm636, %v626, 0
      %v641 = vsel %vm636, %v627, 0
      %v644 = vsel %vm636, %v628, 0
      %v647 = vsel %vm636, %v629, 0
      %649 = vmatprep.subr.bf16.mxu0 0
      %650 = vmatpush1.bf16.xpose.msra.mxu0 %v644
      %651 = vmatprep.subr.bf16.mxu0 0
      %652 = vmatpush1.bf16.xpose.msra.mxu0 %v647
      %653 = vmatprep.subr.bf16.mxu0 0
      %654 = vmatpush1.bf16.xpose.msra.mxu0 0
      %655 = vmatprep.subr.bf16.mxu0 0
      %656 = vmatpush1.bf16.xpose.msra.mxu0 0
      %657 = vmatprep.subr.bf16.mxu0 0
      %658 = vmatpush1.bf16.xpose.msra.mxu0 0
      %659 = vmatprep.subr.bf16.mxu0 0
      %660 = vmatpush1.bf16.xpose.msra.mxu0 0
      %661 = vmatprep.subr.bf16.mxu0 0
      %662 = vmatpush1.bf16.xpose.msra.mxu0 0
      %663 = vmatprep.subr.bf16.mxu0 0
      %664 = vmatpush1.bf16.xpose.msra.mxu0 0
      %665 = vmatprep.subr.bf16.mxu0 0
      %666 = vmatpush1.bf16.xpose.msra.mxu0 0
      %667 = vmatprep.subr.bf16.mxu0 0
      %668 = vmatpush1.bf16.xpose.msra.mxu0 0
      %669 = vmatprep.subr.bf16.mxu0 0
      %670 = vmatpush1.bf16.xpose.msra.mxu0 0
      %671 = vmatprep.subr.bf16.mxu0 0
      %672 = vmatpush1.bf16.xpose.msra.mxu0 0
      %673 = vmatprep.subr.bf16.mxu0 0
      %674 = vmatpush1.bf16.xpose.msra.mxu0 0
      %675 = vmatprep.subr.bf16.mxu0 0
      %676 = vmatpush1.bf16.xpose.msra.mxu0 0
      %677 = vmatprep.subr.bf16.mxu0 0
      %678 = vmatpush1.bf16.xpose.msra.mxu0 0
      %679 = vmatprep.subr.bf16.mxu0 0
      %680 = vmatpush1.bf16.xpose.msra.mxu0 0
      %681 = vmatprep.mubr.bf16.mxu0 0
      %682 = vmatmul.mubr.bf16.gmra.mrb[0].mxu0 %v638
      %v683 = vpop.f32.mrb[0].mxu0
      %v684 = vadd.f32 %v632, %v683
      %v685 = vpop.f32.mrb[0].mxu0
      %v686 = vpop.f32.mrb[0].mxu0
      %v687 = vadd.f32 %v633, %v686
      %v688 = vpop.f32.mrb[0].mxu0
      %689 = vmatprep.mubr.bf16.mxu0 0
      %690 = vmatmul.mubr.bf16.gmra.mrb[0].mxu0 %v641
      %v691 = vpop.f32.mrb[0].mxu0
      %v692 = vadd.f32 %v634, %v691
      %v693 = vpop.f32.mrb[0].mxu0
      %v694 = vpop.f32.mrb[0].mxu0
      %v695 = vadd.f32 %v635, %v694
      %v696 = vpop.f32.mrb[0].mxu0
      %697 = vdwg.mxu0
      %vm698 = vcmask 261120
      %v699 = vsel %vm698, %v684, -inf
      %700 = vmax.xlane.f32.xlu0 %v699
      %v701 = vpop.xlane.xlu0 %700
      %v702 = vsel %vm698, %v687, -inf
      %703 = vmax.xlane.f32.xlu0 %v702
      %v704 = vpop.xlane.xlu0 %703
      %v705 = vsel %vm698, %v692, -inf
      %706 = vmax.xlane.f32.xlu0 %v705
      %v707 = vpop.xlane.xlu0 %706
      %v708 = vsel %vm698, %v695, -inf
      %709 = vmax.xlane.f32.xlu0 %v708
      %v710 = vpop.xlane.xlu0 %709
      %v711 = vsub.f32 %v684, %v701
      %v712 = vsub.f32 %v687, %v704
      %v713 = vsub.f32 %v692, %v707
      %v714 = vsub.f32 %v695, %v710
      %v715 = vmul.f32 %v711, 1.442695
      %v716 = vpow.pop %v715
      %v717 = vmul.f32 %v712, 1.442695
      %v718 = vpow.pop %v717
      %v719 = vmul.f32 %v713, 1.442695
      %v720 = vpow.pop %v719
      %v721 = vmul.f32 %v714, 1.442695
      %v722 = vpow.pop %v721
      %v723 = vsel %vm698, %v716, 0.0
      %724 = vadd.xlane.f32.xlu0 %v723
      %v725 = vpop.xlane.xlu0 %724
      %v726 = vsel %vm698, %v718, 0.0
      %727 = vadd.xlane.f32.xlu0 %v726
      %v728 = vpop.xlane.xlu0 %727
      %v729 = vsel %vm698, %v720, 0.0
      %730 = vadd.xlane.f32.xlu0 %v729
      %v731 = vpop.xlane.xlu0 %730
      %v732 = vsel %vm698, %v722, 0.0
      %733 = vadd.xlane.f32.xlu0 %v732
      %v734 = vpop.xlane.xlu0 %733
      %v735 = vrcp.pop %v725
      %v736 = vrcp.pop %v728
      %v737 = vrcp.pop %v731
      %v738 = vrcp.pop %v734
      %v739 = vmul.f32 %v725, %v735
      %v740 = vmul.f32 %v728, %v736
      %v741 = vmul.f32 %v731, %v737
      %v742 = vmul.f32 %v734, %v738
      %v743 = vsub.f32 2.0, %v739
      %v744 = vsub.f32 2.0, %v740
      %v745 = vsub.f32 2.0, %v741
      %v746 = vsub.f32 2.0, %v742
      %v747 = vmul.f32 %v735, %v743
      %v748 = vmul.f32 %v736, %v744
      %v749 = vmul.f32 %v737, %v745
      %v750 = vmul.f32 %v738, %v746
      %v751 = vmul.f32 %v716, %v747
      %v752 = vmul.f32 %v718, %v748
      %v753 = vmul.f32 %v720, %v749
      %v754 = vmul.f32 %v722, %v750
      %v755 = vpack.c.bf16 %v752, %v751
      %v756 = vpack.c.bf16 %v754, %v753
      %v758 = vsel %vm698, %v755, 0
      %v761 = vsel %vm698, %v756, 0
      %763 = vmatprep.subr.bf16.mxu0 0
      %764 = vmatpush1.bf16.msra.mxu0 %v630
      %765 = vmatprep.subr.bf16.mxu0 0
      %766 = vmatpush1.bf16.msra.mxu0 %v631
      %767 = vmatprep.subr.bf16.mxu0 0
      %768 = vmatpush1.bf16.msra.mxu0 0
      %769 = vmatprep.subr.bf16.mxu0 0
      %770 = vmatpush1.bf16.msra.mxu0 0
      %771 = vmatprep.subr.bf16.mxu0 0
      %772 = vmatpush1.bf16.msra.mxu0 0
      %773 = vmatprep.subr.bf16.mxu0 0
      %774 = vmatpush1.bf16.msra.mxu0 0
      %775 = vmatprep.subr.bf16.mxu0 0
      %776 = vmatpush1.bf16.msra.mxu0 0
      %777 = vmatprep.subr.bf16.mxu0 0
      %778 = vmatpush1.bf16.msra.mxu0 0
      %779 = vmatprep.subr.bf16.mxu0 0
      %780 = vmatpush1.bf16.msra.mxu0 0
      %781 = vmatprep.subr.bf16.mxu0 0
      %782 = vmatpush1.bf16.msra.mxu0 0
      %783 = vmatprep.subr.bf16.mxu0 0
      %784 = vmatpush1.bf16.msra.mxu0 0
      %785 = vmatprep.subr.bf16.mxu0 0
      %786 = vmatpush1.bf16.msra.mxu0 0
      %787 = vmatprep.subr.bf16.mxu0 0
      %788 = vmatpush1.bf16.msra.mxu0 0
      %789 = vmatprep.subr.bf16.mxu0 0
      %790 = vmatpush1.bf16.msra.mxu0 0
      %791 = vmatprep.subr.bf16.mxu0 0
      %792 = vmatpush1.bf16.msra.mxu0 0
      %793 = vmatprep.subr.bf16.mxu0 0
      %794 = vmatpush1.bf16.msra.mxu0 0
      %795 = vmatprep.mubr.bf16.mxu0 0
      %796 = vmatmul.mubr.bf16.gmra.mrb[0].mxu0 %v758
      %v797 = vpop.f32.mrb[0].mxu0
      %v798 = vadd.f32 0.0, %v797
      %v799 = vpop.f32.mrb[0].mxu0
      %v800 = vpop.f32.mrb[0].mxu0
      %v801 = vadd.f32 0.0, %v800
      %v802 = vpop.f32.mrb[0].mxu0
      %803 = vmatprep.mubr.bf16.mxu0 0
      %804 = vmatmul.mubr.bf16.gmra.mrb[0].mxu0 %v761
      %v805 = vpop.f32.mrb[0].mxu0
      %v806 = vadd.f32 0.0, %v805
      %v807 = vpop.f32.mrb[0].mxu0
      %v808 = vpop.f32.mrb[0].mxu0
      %v809 = vadd.f32 0.0, %v808
      %v810 = vpop.f32.mrb[0].mxu0
      %811 = vdwg.mxu0
      %v812 = vpack.c.bf16 %v801, %v798
      %v813 = vpack.c.bf16 %v809, %v806
      %814 = vst.msk [vmem:[#allocation3] sm:$0xff] %vm636, %v812
      %815 = vst.msk [vmem:[#allocation3 + $0x8] sm:$0xff] %vm636, %v813
      %v816 = vld [vmem:[#allocation2] sm:$0xff]
      %v817 = vld [vmem:[#allocation2 + $0x18] sm:$0xff]
      %v818 = vld [vmem:[#allocation2 + $0x8] sm:$0xff]
      %v819 = vld [vmem:[#allocation2 + $0x20] sm:$0xff]
      %v820 = vld [vmem:[#allocation2 + $0x10] sm:$0xff]
      %v821 = vld [vmem:[#allocation2 + $0x28] sm:$0xff]
      %v822 = vld [vmem:[%s1] sm:$0xff]
      %v823 = vld [vmem:[%s1 + $0x8] sm:$0xff]
      %v824 = vld [vmem:[%s1 + $0x10] sm:$0xff]
      %v825 = vld [vmem:[%s1 + $0x18] sm:$0xff]
      %828 = vrot.lane.b32.xlu0 %v816, 120
      %v829 = vpop.permute.xlu0 %828
      %830 = vrot.lane.b32.xlu0 %v817, 120
      %v831 = vpop.permute.xlu0 %830
      %834 = vrot.lane.b32.xlu0 %v818, 120
      %v835 = vpop.permute.xlu0 %834
      %836 = vrot.lane.b32.xlu0 %v819, 120
      %v837 = vpop.permute.xlu0 %836
      %v839 = vsel %vm636, %v829, 0
      %v842 = vsel %vm636, %v831, 0
      %v845 = vsel %vm636, %v835, 0
      %v848 = vsel %vm636, %v837, 0
      %850 = vmatprep.subr.bf16.mxu0 0
      %851 = vmatpush1.bf16.xpose.msra.mxu0 %v845
      %852 = vmatprep.subr.bf16.mxu0 0
      %853 = vmatpush1.bf16.xpose.msra.mxu0 %v848
      %854 = vmatprep.subr.bf16.mxu0 0
      %855 = vmatpush1.bf16.xpose.msra.mxu0 0
      %856 = vmatprep.subr.bf16.mxu0 0
      %857 = vmatpush1.bf16.xpose.msra.mxu0 0
      %858 = vmatprep.subr.bf16.mxu0 0
      %859 = vmatpush1.bf16.xpose.msra.mxu0 0
      %860 = vmatprep.subr.bf16.mxu0 0
      %861 = vmatpush1.bf16.xpose.msra.mxu0 0
      %862 = vmatprep.subr.bf16.mxu0 0
      %863 = vmatpush1.bf16.xpose.msra.mxu0 0
      %864 = vmatprep.subr.bf16.mxu0 0
      %865 = vmatpush1.bf16.xpose.msra.mxu0 0
      %866 = vmatprep.subr.bf16.mxu0 0
      %867 = vmatpush1.bf16.xpose.msra.mxu0 0
      %868 = vmatprep.subr.bf16.mxu0 0
      %869 = vmatpush1.bf16.xpose.msra.mxu0 0
      %870 = vmatprep.subr.bf16.mxu0 0
      %871 = vmatpush1.bf16.xpose.msra.mxu0 0
      %872 = vmatprep.subr.bf16.mxu0 0
      %873 = vmatpush1.bf16.xpose.msra.mxu0 0
      %874 = vmatprep.subr.bf16.mxu0 0
      %875 = vmatpush1.bf16.xpose.msra.mxu0 0
      %876 = vmatprep.subr.bf16.mxu0 0
      %877 = vmatpush1.bf16.xpose.msra.mxu0 0
      %878 = vmatprep.subr.bf16.mxu0 0
      %879 = vmatpush1.bf16.xpose.msra.mxu0 0
      %880 = vmatprep.subr.bf16.mxu0 0
      %881 = vmatpush1.bf16.xpose.msra.mxu0 0
      %882 = vmatprep.mubr.bf16.mxu0 0
      %883 = vmatmul.mubr.bf16.gmra.mrb[0].mxu0 %v839
      %v884 = vpop.f32.mrb[0].mxu0
      %v885 = vadd.f32 %v822, %v884
      %v886 = vpop.f32.mrb[0].mxu0
      %v887 = vpop.f32.mrb[0].mxu0
      %v888 = vadd.f32 %v823, %v887
      %v889 = vpop.f32.mrb[0].mxu0
      %890 = vmatprep.mubr.bf16.mxu0 0
      %891 = vmatmul.mubr.bf16.gmra.mrb[0].mxu0 %v842
      %v892 = vpop.f32.mrb[0].mxu0
      %v893 = vadd.f32 %v824, %v892
      %v894 = vpop.f32.mrb[0].mxu0
      %v895 = vpop.f32.mrb[0].mxu0
      %v896 = vadd.f32 %v825, %v895
      %v897 = vpop.f32.mrb[0].mxu0
      %898 = vdwg.mxu0
      %v899 = vsel %vm698, %v885, -inf
      %900 = vmax.xlane.f32.xlu0 %v899
      %v901 = vpop.xlane.xlu0 %900
      %v902 = vsel %vm698, %v888, -inf
      %903 = vmax.xlane.f32.xlu0 %v902
      %v904 = vpop.xlane.xlu0 %903
      %v905 = vsel %vm698, %v893, -inf
      %906 = vmax.xlane.f32.xlu0 %v905
      %v907 = vpop.xlane.xlu0 %906
      %v908 = vsel %vm698, %v896, -inf
      %909 = vmax.xlane.f32.xlu0 %v908
      %v910 = vpop.xlane.xlu0 %909
      %v911 = vsub.f32 %v885, %v901
      %v912 = vsub.f32 %v888, %v904
      %v913 = vsub.f32 %v893, %v907
      %v914 = vsub.f32 %v896, %v910
      %v915 = vmul.f32 %v911, 1.442695
      %v916 = vpow.pop %v915
      %v917 = vmul.f32 %v912, 1.442695
      %v918 = vpow.pop %v917
      %v919 = vmul.f32 %v913, 1.442695
      %v920 = vpow.pop %v919
      %v921 = vmul.f32 %v914, 1.442695
      %v922 = vpow.pop %v921
      %v923 = vsel %vm698, %v916, 0.0
      %924 = vadd.xlane.f32.xlu0 %v923
      %v925 = vpop.xlane.xlu0 %924
      %v926 = vsel %vm698, %v918, 0.0
      %927 = vadd.xlane.f32.xlu0 %v926
      %v928 = vpop.xlane.xlu0 %927
      %v929 = vsel %vm698, %v920, 0.0
      %930 = vadd.xlane.f32.xlu0 %v929
      %v931 = vpop.xlane.xlu0 %930
      %v932 = vsel %vm698, %v922, 0.0
      %933 = vadd.xlane.f32.xlu0 %v932
      %v934 = vpop.xlane.xlu0 %933
      %v935 = vrcp.pop %v925
      %v936 = vrcp.pop %v928
      %v937 = vrcp.pop %v931
      %v938 = vrcp.pop %v934
      %v939 = vmul.f32 %v925, %v935
      %v940 = vmul.f32 %v928, %v936
      %v941 = vmul.f32 %v931, %v937
      %v942 = vmul.f32 %v934, %v938
      %v943 = vsub.f32 2.0, %v939
      %v944 = vsub.f32 2.0, %v940
      %v945 = vsub.f32 2.0, %v941
      %v946 = vsub.f32 2.0, %v942
      %v947 = vmul.f32 %v935, %v943
      %v948 = vmul.f32 %v936, %v944
      %v949 = vmul.f32 %v937, %v945
      %v950 = vmul.f32 %v938, %v946
      %v951 = vmul.f32 %v916, %v947
      %v952 = vmul.f32 %v918, %v948
      %v953 = vmul.f32 %v920, %v949
      %v954 = vmul.f32 %v922, %v950
      %v955 = vpack.c.bf16 %v952, %v951
      %v956 = vpack.c.bf16 %v954, %v953
      %959 = vrot.lane.b32.xlu0 %v820, 120
      %v960 = vpop.permute.xlu0 %959
      %961 = vrot.lane.b32.xlu0 %v821, 120
      %v962 = vpop.permute.xlu0 %961
      %v966 = vsel %vm698, %v955, 0
      %v969 = vsel %vm698, %v956, 0
      %971 = vmatprep.subr.bf16.mxu0 0
      %972 = vmatpush1.bf16.msra.mxu0 %v960
      %973 = vmatprep.subr.bf16.mxu0 0
      %974 = vmatpush1.bf16.msra.mxu0 %v962
      %975 = vmatprep.subr.bf16.mxu0 0
      %976 = vmatpush1.bf16.msra.mxu0 0
      %977 = vmatprep.subr.bf16.mxu0 0
      %978 = vmatpush1.bf16.msra.mxu0 0
      %979 = vmatprep.subr.bf16.mxu0 0
      %980 = vmatpush1.bf16.msra.mxu0 0
      %981 = vmatprep.subr.bf16.mxu0 0
      %982 = vmatpush1.bf16.msra.mxu0 0
      %983 = vmatprep.subr.bf16.mxu0 0
      %984 = vmatpush1.bf16.msra.mxu0 0
      %985 = vmatprep.subr.bf16.mxu0 0
      %986 = vmatpush1.bf16.msra.mxu0 0
      %987 = vmatprep.subr.bf16.mxu0 0
      %988 = vmatpush1.bf16.msra.mxu0 0
      %989 = vmatprep.subr.bf16.mxu0 0
      %990 = vmatpush1.bf16.msra.mxu0 0
      %991 = vmatprep.subr.bf16.mxu0 0
      %992 = vmatpush1.bf16.msra.mxu0 0
      %993 = vmatprep.subr.bf16.mxu0 0
      %994 = vmatpush1.bf16.msra.mxu0 0
      %995 = vmatprep.subr.bf16.mxu0 0
      %996 = vmatpush1.bf16.msra.mxu0 0
      %997 = vmatprep.subr.bf16.mxu0 0
      %998 = vmatpush1.bf16.msra.mxu0 0
      %999 = vmatprep.subr.bf16.mxu0 0
      %1000 = vmatpush1.bf16.msra.mxu0 0
      %1001 = vmatprep.subr.bf16.mxu0 0
      %1002 = vmatpush1.bf16.msra.mxu0 0
      %1003 = vmatprep.mubr.bf16.mxu0 0
      %1004 = vmatmul.mubr.bf16.gmra.mrb[0].mxu0 %v966
      %v1005 = vpop.f32.mrb[0].mxu0
      %v1006 = vadd.f32 0.0, %v1005
      %v1007 = vpop.f32.mrb[0].mxu0
      %v1008 = vpop.f32.mrb[0].mxu0
      %v1009 = vadd.f32 0.0, %v1008
      %v1010 = vpop.f32.mrb[0].mxu0
      %1011 = vmatprep.mubr.bf16.mxu0 0
      %1012 = vmatmul.mubr.bf16.gmra.mrb[0].mxu0 %v969
      %v1013 = vpop.f32.mrb[0].mxu0
      %v1014 = vadd.f32 0.0, %v1013
      %v1015 = vpop.f32.mrb[0].mxu0
      %v1016 = vpop.f32.mrb[0].mxu0
      %v1017 = vadd.f32 0.0, %v1016
      %v1018 = vpop.f32.mrb[0].mxu0
      %1019 = vdwg.mxu0
      %v1020 = vpack.c.bf16 %v1009, %v1006
      %v1021 = vpack.c.bf16 %v1017, %v1014
      %1024 = vrot.lane.b32.xlu0 %v1020, 8
      %v1025 = vpop.permute.xlu0 %1024
      %1026 = vrot.lane.b32.xlu0 %v1021, 8
      %v1027 = vpop.permute.xlu0 %1026
      %vm1030 = vcmask 130112
      %1031 = vst.msk [vmem:[#allocation3] sm:$0xff] %vm1030, %v1025
      %1032 = vst.msk [vmem:[#allocation3 + $0x8] sm:$0xff] %vm1030, %v1027
      %v1033 = vld [vmem:[#allocation2] sm:$0xff]
      %v1034 = vld [vmem:[#allocation2 + $0x18] sm:$0xff]
      %v1035 = vld [vmem:[#allocation2 + $0x8] sm:$0xff]
      %v1036 = vld [vmem:[#allocation2 + $0x20] sm:$0xff]
      %v1037 = vld [vmem:[#allocation2 + $0x10] sm:$0xff]
      %v1038 = vld [vmem:[#allocation2 + $0x28] sm:$0xff]
      %v1039 = vld [vmem:[%s1] sm:$0xff]
      %v1040 = vld [vmem:[%s1 + $0x8] sm:$0xff]
      %v1041 = vld [vmem:[%s1 + $0x10] sm:$0xff]
      %v1042 = vld [vmem:[%s1 + $0x18] sm:$0xff]
      %1045 = vrot.lane.b32.xlu0 %v1033, 112
      %v1046 = vpop.permute.xlu0 %1045
      %1047 = vrot.lane.b32.xlu0 %v1034, 112
      %v1048 = vpop.permute.xlu0 %1047
      %1051 = vrot.lane.b32.xlu0 %v1035, 112
      %v1052 = vpop.permute.xlu0 %1051
      %1053 = vrot.lane.b32.xlu0 %v1036, 112
      %v1054 = vpop.permute.xlu0 %1053
      %v1056 = vsel %vm636, %v1046, 0
      %v1059 = vsel %vm636, %v1048, 0
      %v1062 = vsel %vm636, %v1052, 0
      %v1065 = vsel %vm636, %v1054, 0
      %1067 = vmatprep.subr.bf16.mxu0 0
      %1068 = vmatpush1.bf16.xpose.msra.mxu0 %v1062
      %1069 = vmatprep.subr.bf16.mxu0 0
      %1070 = vmatpush1.bf16.xpose.msra.mxu0 %v1065
      %1071 = vmatprep.subr.bf16.mxu0 0
      %1072 = vmatpush1.bf16.xpose.msra.mxu0 0
      %1073 = vmatprep.subr.bf16.mxu0 0
      %1074 = vmatpush1.bf16.xpose.msra.mxu0 0
      %1075 = vmatprep.subr.bf16.mxu0 0
      %1076 = vmatpush1.bf16.xpose.msra.mxu0 0
      %1077 = vmatprep.subr.bf16.mxu0 0
      %1078 = vmatpush1.bf16.xpose.msra.mxu0 0
      %1079 = vmatprep.subr.bf16.mxu0 0
      %1080 = vmatpush1.bf16.xpose.msra.mxu0 0
      %1081 = vmatprep.subr.bf16.mxu0 0
      %1082 = vmatpush1.bf16.xpose.msra.mxu0 0
      %1083 = vmatprep.subr.bf16.mxu0 0
      %1084 = vmatpush1.bf16.xpose.msra.mxu0 0
      %1085 = vmatprep.subr.bf16.mxu0 0
      %1086 = vmatpush1.bf16.xpose.msra.mxu0 0
      %1087 = vmatprep.subr.bf16.mxu0 0
      %1088 = vmatpush1.bf16.xpose.msra.mxu0 0
      %1089 = vmatprep.subr.bf16.mxu0 0
      %1090 = vmatpush1.bf16.xpose.msra.mxu0 0
      %1091 = vmatprep.subr.bf16.mxu0 0
      %1092 = vmatpush1.bf16.xpose.msra.mxu0 0
      %1093 = vmatprep.subr.bf16.mxu0 0
      %1094 = vmatpush1.bf16.xpose.msra.mxu0 0
      %1095 = vmatprep.subr.bf16.mxu0 0
      %1096 = vmatpush1.bf16.xpose.msra.mxu0 0
      %1097 = vmatprep.subr.bf16.mxu0 0
      %1098 = vmatpush1.bf16.xpose.msra.mxu0 0
      %1099 = vmatprep.mubr.bf16.mxu0 0
      %1100 = vmatmul.mubr.bf16.gmra.mrb[0].mxu0 %v1056
      %v1101 = vpop.f32.mrb[0].mxu0
      %v1102 = vadd.f32 %v1039, %v1101
      %v1103 = vpop.f32.mrb[0].mxu0
      %v1104 = vpop.f32.mrb[0].mxu0
      %v1105 = vadd.f32 %v1040, %v1104
      %v1106 = vpop.f32.mrb[0].mxu0
      %1107 = vmatprep.mubr.bf16.mxu0 0
      %1108 = vmatmul.mubr.bf16.gmra.mrb[0].mxu0 %v1059
      %v1109 = vpop.f32.mrb[0].mxu0
      %v1110 = vadd.f32 %v1041, %v1109
      %v1111 = vpop.f32.mrb[0].mxu0
      %v1112 = vpop.f32.mrb[0].mxu0
      %v1113 = vadd.f32 %v1042, %v1112
      %v1114 = vpop.f32.mrb[0].mxu0
      %1115 = vdwg.mxu0
      %v1116 = vsel %vm698, %v1102, -inf
      %1117 = vmax.xlane.f32.xlu0 %v1116
      %v1118 = vpop.xlane.xlu0 %1117
      %v1119 = vsel %vm698, %v1105, -inf
      %1120 = vmax.xlane.f32.xlu0 %v1119
      %v1121 = vpop.xlane.xlu0 %1120
      %v1122 = vsel %vm698, %v1110, -inf
      %1123 = vmax.xlane.f32.xlu0 %v1122
      %v1124 = vpop.xlane.xlu0 %1123
      %v1125 = vsel %vm698, %v1113, -inf
      %1126 = vmax.xlane.f32.xlu0 %v1125
      %v1127 = vpop.xlane.xlu0 %1126
      %v1128 = vsub.f32 %v1102, %v1118
      %v1129 = vsub.f32 %v1105, %v1121
      %v1130 = vsub.f32 %v1110, %v1124
      %v1131 = vsub.f32 %v1113, %v1127
      %v1132 = vmul.f32 %v1128, 1.442695
      %v1133 = vpow.pop %v1132
      %v1134 = vmul.f32 %v1129, 1.442695
      %v1135 = vpow.pop %v1134
      %v1136 = vmul.f32 %v1130, 1.442695
      %v1137 = vpow.pop %v1136
      %v1138 = vmul.f32 %v1131, 1.442695
      %v1139 = vpow.pop %v1138
      %v1140 = vsel %vm698, %v1133, 0.0
      %1141 = vadd.xlane.f32.xlu0 %v1140
      %v1142 = vpop.xlane.xlu0 %1141
      %v1143 = vsel %vm698, %v1135, 0.0
      %1144 = vadd.xlane.f32.xlu0 %v1143
      %v1145 = vpop.xlane.xlu0 %1144
      %v1146 = vsel %vm698, %v1137, 0.0
      %1147 = vadd.xlane.f32.xlu0 %v1146
      %v1148 = vpop.xlane.xlu0 %1147
      %v1149 = vsel %vm698, %v1139, 0.0
      %1150 = vadd.xlane.f32.xlu0 %v1149
      %v1151 = vpop.xlane.xlu0 %1150
      %v1152 = vrcp.pop %v1142
      %v1153 = vrcp.pop %v1145
      %v1154 = vrcp.pop %v1148
      %v1155 = vrcp.pop %v1151
      %v1156 = vmul.f32 %v1142, %v1152
      %v1157 = vmul.f32 %v1145, %v1153
      %v1158 = vmul.f32 %v1148, %v1154
      %v1159 = vmul.f32 %v1151, %v1155
      %v1160 = vsub.f32 2.0, %v1156
      %v1161 = vsub.f32 2.0, %v1157
      %v1162 = vsub.f32 2.0, %v1158
      %v1163 = vsub.f32 2.0, %v1159
      %v1164 = vmul.f32 %v1152, %v1160
      %v1165 = vmul.f32 %v1153, %v1161
      %v1166 = vmul.f32 %v1154, %v1162
      %v1167 = vmul.f32 %v1155, %v1163
      %v1168 = vmul.f32 %v1133, %v1164
      %v1169 = vmul.f32 %v1135, %v1165
      %v1170 = vmul.f32 %v1137, %v1166
      %v1171 = vmul.f32 %v1139, %v1167
      %v1172 = vpack.c.bf16 %v1169, %v1168
      %v1173 = vpack.c.bf16 %v1171, %v1170
      %1176 = vrot.lane.b32.xlu0 %v1037, 112
      %v1177 = vpop.permute.xlu0 %1176
      %1178 = vrot.lane.b32.xlu0 %v1038, 112
      %v1179 = vpop.permute.xlu0 %1178
      %v1183 = vsel %vm698, %v1172, 0
      %v1186 = vsel %vm698, %v1173, 0
      %1188 = vmatprep.subr.bf16.mxu0 0
      %1189 = vmatpush1.bf16.msra.mxu0 %v1177
      %1190 = vmatprep.subr.bf16.mxu0 0
      %1191 = vmatpush1.bf16.msra.mxu0 %v1179
      %1192 = vmatprep.subr.bf16.mxu0 0
      %1193 = vmatpush1.bf16.msra.mxu0 0
      %1194 = vmatprep.subr.bf16.mxu0 0
      %1195 = vmatpush1.bf16.msra.mxu0 0
      %1196 = vmatprep.subr.bf16.mxu0 0
      %1197 = vmatpush1.bf16.msra.mxu0 0
      %1198 = vmatprep.subr.bf16.mxu0 0
      %1199 = vmatpush1.bf16.msra.mxu0 0
      %1200 = vmatprep.subr.bf16.mxu0 0
      %1201 = vmatpush1.bf16.msra.mxu0 0
      %1202 = vmatprep.subr.bf16.mxu0 0
      %1203 = vmatpush1.bf16.msra.mxu0 0
      %1204 = vmatprep.subr.bf16.mxu0 0
      %1205 = vmatpush1.bf16.msra.mxu0 0
      %1206 = vmatprep.subr.bf16.mxu0 0
      %1207 = vmatpush1.bf16.msra.mxu0 0
      %1208 = vmatprep.subr.bf16.mxu0 0
      %1209 = vmatpush1.bf16.msra.mxu0 0
      %1210 = vmatprep.subr.bf16.mxu0 0
      %1211 = vmatpush1.bf16.msra.mxu0 0
      %1212 = vmatprep.subr.bf16.mxu0 0
      %1213 = vmatpush1.bf16.msra.mxu0 0
      %1214 = vmatprep.subr.bf16.mxu0 0
      %1215 = vmatpush1.bf16.msra.mxu0 0
      %1216 = vmatprep.subr.bf16.mxu0 0
      %1217 = vmatpush1.bf16.msra.mxu0 0
      %1218 = vmatprep.subr.bf16.mxu0 0
      %1219 = vmatpush1.bf16.msra.mxu0 0
      %1220 = vmatprep.mubr.bf16.mxu0 0
      %1221 = vmatmul.mubr.bf16.gmra.mrb[0].mxu0 %v1183
      %v1222 = vpop.f32.mrb[0].mxu0
      %v1223 = vadd.f32 0.0, %v1222
      %v1224 = vpop.f32.mrb[0].mxu0
      %v1225 = vpop.f32.mrb[0].mxu0
      %v1226 = vadd.f32 0.0, %v1225
      %v1227 = vpop.f32.mrb[0].mxu0
      %1228 = vmatprep.mubr.bf16.mxu0 0
      %1229 = vmatmul.mubr.bf16.gmra.mrb[0].mxu0 %v1186
      %v1230 = vpop.f32.mrb[0].mxu0
      %v1231 = vadd.f32 0.0, %v1230
      %v1232 = vpop.f32.mrb[0].mxu0
      %v1233 = vpop.f32.mrb[0].mxu0
      %v1234 = vadd.f32 0.0, %v1233
      %v1235 = vpop.f32.mrb[0].mxu0
      %1236 = vdwg.mxu0
      %v1237 = vpack.c.bf16 %v1226, %v1223
      %v1238 = vpack.c.bf16 %v1234, %v1231
      %1241 = vrot.lane.b32.xlu0 %v1237, 16
      %v1242 = vpop.permute.xlu0 %1241
      %1243 = vrot.lane.b32.xlu0 %v1238, 16
      %v1244 = vpop.permute.xlu0 %1243
      %vm1247 = vcmask 195712
      %1248 = vst.msk [vmem:[#allocation3] sm:$0xff] %vm1247, %v1242
      %1249 = vst.msk [vmem:[#allocation3 + $0x8] sm:$0xff] %vm1247, %v1244
      %v1250 = vld [vmem:[#allocation2] sm:$0xff]
      %v1251 = vld [vmem:[#allocation2 + $0x18] sm:$0xff]
      %v1252 = vld [vmem:[#allocation2 + $0x8] sm:$0xff]
      %v1253 = vld [vmem:[#allocation2 + $0x20] sm:$0xff]
      %v1254 = vld [vmem:[#allocation2 + $0x10] sm:$0xff]
      %v1255 = vld [vmem:[#allocation2 + $0x28] sm:$0xff]
      %v1256 = vld [vmem:[%s1] sm:$0xff]
      %v1257 = vld [vmem:[%s1 + $0x8] sm:$0xff]
      %v1258 = vld [vmem:[%s1 + $0x10] sm:$0xff]
      %v1259 = vld [vmem:[%s1 + $0x18] sm:$0xff]
      %1262 = vrot.lane.b32.xlu0 %v1250, 104
      %v1263 = vpop.permute.xlu0 %1262
      %1264 = vrot.lane.b32.xlu0 %v1251, 104
      %v1265 = vpop.permute.xlu0 %1264
      %1268 = vrot.lane.b32.xlu0 %v1252, 104
      %v1269 = vpop.permute.xlu0 %1268
      %1270 = vrot.lane.b32.xlu0 %v1253, 104
      %v1271 = vpop.permute.xlu0 %1270
      %v1273 = vsel %vm636, %v1263, 0
      %v1276 = vsel %vm636, %v1265, 0
      %v1279 = vsel %vm636, %v1269, 0
      %v1282 = vsel %vm636, %v1271, 0
      %1284 = vmatprep.subr.bf16.mxu0 0
      %1285 = vmatpush1.bf16.xpose.msra.mxu0 %v1279
      %1286 = vmatprep.subr.bf16.mxu0 0
      %1287 = vmatpush1.bf16.xpose.msra.mxu0 %v1282
      %1288 = vmatprep.subr.bf16.mxu0 0
      %1289 = vmatpush1.bf16.xpose.msra.mxu0 0
      %1290 = vmatprep.subr.bf16.mxu0 0
      %1291 = vmatpush1.bf16.xpose.msra.mxu0 0
      %1292 = vmatprep.subr.bf16.mxu0 0
      %1293 = vmatpush1.bf16.xpose.msra.mxu0 0
      %1294 = vmatprep.subr.bf16.mxu0 0
      %1295 = vmatpush1.bf16.xpose.msra.mxu0 0
      %1296 = vmatprep.subr.bf16.mxu0 0
      %1297 = vmatpush1.bf16.xpose.msra.mxu0 0
      %1298 = vmatprep.subr.bf16.mxu0 0
      %1299 = vmatpush1.bf16.xpose.msra.mxu0 0
      %1300 = vmatprep.subr.bf16.mxu0 0
      %1301 = vmatpush1.bf16.xpose.msra.mxu0 0
      %1302 = vmatprep.subr.bf16.mxu0 0
      %1303 = vmatpush1.bf16.xpose.msra.mxu0 0
      %1304 = vmatprep.subr.bf16.mxu0 0
      %1305 = vmatpush1.bf16.xpose.msra.mxu0 0
      %1306 = vmatprep.subr.bf16.mxu0 0
      %1307 = vmatpush1.bf16.xpose.msra.mxu0 0
      %1308 = vmatprep.subr.bf16.mxu0 0
      %1309 = vmatpush1.bf16.xpose.msra.mxu0 0
      %1310 = vmatprep.subr.bf16.mxu0 0
      %1311 = vmatpush1.bf16.xpose.msra.mxu0 0
      %1312 = vmatprep.subr.bf16.mxu0 0
      %1313 = vmatpush1.bf16.xpose.msra.mxu0 0
      %1314 = vmatprep.subr.bf16.mxu0 0
      %1315 = vmatpush1.bf16.xpose.msra.mxu0 0
      %1316 = vmatprep.mubr.bf16.mxu0 0
      %1317 = vmatmul.mubr.bf16.gmra.mrb[0].mxu0 %v1273
      %v1318 = vpop.f32.mrb[0].mxu0
      %v1319 = vadd.f32 %v1256, %v1318
      %v1320 = vpop.f32.mrb[0].mxu0
      %v1321 = vpop.f32.mrb[0].mxu0
      %v1322 = vadd.f32 %v1257, %v1321
      %v1323 = vpop.f32.mrb[0].mxu0
      %1324 = vmatprep.mubr.bf16.mxu0 0
      %1325 = vmatmul.mubr.bf16.gmra.mrb[0].mxu0 %v1276
      %v1326 = vpop.f32.mrb[0].mxu0
      %v1327 = vadd.f32 %v1258, %v1326
      %v1328 = vpop.f32.mrb[0].mxu0
      %v1329 = vpop.f32.mrb[0].mxu0
      %v1330 = vadd.f32 %v1259, %v1329
      %v1331 = vpop.f32.mrb[0].mxu0
      %1332 = vdwg.mxu0
      %v1333 = vsel %vm698, %v1319, -inf
      %1334 = vmax.xlane.f32.xlu0 %v1333
      %v1335 = vpop.xlane.xlu0 %1334
      %v1336 = vsel %vm698, %v1322, -inf
      %1337 = vmax.xlane.f32.xlu0 %v1336
      %v1338 = vpop.xlane.xlu0 %1337
      %v1339 = vsel %vm698, %v1327, -inf
      %1340 = vmax.xlane.f32.xlu0 %v1339
      %v1341 = vpop.xlane.xlu0 %1340
      %v1342 = vsel %vm698, %v1330, -inf
      %1343 = vmax.xlane.f32.xlu0 %v1342
      %v1344 = vpop.xlane.xlu0 %1343
      %v1345 = vsub.f32 %v1319, %v1335
      %v1346 = vsub.f32 %v1322, %v1338
      %v1347 = vsub.f32 %v1327, %v1341
      %v1348 = vsub.f32 %v1330, %v1344
      %v1349 = vmul.f32 %v1345, 1.442695
      %v1350 = vpow.pop %v1349
      %v1351 = vmul.f32 %v1346, 1.442695
      %v1352 = vpow.pop %v1351
      %v1353 = vmul.f32 %v1347, 1.442695
      %v1354 = vpow.pop %v1353
      %v1355 = vmul.f32 %v1348, 1.442695
      %v1356 = vpow.pop %v1355
      %v1357 = vsel %vm698, %v1350, 0.0
      %1358 = vadd.xlane.f32.xlu0 %v1357
      %v1359 = vpop.xlane.xlu0 %1358
      %v1360 = vsel %vm698, %v1352, 0.0
      %1361 = vadd.xlane.f32.xlu0 %v1360
      %v1362 = vpop.xlane.xlu0 %1361
      %v1363 = vsel %vm698, %v1354, 0.0
      %1364 = vadd.xlane.f32.xlu0 %v1363
      %v1365 = vpop.xlane.xlu0 %1364
      %v1366 = vsel %vm698, %v1356, 0.0
      %1367 = vadd.xlane.f32.xlu0 %v1366
      %v1368 = vpop.xlane.xlu0 %1367
      %v1369 = vrcp.pop %v1359
      %v1370 = vrcp.pop %v1362
      %v1371 = vrcp.pop %v1365
      %v1372 = vrcp.pop %v1368
      %v1373 = vmul.f32 %v1359, %v1369
      %v1374 = vmul.f32 %v1362, %v1370
      %v1375 = vmul.f32 %v1365, %v1371
      %v1376 = vmul.f32 %v1368, %v1372
      %v1377 = vsub.f32 2.0, %v1373
      %v1378 = vsub.f32 2.0, %v1374
      %v1379 = vsub.f32 2.0, %v1375
      %v1380 = vsub.f32 2.0, %v1376
      %v1381 = vmul.f32 %v1369, %v1377
      %v1382 = vmul.f32 %v1370, %v1378
      %v1383 = vmul.f32 %v1371, %v1379
      %v1384 = vmul.f32 %v1372, %v1380
      %v1385 = vmul.f32 %v1350, %v1381
      %v1386 = vmul.f32 %v1352, %v1382
      %v1387 = vmul.f32 %v1354, %v1383
      %v1388 = vmul.f32 %v1356, %v1384
      %v1389 = vpack.c.bf16 %v1386, %v1385
      %v1390 = vpack.c.bf16 %v1388, %v1387
      %1393 = vrot.lane.b32.xlu0 %v1254, 104
      %v1394 = vpop.permute.xlu0 %1393
      %1395 = vrot.lane.b32.xlu0 %v1255, 104
      %v1396 = vpop.permute.xlu0 %1395
      %v1400 = vsel %vm698, %v1389, 0
      %v1403 = vsel %vm698, %v1390, 0
      %1405 = vmatprep.subr.bf16.mxu0 0
      %1406 = vmatpush1.bf16.msra.mxu0 %v1394
      %1407 = vmatprep.subr.bf16.mxu0 0
      %1408 = vmatpush1.bf16.msra.mxu0 %v1396
      %1409 = vmatprep.subr.bf16.mxu0 0
      %1410 = vmatpush1.bf16.msra.mxu0 0
      %1411 = vmatprep.subr.bf16.mxu0 0
      %1412 = vmatpush1.bf16.msra.mxu0 0
      %1413 = vmatprep.subr.bf16.mxu0 0
      %1414 = vmatpush1.bf16.msra.mxu0 0
      %1415 = vmatprep.subr.bf16.mxu0 0
      %1416 = vmatpush1.bf16.msra.mxu0 0
      %1417 = vmatprep.subr.bf16.mxu0 0
      %1418 = vmatpush1.bf16.msra.mxu0 0
      %1419 = vmatprep.subr.bf16.mxu0 0
      %1420 = vmatpush1.bf16.msra.mxu0 0
      %1421 = vmatprep.subr.bf16.mxu0 0
      %1422 = vmatpush1.bf16.msra.mxu0 0
      %1423 = vmatprep.subr.bf16.mxu0 0
      %1424 = vmatpush1.bf16.msra.mxu0 0
      %1425 = vmatprep.subr.bf16.mxu0 0
      %1426 = vmatpush1.bf16.msra.mxu0 0
      %1427 = vmatprep.subr.bf16.mxu0 0
      %1428 = vmatpush1.bf16.msra.mxu0 0
      %1429 = vmatprep.subr.bf16.mxu0 0
      %1430 = vmatpush1.bf16.msra.mxu0 0
      %1431 = vmatprep.subr.bf16.mxu0 0
      %1432 = vmatpush1.bf16.msra.mxu0 0
      %1433 = vmatprep.subr.bf16.mxu0 0
      %1434 = vmatpush1.bf16.msra.mxu0 0
      %1435 = vmatprep.subr.bf16.mxu0 0
      %1436 = vmatpush1.bf16.msra.mxu0 0
      %1437 = vmatprep.mubr.bf16.mxu0 0
      %1438 = vmatmul.mubr.bf16.gmra.mrb[0].mxu0 %v1400
      %v1439 = vpop.f32.mrb[0].mxu0
      %v1440 = vadd.f32 0.0, %v1439
      %v1441 = vpop.f32.mrb[0].mxu0
      %v1442 = vpop.f32.mrb[0].mxu0
      %v1443 = vadd.f32 0.0, %v1442
      %v1444 = vpop.f32.mrb[0].mxu0
      %1445 = vmatprep.mubr.bf16.mxu0 0
      %1446 = vmatmul.mubr.bf16.gmra.mrb[0].mxu0 %v1403
      %v1447 = vpop.f32.mrb[0].mxu0
      %v1448 = vadd.f32 0.0, %v1447
      %v1449 = vpop.f32.mrb[0].mxu0
      %v1450 = vpop.f32.mrb[0].mxu0
      %v1451 = vadd.f32 0.0, %v1450
      %v1452 = vpop.f32.mrb[0].mxu0
      %1453 = vdwg.mxu0
      %v1454 = vpack.c.bf16 %v1443, %v1440
      %v1455 = vpack.c.bf16 %v1451, %v1448
      %1458 = vrot.lane.b32.xlu0 %v1454, 24
      %v1459 = vpop.permute.xlu0 %1458
      %1460 = vrot.lane.b32.xlu0 %v1455, 24
      %v1461 = vpop.permute.xlu0 %1460
      %vm1464 = vcmask 261312
      %1465 = vst.msk [vmem:[#allocation3] sm:$0xff] %vm1464, %v1459
      %1466 = vst.msk [vmem:[#allocation3 + $0x8] sm:$0xff] %vm1464, %v1461
      %v1467 = vld [vmem:[#allocation3] sm:$0xff]
      %v1468 = vld [vmem:[#allocation3 + $0x8] sm:$0xff]
      %v1469 = vld [vmem:[%s4] sm:$0xf]
      %v1470 = vld [vmem:[%s4 + $0x4] sm:$0xf]
      %v1471 = vld [vmem:[%s4 + $0x8] sm:$0xf]
      %v1472 = vld [vmem:[%s4 + $0xc] sm:$0xf]
      %v1473 = vld [vmem:[%s4 + $0x10] sm:$0xf]
      %v1474 = vld [vmem:[%s4 + $0x14] sm:$0xf]
      %v1475 = vld [vmem:[%s4 + $0x18] sm:$0xf]
      %v1476 = vld [vmem:[%s4 + $0x1c] sm:$0xf]
      %v1477 = vld [vmem:[%s4 + $0x20] sm:$0xf]
      %v1478 = vld [vmem:[%s4 + $0x24] sm:$0xf]
      %v1479 = vld [vmem:[%s4 + $0x28] sm:$0xf]
      %v1480 = vld [vmem:[%s4 + $0x2c] sm:$0xf]
      %v1481 = vld [vmem:[%s4 + $0x30] sm:$0xf]
      %v1482 = vld [vmem:[%s4 + $0x34] sm:$0xf]
      %v1483 = vld [vmem:[%s4 + $0x38] sm:$0xf]
      %v1484 = vld [vmem:[%s4 + $0x3c] sm:$0xf]
      %v1501 = vunpack.c.l.b16 %v1469
      %v1502 = vunpack.c.l.b16 %v1470
      %v1503 = vunpack.c.l.b16 %v1471
      %v1504 = vunpack.c.l.b16 %v1472
      %v1505 = vunpack.c.l.b16 %v1473
      %v1506 = vunpack.c.l.b16 %v1474
      %v1507 = vunpack.c.l.b16 %v1475
      %v1508 = vunpack.c.l.b16 %v1476
      %v1509 = vunpack.c.l.b16 %v1477
      %v1510 = vunpack.c.l.b16 %v1478
      %v1511 = vunpack.c.l.b16 %v1479
      %v1512 = vunpack.c.l.b16 %v1480
      %v1513 = vunpack.c.l.b16 %v1481
      %v1514 = vunpack.c.l.b16 %v1482
      %v1515 = vunpack.c.l.b16 %v1483
      %v1516 = vunpack.c.l.b16 %v1484
      %v1517 = vpack.c.b16 %v1502, %v1501
      %v1518 = vpack.c.b16 %v1504, %v1503
      %v1519 = vpack.c.b16 %v1506, %v1505
      %v1520 = vpack.c.b16 %v1508, %v1507
      %v1521 = vpack.c.b16 %v1510, %v1509
      %v1522 = vpack.c.b16 %v1512, %v1511
      %v1523 = vpack.c.b16 %v1514, %v1513
      %v1524 = vpack.c.b16 %v1516, %v1515
      %1533 = vmatprep.subr.bf16.mxu0 0
      %1534 = vmatpush1.bf16.msra.mxu0 %v1517
      %1535 = vmatprep.subr.bf16.mxu0 0
      %1536 = vmatpush1.bf16.msra.mxu0 %v1518
      %1537 = vmatprep.subr.bf16.mxu0 0
      %1538 = vmatpush1.bf16.msra.mxu0 %v1519
      %1539 = vmatprep.subr.bf16.mxu0 0
      %1540 = vmatpush1.bf16.msra.mxu0 %v1520
      %1541 = vmatprep.subr.bf16.mxu0 0
      %1542 = vmatpush1.bf16.msra.mxu0 %v1521
      %1543 = vmatprep.subr.bf16.mxu0 0
      %1544 = vmatpush1.bf16.msra.mxu0 %v1522
      %1545 = vmatprep.subr.bf16.mxu0 0
      %1546 = vmatpush1.bf16.msra.mxu0 %v1523
      %1547 = vmatprep.subr.bf16.mxu0 0
      %1548 = vmatpush1.bf16.msra.mxu0 %v1524
      %1549 = vmatprep.subr.bf16.mxu0 0
      %1550 = vmatpush1.bf16.msra.mxu0 0
      %1551 = vmatprep.subr.bf16.mxu0 0
      %1552 = vmatpush1.bf16.msra.mxu0 0
      %1553 = vmatprep.subr.bf16.mxu0 0
      %1554 = vmatpush1.bf16.msra.mxu0 0
      %1555 = vmatprep.subr.bf16.mxu0 0
      %1556 = vmatpush1.bf16.msra.mxu0 0
      %1557 = vmatprep.subr.bf16.mxu0 0
      %1558 = vmatpush1.bf16.msra.mxu0 0
      %1559 = vmatprep.subr.bf16.mxu0 0
      %1560 = vmatpush1.bf16.msra.mxu0 0
      %1561 = vmatprep.subr.bf16.mxu0 0
      %1562 = vmatpush1.bf16.msra.mxu0 0
      %1563 = vmatprep.subr.bf16.mxu0 0
      %1564 = vmatpush1.bf16.msra.mxu0 0
      %1565 = vmatprep.mubr.bf16.mxu0 0
      %1566 = vmatmul.mubr.bf16.gmra.mrb[0].mxu0 %v1467
      %v1567 = vpop.f32.mrb[0].mxu0
      %v1568 = vadd.f32 0.0, %v1567
      %v1569 = vpop.f32.mrb[0].mxu0
      %v1570 = vpop.f32.mrb[0].mxu0
      %v1571 = vadd.f32 0.0, %v1570
      %v1572 = vpop.f32.mrb[0].mxu0
      %1573 = vmatprep.mubr.bf16.mxu0 0
      %1574 = vmatmul.mubr.bf16.gmra.mrb[0].mxu0 %v1468
      %v1575 = vpop.f32.mrb[0].mxu0
      %v1576 = vadd.f32 0.0, %v1575
      %v1577 = vpop.f32.mrb[0].mxu0
      %v1578 = vpop.f32.mrb[0].mxu0
      %v1579 = vadd.f32 0.0, %v1578
      %v1580 = vpop.f32.mrb[0].mxu0
      %1581 = vdwg.mxu0
      %v1582 = vld [vmem:[%s312] sm:$0xff]
      %v1583 = vld [vmem:[%s312 + $0x8] sm:$0xff]
      %v1584 = vld [vmem:[%s312 + $0x10] sm:$0xff]
      %v1585 = vld [vmem:[%s312 + $0x18] sm:$0xff]
      %v1586 = vadd.f32 %v1582, %v1568
      %v1587 = vadd.f32 %v1583, %v1571
      %v1588 = vadd.f32 %v1584, %v1576
      %v1589 = vadd.f32 %v1585, %v1579
      %v1590 = vld [vmem:[%s5] sm:$0x1]
      %v1592 = vlaneseq
      %v1593 = vshrl.u32 %v1592, 7
      %v1594 = vsub.s32 0, %v1593
      %v1595 = vrot.slane %v1590, %v1594
      %v1597 = vadd.f32 %v1586, %v1595
      %v1598 = vadd.f32 %v1587, %v1595
      %v1599 = vadd.f32 %v1588, %v1595
      %v1600 = vadd.f32 %v1589, %v1595
      %1601 = vst [vmem:[%s318] sm:$0xff] %v1597
      %1602 = vst [vmem:[%s318 + $0x8] sm:$0xff] %v1598
      %1603 = vst [vmem:[%s318 + $0x10] sm:$0xff] %v1599
      %1604 = vst [vmem:[%s318 + $0x18] sm:$0xff] %v1600
      %v1605 = vadd.f32 %v1597, %v1598
      %v1606 = vadd.f32 %v1605, %v1599
      %v1607 = vadd.f32 %v1606, %v1600
      %v1608 = vrot.slane %v1607, 4
      %v1609 = vadd.f32 %v1607, %v1608
      %v1610 = vrot.slane %v1609, 2
      %v1611 = vadd.f32 %v1609, %v1610
      %v1612 = vrot.slane %v1611, 1
      %v1613 = vadd.f32 %v1611, %v1612
      %v1614 = vmul.f32 %v1613, 0.03125
      %v1615 = vsub.f32 %v1597, %v1614
      %v1616 = vsub.f32 %v1598, %v1614
      %v1617 = vsub.f32 %v1599, %v1614
      %v1618 = vsub.f32 %v1600, %v1614
      %v1619 = vmul.f32 %v1614, 32.0
      %1620 = vst [vmem:[%s322] sm:$0x1] %v1619
      %v1621 = vmul.f32 %v1615, %v1615
      %v1622 = vmul.f32 %v1616, %v1616
      %v1623 = vmul.f32 %v1617, %v1617
      %v1624 = vmul.f32 %v1618, %v1618
      %v1625 = vadd.f32 %v1621, %v1622
      %v1626 = vadd.f32 %v1625, %v1623
      %v1627 = vadd.f32 %v1626, %v1624
      %v1628 = vrot.slane %v1627, 4
      %v1629 = vadd.f32 %v1627, %v1628
      %v1630 = vrot.slane %v1629, 2
      %v1631 = vadd.f32 %v1629, %v1630
      %v1632 = vrot.slane %v1631, 1
      %v1633 = vadd.f32 %v1631, %v1632
      %1634 = vst [vmem:[%s325] sm:$0x1] %v1633
      %s1635 = smul.u32 4, %s20
      %p1636 = scmp.lt.s32.totalorder %s1635, 7
      %s1637 = scalar_select %p1636, %s1635, 7
      %s1638 = smul.addr %s1637, 8
      %s1639 = scalar_lea.vmem %s6, %s1638
      %p1640 = scmp.lt.s32.totalorder %s20, 1
      %s1641 = scalar_select %p1640, %s20, 1
      %s1642 = scalar_lea.vmem %s7, %s1641
      %p1643 = scmp.lt.s32.totalorder %s20, 1
      %s1644 = scalar_select %p1643, %s20, 1
      %s1645 = scalar_lea.vmem %s8, %s1644
      // Predicated region
      $region45: #{tst_encoder_layer.3} parent=43 // pred_check
        %p1646 = pneg %p169
      $region46: #{tst_encoder_layer.3} parent=43 // pred_check_branch
        %1648 = sbr.rel (%p1646) target = $region48
      $region47: #{tst_encoder_layer.3} parent=43 // pred_region
        %s1649 = smul.u32 4, %s20
      $region48: #{tst_encoder_layer.3} parent=43 // pred_fallthru
        _
      // Predicated region
      $region49: #{tst_encoder_layer.3} parent=43 // pred_check
        %p1650 = pneg %p195
      $region50: #{tst_encoder_layer.3} parent=43 // pred_check_branch
        %1652 = sbr.rel (%p1650) target = $region52
      $region51: #{tst_encoder_layer.3} parent=43 // pred_region
        _
      $region52: #{tst_encoder_layer.3} parent=43 // pred_fallthru
        _
      // Predicated region
      $region53: #{tst_encoder_layer.3} parent=43 // pred_check
        %p1653 = pneg %p221
      $region54: #{tst_encoder_layer.3} parent=43 // pred_check_branch
        %1655 = sbr.rel (%p1653) target = $region56
      $region55: #{tst_encoder_layer.3} parent=43 // pred_region
        _
      $region56: #{tst_encoder_layer.3} parent=43 // pred_fallthru
        _
    $region44: #{tst_encoder_layer.3} parent=5 // pred_fallthru
      _
    %p1656 = scmp.le.s32.totalorder 2, %s15
    // Predicated region
    $region57: #{tst_encoder_layer.3} parent=5 // pred_check
      %p1657 = pneg %p1656
    $region58: #{tst_encoder_layer.3} parent=5 // pred_check_branch
      %1659 = sbr.rel (%p1657) target = $region60
    $region59: #{tst_encoder_layer.3} parent=5 // pred_region
      %s1660 = ssub.s32 %s15, 2
      // Predicated region
      $region61: #{tst_encoder_layer.3} parent=59 // pred_check
        %p1661 = pneg %p175
      $region62: #{tst_encoder_layer.3} parent=59 // pred_check_branch
        %1663 = sbr.rel (%p1661) target = $region64
      $region63: #{tst_encoder_layer.3} parent=59 // pred_region
        %s1664 = smul.u32 4, %s21
        %p1665 = scmp.lt.s32.totalorder %s1664, 7
        %s1666 = scalar_select %p1665, %s1664, 7
        %s1667 = smul.addr %s1666, 8
        %s1668 = scalar_lea.vmem %s6, %s1667
      $region64: #{tst_encoder_layer.3} parent=59 // pred_fallthru
        _
      // Predicated region
      $region65: #{tst_encoder_layer.3} parent=59 // pred_check
        %p1669 = pneg %p201
      $region66: #{tst_encoder_layer.3} parent=59 // pred_check_branch
        %1671 = sbr.rel (%p1669) target = $region68
      $region67: #{tst_encoder_layer.3} parent=59 // pred_region
        %p1672 = scmp.lt.s32.totalorder %s21, 1
        %s1673 = scalar_select %p1672, %s21, 1
        %s1674 = scalar_lea.vmem %s7, %s1673
      $region68: #{tst_encoder_layer.3} parent=59 // pred_fallthru
        _
      // Predicated region
      $region69: #{tst_encoder_layer.3} parent=59 // pred_check
        %p1675 = pneg %p227
      $region70: #{tst_encoder_layer.3} parent=59 // pred_check_branch
        %1677 = sbr.rel (%p1675) target = $region72
      $region71: #{tst_encoder_layer.3} parent=59 // pred_region
        %p1678 = scmp.lt.s32.totalorder %s21, 1
        %s1679 = scalar_select %p1678, %s21, 1
        %s1680 = scalar_lea.vmem %s8, %s1679
      $region72: #{tst_encoder_layer.3} parent=59 // pred_fallthru
        _
    $region60: #{tst_encoder_layer.3} parent=5 // pred_fallthru
      _
  $region6: #{tst_encoder_layer.3} parent=0 // loop_footer
    %s19 = sadd.s32 1, %s15
  $region7: #{tst_encoder_layer.3} parent=0 // loop_footer_branch
    %14 = sbr.rel target = $region3
  $region8: #{tst_encoder_layer.3} parent=0 // loop_exit
    _

</llo_original>
